<compile_context>
chip_gen: v5e
topology: v5e:2x2
jax: 0.10.0
libtpu: 0.0.40
codegen_flags: <defaults>
</compile_context>

<pallas_src>
import functools

import jax
import jax.numpy as jnp
from jax.experimental import pallas as pl
from jax.experimental.pallas import tpu as pltpu


def _round_up(n, m):
    return ((n + m - 1) // m) * m


# ----------------------------------------------------------------------------
# Fused Pallas kernel (one grid step = one batch element)
# ----------------------------------------------------------------------------
def _encoder_kernel(x_ref,
                    c0w_ref, c0b_ref,
                    blw_ref, blb_ref, bsc_ref, bsh_ref, bcw_ref, bcb_ref,
                    esc_ref, esh_ref, ecw_ref, ecb_ref,
                    out_ref, pad_ref):
    L = x_ref.shape[1]

    def conv1d_same(h, w_ref, b, blk=None):
        """Reflection-pad 'same length' Conv1d on channels-last activations.

        h:     (L, Cin) f32 value.
        w_ref: (K, Cin, Cout) or (n_blocks, K, Cin, Cout) bf16 VMEM ref
               (weights stay resident; one (Cin, Cout) tap is read per matmul).
        b:     (1, Cout) f32 value.
        """
        K, c_in = w_ref.shape[-3], w_ref.shape[-2]
        p = K // 2

        # Body of the reflection-padded activation: one bulk store into the
        # shared VMEM scratch (no sublane-axis concatenate).
        pad_ref[pl.ds(p, L), :c_in] = h
        # 2p edge rows copied from the already-stored body (p is small & static).
        for j in range(p):
            pad_ref[p - 1 - j:p - j, :c_in] = pad_ref[p + 1 + j:p + 2 + j, :c_in]
            pad_ref[p + L + j:p + L + 1 + j, :c_in] = \
                pad_ref[p + L - 2 - j:p + L - 1 - j, :c_in]

        def tap(k):
            return w_ref[blk, k] if blk is not None else w_ref[k]

        # K unrolled taps, each read straight from the padded scratch and cast to
        # bf16 as the MXU operand; accumulator initialized from tap 0.
        # TODO(synk): at the real config (K up to 128) switch to an im2col slab
        # ((L, K*Cin) @ (K*Cin, Cout)) or lax.fori_loop(unroll=8) over taps.
        acc = jnp.dot(pad_ref[pl.ds(0, L), :c_in].astype(jnp.bfloat16), tap(0),
                      preferred_element_type=jnp.float32)
        for k in range(1, K):
            acc = acc + jnp.dot(pad_ref[pl.ds(k, L), :c_in].astype(jnp.bfloat16),
                                tap(k), preferred_element_type=jnp.float32)
        # TODO(synk): even kernel + symmetric reflection pad gives length L+1 in
        # the source; the trailing position is dropped ("same" length) so the
        # ConvBlock residual add is shape-consistent.
        return acc + b

    # Fused first layer: the three reflection-pad + Conv1d branches were folded
    # host-side into ONE kernel-size-Kmax conv whose output channels are the
    # lane-contiguous concatenation of the branch outputs.
    # TODO(synk): source declares Conv1d(in_channels=in_dim + kernel_size, ...)
    # and torch.cat(..., dim=0); in_channels=in_dim and a channel-axis concat are
    # the evident intent and are used here.
    h = conv1d_same(x_ref[0], c0w_ref, c0b_ref[...])            # (L, DIM_P) f32

    n_blocks = blw_ref.shape[0]
    for i in range(n_blocks):
        # ConvBlock: Linear -> ReLU -> BatchNorm1d -> ReflectionPad1d -> Conv1d, + x
        # TODO(synk): source applies nn.Linear over the length axis of a (B, C, L)
        # tensor; interpreted as the declared per-position channel mixing.
        z = jnp.dot(h.astype(jnp.bfloat16), blw_ref[i],
                    preferred_element_type=jnp.float32) + blb_ref[i]
        z = jnp.maximum(z, 0.0)
        z = z * bsc_ref[i] + bsh_ref[i]        # folded BatchNorm1d (inference)
        z = conv1d_same(z, bcw_ref, bcb_ref[i], blk=i)
        h = h + z                              # residual shortcut

    # net_end: ReLU -> BatchNorm1d -> ReflectionPad1d -> Conv1d(dim -> latent_dim)
    h = jnp.maximum(h, 0.0)
    h = h * esc_ref[...] + esh_ref[...]
    out = conv1d_same(h, ecw_ref, ecb_ref[...])                  # (L, LAT_P) f32
    out_ref[0] = out


# ----------------------------------------------------------------------------
# Wrapper: batch-parallel grid, resident weights, lane-dense output
# ----------------------------------------------------------------------------
@functools.partial(jax.jit, static_argnames=("latent_dim",))
def convolutional_encoder(x, packed, *, latent_dim):
    """x: (B, L, in_dim) channels-last f32 -> (B, L, latent_dim) f32."""
    B, L, c_in = x.shape
    in_p = packed["c0_w"].shape[1]
    dim_p = packed["blk_lin_w"].shape[-1]
    lat_p = packed["end_conv_w"].shape[-1]
    k_first = packed["c0_w"].shape[0]
    k_block = packed["blk_conv_w"].shape[1]
    p_max = max(k_first, k_block) // 2
    c_p = max(in_p, dim_p)
    # Review concern: reflection padding needs kernel_size//2 < L (static check).
    assert p_max < L, "reflection pad requires kernel_size//2 < sequence length"

    # Lane-dense input: zero-pad channels host/wrapper-side to a multiple of 128.
    xp = jnp.pad(x, ((0, 0), (0, 0), (0, in_p - c_in)))

    # Whole-array VMEM spec: weights/BN stay resident across all grid steps.
    w_res = pl.BlockSpec(memory_space=pltpu.MemorySpace.VMEM)

    out = pl.pallas_call(
        _encoder_kernel,
        out_shape=jax.ShapeDtypeStruct((B, L, lat_p), jnp.float32),
        grid=(B,),
        in_specs=[pl.BlockSpec((1, L, in_p), lambda b: (b, 0, 0))] + [w_res] * 12,
        out_specs=pl.BlockSpec((1, L, lat_p), lambda b: (b, 0, 0)),
        scratch_shapes=[pltpu.VMEM((L + 2 * p_max, c_p), jnp.float32)],
        compiler_params=pltpu.CompilerParams(
            dimension_semantics=("parallel",),          # megacore-shard the batch
            # 64 MiB is safe on every chip; on v5e/v6e this can be raised toward
            # ~100 MiB to allow larger L tiles.
            vmem_limit_bytes=64 * 1024 * 1024),
    )(xp,
      packed["c0_w"], packed["c0_b"],
      packed["blk_lin_w"], packed["blk_lin_b"],
      packed["blk_bn_scale"], packed["blk_bn_shift"],
      packed["blk_conv_w"], packed["blk_conv_b"],
      packed["end_bn_scale"], packed["end_bn_shift"],
      packed["end_conv_w"], packed["end_conv_b"])
    # Lane-dense (…,128) store inside the kernel; slice to latent_dim outside.
    return out[..., :latent_dim]


# ----------------------------------------------------------------------------
# Deterministic logical parameters (PyTorch-style init, no checkpoint load)
# ----------------------------------------------------------------------------
def make_params(key, in_dim, latent_dim, conv_out_channels, kernel_sizes,
                n_blocks, block_kernel_size):
    dim = sum(conv_out_channels)
    keys = iter(jax.random.split(key, 3 + 3 * n_blocks + 2))

    def conv_init(k, ksz, cin, cout):
        # PyTorch Conv1d stores (Cout, Cin, K); built directly in (K, Cin, Cout).
        s = 1.0 / float(cin * ksz) ** 0.5
        kw, kb = jax.random.split(k)
        w = jax.random.uniform(kw, (ksz, cin, cout), jnp.float32, -s, s)
        b = jax.random.uniform(kb, (1, cout), jnp.float32, -s, s)
        return w, b

    def lin_init(k, cin, cout):
        s = 1.0 / float(cin) ** 0.5
        kw, kb = jax.random.split(k)
        w = jax.random.uniform(kw, (cin, cout), jnp.float32, -s, s)   # W^T
        b = jax.random.uniform(kb, (1, cout), jnp.float32, -s, s)
        return w, b

    def bn_fold(k, c, eps=1e-5):
        # TODO(synk): BatchNorm1d implemented in inference mode (running stats),
        # folded host-side into a per-channel scale/shift.
        kg, kb, km, kv = jax.random.split(k, 4)
        gamma = 1.0 + 0.1 * jax.random.normal(kg, (1, c), jnp.float32)
        beta = 0.1 * jax.random.normal(kb, (1, c), jnp.float32)
        mean = 0.1 * jax.random.normal(km, (1, c), jnp.float32)
        var = 1.0 + 0.1 * jnp.abs(jax.random.normal(kv, (1, c), jnp.float32))
        scale = gamma / jnp.sqrt(var + eps)
        return scale, beta - mean * scale

    # TODO(synk): source declares Conv1d(in_channels=in_dim + kernel_size, ...)
    # (and dim + block_kernel_size inside ConvBlock); the true channel counts
    # (in_dim / dim) are used.
    c0_w, c0_b = conv_init(next(keys), kernel_sizes[0], in_dim, conv_out_channels[0])
    c1_w, c1_b = conv_init(next(keys), kernel_sizes[1], in_dim, conv_out_channels[1])
    c2_w, c2_b = conv_init(next(keys), kernel_sizes[2], in_dim, conv_out_channels[2])

    lw_l, lb_l, sc_l, sh_l, cw_l, cb_l = [], [], [], [], [], []
    for _ in range(n_blocks):
        lw, lb = lin_init(next(keys), dim, dim)
        sc, sh = bn_fold(next(keys), dim)
        cw, cb = conv_init(next(keys), block_kernel_size, dim, dim)
        lw_l.append(lw); lb_l.append(lb); sc_l.append(sc); sh_l.append(sh)
        cw_l.append(cw); cb_l.append(cb)

    end_scale, end_shift = bn_fold(next(keys), dim)
    end_cw, end_cb = conv_init(next(keys), block_kernel_size, dim, latent_dim)

    return {
        "c0_w": c0_w, "c0_b": c0_b,
        "c1_w": c1_w, "c1_b": c1_b,
        "c2_w": c2_w, "c2_b": c2_b,
        "blk_lin_w": jnp.stack(lw_l), "blk_lin_b": jnp.stack(lb_l),
        "blk_bn_scale": jnp.stack(sc_l), "blk_bn_shift": jnp.stack(sh_l),
        "blk_conv_w": jnp.stack(cw_l), "blk_conv_b": jnp.stack(cb_l),
        "end_bn_scale": end_scale, "end_bn_shift": end_shift,
        "end_conv_w": end_cw, "end_conv_b": end_cb,
    }


# ----------------------------------------------------------------------------
# Host-side packing: fuse first-layer branches, pad channels to 128, cast bf16
# ----------------------------------------------------------------------------
def pack_params(p, lane=128):
    k0, k1, k2 = p["c0_w"].shape[0], p["c1_w"].shape[0], p["c2_w"].shape[0]
    kmax = max(k0, k1, k2)
    in_dim = p["c0_w"].shape[1]
    dim = p["c0_w"].shape[2] + p["c1_w"].shape[2] + p["c2_w"].shape[2]
    latent = p["end_conv_w"].shape[2]
    in_p, dim_p, lat_p = (_round_up(in_dim, lane), _round_up(dim, lane),
                          _round_up(latent, lane))

    # Fuse the three branches into one K=kmax conv: a K_i kernel applied after a
    # K_i//2 reflection pad is identical to the same kernel zero-padded
    # symmetrically to K=kmax applied after a kmax//2 reflection pad.
    def place(w):
        k = w.shape[0]
        assert (kmax - k) % 2 == 0, "branch fusion needs matching kernel parity"
        off = (kmax - k) // 2
        return jnp.pad(w, ((off, kmax - k - off), (0, 0), (0, 0)))

    w_fused = jnp.concatenate([place(p["c0_w"]), place(p["c1_w"]), place(p["c2_w"])],
                              axis=-1)                               # (kmax, in_dim, dim)
    b_fused = jnp.concatenate([p["c0_b"], p["c1_b"], p["c2_b"]], axis=-1)

    def pad_w(w, ci_p, co_p):       # (..., K, Ci, Co) -> padded, bf16
        padc = [(0, 0)] * (w.ndim - 2) + [(0, ci_p - w.shape[-2]), (0, co_p - w.shape[-1])]
        return jnp.pad(w, padc).astype(jnp.bfloat16)

    def pad_vec(v, c_p):            # pad last (channel) axis with zeros, keep f32
        return jnp.pad(v, [(0, 0)] * (v.ndim - 1) + [(0, c_p - v.shape[-1])])

    return {
        "c0_w": pad_w(w_fused, in_p, dim_p),
        "c0_b": pad_vec(b_fused, dim_p),
        "blk_lin_w": pad_w(p["blk_lin_w"], dim_p, dim_p),
        "blk_lin_b": pad_vec(p["blk_lin_b"], dim_p),
        "blk_bn_scale": pad_vec(p["blk_bn_scale"], dim_p),
        "blk_bn_shift": pad_vec(p["blk_bn_shift"], dim_p),
        "blk_conv_w": pad_w(p["blk_conv_w"], dim_p, dim_p),
        "blk_conv_b": pad_vec(p["blk_conv_b"], dim_p),
        "end_bn_scale": pad_vec(p["end_bn_scale"], dim_p),
        "end_bn_shift": pad_vec(p["end_bn_shift"], dim_p),
        "end_conv_w": pad_w(p["end_conv_w"], dim_p, lat_p),
        "end_conv_b": pad_vec(p["end_conv_b"], lat_p),
    }


# ----------------------------------------------------------------------------
# References
# ----------------------------------------------------------------------------
def _ref_packed(x, kp, latent_dim):
    """Pure-JAX mirror of the kernel math (same padded dims, same bf16 operands,
    same tap order) -> tight tolerance catches any layout/indexing bug."""
    B, L, c_in = x.shape
    in_p = kp["c0_w"].shape[1]
    xp = jnp.pad(x, ((0, 0), (0, 0), (0, in_p - c_in)))

    def reflect_idx(n, p):
        return jnp.array(list(range(p, 0, -1)) + list(range(n)) +
                         list(range(n - 2, n - 2 - p, -1)), jnp.int32)

    def conv_same(h, w, b):
        K = w.shape[0]
        hp = h[reflect_idx(h.shape[0], K // 2), :].astype(jnp.bfloat16)
        acc = jnp.dot(hp[0:L], w[0], preferred_element_type=jnp.float32)
        for k in range(1, K):
            acc = acc + jnp.dot(hp[k:k + L], w[k], preferred_element_type=jnp.float32)
        return acc + b

    outs = []
    for bi in range(B):
        h = conv_same(xp[bi], kp["c0_w"], kp["c0_b"])
        for i in range(kp["blk_lin_w"].shape[0]):
            z = jnp.dot(h.astype(jnp.bfloat16), kp["blk_lin_w"][i],
                        preferred_element_type=jnp.float32) + kp["blk_lin_b"][i]
            z = jnp.maximum(z, 0.0)
            z = z * kp["blk_bn_scale"][i] + kp["blk_bn_shift"][i]
            z = conv_same(z, kp["blk_conv_w"][i], kp["blk_conv_b"][i])
            h = h + z
        h = jnp.maximum(h, 0.0)
        h = h * kp["end_bn_scale"] + kp["end_bn_shift"]
        outs.append(conv_same(h, kp["end_conv_w"], kp["end_conv_b"]))
    return jnp.stack(outs)[..., :latent_dim]


def _ref_f32(x, p):
    """f32 HIGHEST-precision reference of the module semantics (separate branches,
    no fusion/padding/bf16) - validates the host-side packing end-to-end."""
    def reflect_pad(v, pad):
        Lv = v.shape[1]
        idx = jnp.array(list(range(pad, 0, -1)) + list(range(Lv)) +
                        list(range(Lv - 2, Lv - 2 - pad, -1)), jnp.int32)
        return v[:, idx, :]

    def conv_same(v, w, b):
        Bv, Lv, _ = v.shape
        K, _, Co = w.shape
        vp = reflect_pad(v, K // 2)
        acc = jnp.zeros((Bv, Lv, Co), jnp.float32)
        for k in range(K):
            acc = acc + jnp.einsum("blc,cd->bld", vp[:, k:k + Lv, :], w[k],
                                   precision=jax.lax.Precision.HIGHEST)
        return acc + b

    y0 = conv_same(x, p["c0_w"], p["c0_b"])
    y1 = conv_same(x, p["c1_w"], p["c1_b"])
    y2 = conv_same(x, p["c2_w"], p["c2_b"])
    h = jnp.concatenate([y0, y1, y2], axis=-1)
    for i in range(p["blk_lin_w"].shape[0]):
        z = jnp.einsum("blc,cd->bld", h, p["blk_lin_w"][i],
                       precision=jax.lax.Precision.HIGHEST) + p["blk_lin_b"][i]
        z = jnp.maximum(z, 0.0)
        z = z * p["blk_bn_scale"][i] + p["blk_bn_shift"][i]
        z = conv_same(z, p["blk_conv_w"][i], p["blk_conv_b"][i])
        h = h + z
    h = jnp.maximum(h, 0.0)
    h = h * p["end_bn_scale"] + p["end_bn_shift"]
    return conv_same(h, p["end_conv_w"], p["end_conv_b"])


if __name__ == "__main__":
    key = jax.random.PRNGKey(0)
    kx, kp = jax.random.split(key)

    # Small shapes consistent with the module (scaled-down defaults):
    B, L = 2, 16
    in_dim, latent_dim = 16, 4
    conv_out_channels = (16, 16, 8)      # dim = 40
    kernel_sizes = (8, 4, 4)             # even, like (128, 64, 16)
    n_blocks, block_kernel_size = 2, 8

    x = jax.random.normal(kx, (B, L, in_dim), jnp.float32)   # channels-last
    params = make_params(kp, in_dim, latent_dim, conv_out_channels,
                         kernel_sizes, n_blocks, block_kernel_size)
    packed = pack_params(params)

    out = convolutional_encoder(x, packed, latent_dim=latent_dim)
    out = jax.block_until_ready(out)

    assert out.shape == (B, L, latent_dim), out.shape
    assert bool(jnp.all(jnp.isfinite(out)))

    # (a) tight check vs. a structurally identical bf16/padded JAX reference:
    #     catches layout / pad / slice off-by-one bugs; tolerance allows only
    #     f32 accumulation-order noise between the Pallas and XLA dot lowerings.
    ref_tight = _ref_packed(x, packed, latent_dim)
    err_tight = float(jnp.max(jnp.abs(out - ref_tight)))
    assert bool(jnp.allclose(out, ref_tight, atol=1e-4, rtol=1e-4)), err_tight

    # (b) end-to-end check vs. the f32 HIGHEST reference of the module math
    #     (separate branches, no fusion/padding); loose tolerance accounts only
    #     for bf16 matmul-operand quantization.
    ref32 = _ref_f32(x, params)
    err32 = float(jnp.max(jnp.abs(out - ref32)))
    assert bool(jnp.allclose(out, ref32, atol=5e-2, rtol=5e-2)), err32

    print("KERNEL_OK")
</pallas_src>

<mosaic_0001>
module attributes {stable_mosaic.version = 11 : i64} {
  func.func @_encoder_kernel(%arg0: i32, %arg1: memref<1x16x128xf32, #tpu.memory_space<vmem>>, %arg2: memref<8x128x128xbf16, #tpu.memory_space<vmem>>, %arg3: memref<1x128xf32, #tpu.memory_space<vmem>>, %arg4: memref<2x128x128xbf16, #tpu.memory_space<vmem>>, %arg5: memref<2x1x128xf32, #tpu.memory_space<vmem>>, %arg6: memref<2x1x128xf32, #tpu.memory_space<vmem>>, %arg7: memref<2x1x128xf32, #tpu.memory_space<vmem>>, %arg8: memref<2x8x128x128xbf16, #tpu.memory_space<vmem>>, %arg9: memref<2x1x128xf32, #tpu.memory_space<vmem>>, %arg10: memref<1x128xf32, #tpu.memory_space<vmem>>, %arg11: memref<1x128xf32, #tpu.memory_space<vmem>>, %arg12: memref<8x128x128xbf16, #tpu.memory_space<vmem>>, %arg13: memref<1x128xf32, #tpu.memory_space<vmem>>, %arg14: memref<1x16x128xf32, #tpu.memory_space<vmem>>, %arg15: memref<24x128xf32, #tpu.memory_space<vmem>>) attributes {dimension_semantics = [#tpu.dimension_semantics<parallel>], iteration_bounds = array<i64: 2>, scalar_prefetch = 0 : i64, scratch_operands = 1 : i64, tpu.core_type = #tpu.core_type<tc>, window_params = [{transform_indices = @transform_0, window_bounds = array<i64: 1, 16, 128>}, {pipeline_mode = #tpu.pipeline_mode<synchronous>, transform_indices = @transform_1, window_bounds = array<i64: 8, 128, 128>}, {pipeline_mode = #tpu.pipeline_mode<synchronous>, transform_indices = @transform_2, window_bounds = array<i64: 1, 128>}, {pipeline_mode = #tpu.pipeline_mode<synchronous>, transform_indices = @transform_3, window_bounds = array<i64: 2, 128, 128>}, {pipeline_mode = #tpu.pipeline_mode<synchronous>, transform_indices = @transform_4, window_bounds = array<i64: 2, 1, 128>}, {pipeline_mode = #tpu.pipeline_mode<synchronous>, transform_indices = @transform_5, window_bounds = array<i64: 2, 1, 128>}, {pipeline_mode = #tpu.pipeline_mode<synchronous>, transform_indices = @transform_6, window_bounds = array<i64: 2, 1, 128>}, {pipeline_mode = #tpu.pipeline_mode<synchronous>, transform_indices = @transform_7, window_bounds = array<i64: 2, 8, 128, 128>}, {pipeline_mode = #tpu.pipeline_mode<synchronous>, transform_indices = @transform_8, window_bounds = array<i64: 2, 1, 128>}, {pipeline_mode = #tpu.pipeline_mode<synchronous>, transform_indices = @transform_9, window_bounds = array<i64: 1, 128>}, {pipeline_mode = #tpu.pipeline_mode<synchronous>, transform_indices = @transform_10, window_bounds = array<i64: 1, 128>}, {pipeline_mode = #tpu.pipeline_mode<synchronous>, transform_indices = @transform_11, window_bounds = array<i64: 8, 128, 128>}, {pipeline_mode = #tpu.pipeline_mode<synchronous>, transform_indices = @transform_12, window_bounds = array<i64: 1, 128>}, {transform_indices = @transform_13, window_bounds = array<i64: 1, 16, 128>}]} {
    %c0 = arith.constant 0 : index
    %c0_0 = arith.constant 0 : index
    %c0_1 = arith.constant 0 : index
    %0 = vector.load %arg1[%c0, %c0_0, %c0_1] : memref<1x16x128xf32, #tpu.memory_space<vmem>>, vector<1x16x128xf32>
    %1 = vector.shape_cast %0 : vector<1x16x128xf32> to vector<16x128xf32>
    %c0_2 = arith.constant 0 : index
    %c0_3 = arith.constant 0 : index
    %2 = vector.load %arg3[%c0_2, %c0_3] : memref<1x128xf32, #tpu.memory_space<vmem>>, vector<1x128xf32>
    %c4 = arith.constant 4 : index
    %c0_4 = arith.constant 0 : index
    %3 = vector.load %arg15[%c4, %c0_4] : memref<24x128xf32, #tpu.memory_space<vmem>>, vector<16x128xf32>
    tpu.vector_store %arg15[%c4, %c0_4], %1 {strides = array<i32>} : memref<24x128xf32, #tpu.memory_space<vmem>>, vector<16x128xf32>,
    %c5 = arith.constant 5 : index
    %c0_5 = arith.constant 0 : index
    %4 = vector.load %arg15[%c5, %c0_5] : memref<24x128xf32, #tpu.memory_space<vmem>>, vector<1x128xf32>
    %c3 = arith.constant 3 : index
    %c0_6 = arith.constant 0 : index
    %5 = vector.load %arg15[%c3, %c0_6] : memref<24x128xf32, #tpu.memory_space<vmem>>, vector<1x128xf32>
    tpu.vector_store %arg15[%c3, %c0_6], %4 {strides = array<i32>} : memref<24x128xf32, #tpu.memory_space<vmem>>, vector<1x128xf32>,
    %c18 = arith.constant 18 : index
    %c0_7 = arith.constant 0 : index
    %6 = vector.load %arg15[%c18, %c0_7] : memref<24x128xf32, #tpu.memory_space<vmem>>, vector<1x128xf32>
    %c20 = arith.constant 20 : index
    %c0_8 = arith.constant 0 : index
    %7 = vector.load %arg15[%c20, %c0_8] : memref<24x128xf32, #tpu.memory_space<vmem>>, vector<1x128xf32>
    tpu.vector_store %arg15[%c20, %c0_8], %6 {strides = array<i32>} : memref<24x128xf32, #tpu.memory_space<vmem>>, vector<1x128xf32>,
    %c6 = arith.constant 6 : index
    %c0_9 = arith.constant 0 : index
    %8 = vector.load %arg15[%c6, %c0_9] : memref<24x128xf32, #tpu.memory_space<vmem>>, vector<1x128xf32>
    %c2 = arith.constant 2 : index
    %c0_10 = arith.constant 0 : index
    %9 = vector.load %arg15[%c2, %c0_10] : memref<24x128xf32, #tpu.memory_space<vmem>>, vector<1x128xf32>
    tpu.vector_store %arg15[%c2, %c0_10], %8 {strides = array<i32>} : memref<24x128xf32, #tpu.memory_space<vmem>>, vector<1x128xf32>,
    %c17 = arith.constant 17 : index
    %c0_11 = arith.constant 0 : index
    %10 = vector.load %arg15[%c17, %c0_11] : memref<24x128xf32, #tpu.memory_space<vmem>>, vector<1x128xf32>
    %c21 = arith.constant 21 : index
    %c0_12 = arith.constant 0 : index
    %11 = vector.load %arg15[%c21, %c0_12] : memref<24x128xf32, #tpu.memory_space<vmem>>, vector<1x128xf32>
    tpu.vector_store %arg15[%c21, %c0_12], %10 {strides = array<i32>} : memref<24x128xf32, #tpu.memory_space<vmem>>, vector<1x128xf32>,
    %c7 = arith.constant 7 : index
    %c0_13 = arith.constant 0 : index
    %12 = vector.load %arg15[%c7, %c0_13] : memref<24x128xf32, #tpu.memory_space<vmem>>, vector<1x128xf32>
    %c1 = arith.constant 1 : index
    %c0_14 = arith.constant 0 : index
    %13 = vector.load %arg15[%c1, %c0_14] : memref<24x128xf32, #tpu.memory_space<vmem>>, vector<1x128xf32>
    tpu.vector_store %arg15[%c1, %c0_14], %12 {strides = array<i32>} : memref<24x128xf32, #tpu.memory_space<vmem>>, vector<1x128xf32>,
    %c16 = arith.constant 16 : index
    %c0_15 = arith.constant 0 : index
    %14 = vector.load %arg15[%c16, %c0_15] : memref<24x128xf32, #tpu.memory_space<vmem>>, vector<1x128xf32>
    %c22 = arith.constant 22 : index
    %c0_16 = arith.constant 0 : index
    %15 = vector.load %arg15[%c22, %c0_16] : memref<24x128xf32, #tpu.memory_space<vmem>>, vector<1x128xf32>
    tpu.vector_store %arg15[%c22, %c0_16], %14 {strides = array<i32>} : memref<24x128xf32, #tpu.memory_space<vmem>>, vector<1x128xf32>,
    %c8 = arith.constant 8 : index
    %c0_17 = arith.constant 0 : index
    %16 = vector.load %arg15[%c8, %c0_17] : memref<24x128xf32, #tpu.memory_space<vmem>>, vector<1x128xf32>
    %c0_18 = arith.constant 0 : index
    %c0_19 = arith.constant 0 : index
    %17 = vector.load %arg15[%c0_18, %c0_19] : memref<24x128xf32, #tpu.memory_space<vmem>>, vector<1x128xf32>
    tpu.vector_store %arg15[%c0_18, %c0_19], %16 {strides = array<i32>} : memref<24x128xf32, #tpu.memory_space<vmem>>, vector<1x128xf32>,
    %c15 = arith.constant 15 : index
    %c0_20 = arith.constant 0 : index
    %18 = vector.load %arg15[%c15, %c0_20] : memref<24x128xf32, #tpu.memory_space<vmem>>, vector<1x128xf32>
    %c23 = arith.constant 23 : index
    %c0_21 = arith.constant 0 : index
    %19 = vector.load %arg15[%c23, %c0_21] : memref<24x128xf32, #tpu.memory_space<vmem>>, vector<1x128xf32>
    tpu.vector_store %arg15[%c23, %c0_21], %18 {strides = array<i32>} : memref<24x128xf32, #tpu.memory_space<vmem>>, vector<1x128xf32>,
    %c0_22 = arith.constant 0 : index
    %c0_23 = arith.constant 0 : index
    %20 = vector.load %arg15[%c0_22, %c0_23] : memref<24x128xf32, #tpu.memory_space<vmem>>, vector<16x128xf32>
    %21 = arith.truncf %20 : vector<16x128xf32> to vector<16x128xbf16>
    %c0_24 = arith.constant 0 : index
    %c0_25 = arith.constant 0 : index
    %c0_26 = arith.constant 0 : index
    %22 = vector.load %arg2[%c0_24, %c0_25, %c0_26] : memref<8x128x128xbf16, #tpu.memory_space<vmem>>, vector<1x128x128xbf16>
    %23 = vector.shape_cast %22 : vector<1x128x128xbf16> to vector<128x128xbf16>
    %cst = arith.constant dense<0.000000e+00> : vector<16x128xf32>
    %24 = tpu.matmul %21, %23, %cst {dimension_numbers = #tpu.dot_dimension_numbers<[1], [0], [0], [1], [0, 0, 1, 1], [], []>} : vector<16x128xbf16>, vector<128x128xbf16>, vector<16x128xf32> -> vector<16x128xf32>
    %c1_27 = arith.constant 1 : index
    %c0_28 = arith.constant 0 : index
    %25 = vector.load %arg15[%c1_27, %c0_28] : memref<24x128xf32, #tpu.memory_space<vmem>>, vector<16x128xf32>
    %26 = arith.truncf %25 : vector<16x128xf32> to vector<16x128xbf16>
    %c1_29 = arith.constant 1 : index
    %c0_30 = arith.constant 0 : index
    %c0_31 = arith.constant 0 : index
    %27 = vector.load %arg2[%c1_29, %c0_30, %c0_31] : memref<8x128x128xbf16, #tpu.memory_space<vmem>>, vector<1x128x128xbf16>
    %28 = vector.shape_cast %27 : vector<1x128x128xbf16> to vector<128x128xbf16>
    %cst_32 = arith.constant dense<0.000000e+00> : vector<16x128xf32>
    %29 = tpu.matmul %26, %28, %cst_32 {dimension_numbers = #tpu.dot_dimension_numbers<[1], [0], [0], [1], [0, 0, 1, 1], [], []>} : vector<16x128xbf16>, vector<128x128xbf16>, vector<16x128xf32> -> vector<16x128xf32>
    %30 = arith.addf %24, %29 : vector<16x128xf32>
    %c2_33 = arith.constant 2 : index
    %c0_34 = arith.constant 0 : index
    %31 = vector.load %arg15[%c2_33, %c0_34] : memref<24x128xf32, #tpu.memory_space<vmem>>, vector<16x128xf32>
    %32 = arith.truncf %31 : vector<16x128xf32> to vector<16x128xbf16>
    %c2_35 = arith.constant 2 : index
    %c0_36 = arith.constant 0 : index
    %c0_37 = arith.constant 0 : index
    %33 = vector.load %arg2[%c2_35, %c0_36, %c0_37] : memref<8x128x128xbf16, #tpu.memory_space<vmem>>, vector<1x128x128xbf16>
    %34 = vector.shape_cast %33 : vector<1x128x128xbf16> to vector<128x128xbf16>
    %cst_38 = arith.constant dense<0.000000e+00> : vector<16x128xf32>
    %35 = tpu.matmul %32, %34, %cst_38 {dimension_numbers = #tpu.dot_dimension_numbers<[1], [0], [0], [1], [0, 0, 1, 1], [], []>} : vector<16x128xbf16>, vector<128x128xbf16>, vector<16x128xf32> -> vector<16x128xf32>
    %36 = arith.addf %30, %35 : vector<16x128xf32>
    %c3_39 = arith.constant 3 : index
    %c0_40 = arith.constant 0 : index
    %37 = vector.load %arg15[%c3_39, %c0_40] : memref<24x128xf32, #tpu.memory_space<vmem>>, vector<16x128xf32>
    %38 = arith.truncf %37 : vector<16x128xf32> to vector<16x128xbf16>
    %c3_41 = arith.constant 3 : index
    %c0_42 = arith.constant 0 : index
    %c0_43 = arith.constant 0 : index
    %39 = vector.load %arg2[%c3_41, %c0_42, %c0_43] : memref<8x128x128xbf16, #tpu.memory_space<vmem>>, vector<1x128x128xbf16>
    %40 = vector.shape_cast %39 : vector<1x128x128xbf16> to vector<128x128xbf16>
    %cst_44 = arith.constant dense<0.000000e+00> : vector<16x128xf32>
    %41 = tpu.matmul %38, %40, %cst_44 {dimension_numbers = #tpu.dot_dimension_numbers<[1], [0], [0], [1], [0, 0, 1, 1], [], []>} : vector<16x128xbf16>, vector<128x128xbf16>, vector<16x128xf32> -> vector<16x128xf32>
    %42 = arith.addf %36, %41 : vector<16x128xf32>
    %c4_45 = arith.constant 4 : index
    %c0_46 = arith.constant 0 : index
    %43 = vector.load %arg15[%c4_45, %c0_46] : memref<24x128xf32, #tpu.memory_space<vmem>>, vector<16x128xf32>
    %44 = arith.truncf %43 : vector<16x128xf32> to vector<16x128xbf16>
    %c4_47 = arith.constant 4 : index
    %c0_48 = arith.constant 0 : index
    %c0_49 = arith.constant 0 : index
    %45 = vector.load %arg2[%c4_47, %c0_48, %c0_49] : memref<8x128x128xbf16, #tpu.memory_space<vmem>>, vector<1x128x128xbf16>
    %46 = vector.shape_cast %45 : vector<1x128x128xbf16> to vector<128x128xbf16>
    %cst_50 = arith.constant dense<0.000000e+00> : vector<16x128xf32>
    %47 = tpu.matmul %44, %46, %cst_50 {dimension_numbers = #tpu.dot_dimension_numbers<[1], [0], [0], [1], [0, 0, 1, 1], [], []>} : vector<16x128xbf16>, vector<128x128xbf16>, vector<16x128xf32> -> vector<16x128xf32>
    %48 = arith.addf %42, %47 : vector<16x128xf32>
    %c5_51 = arith.constant 5 : index
    %c0_52 = arith.constant 0 : index
    %49 = vector.load %arg15[%c5_51, %c0_52] : memref<24x128xf32, #tpu.memory_space<vmem>>, vector<16x128xf32>
    %50 = arith.truncf %49 : vector<16x128xf32> to vector<16x128xbf16>
    %c5_53 = arith.constant 5 : index
    %c0_54 = arith.constant 0 : index
    %c0_55 = arith.constant 0 : index
    %51 = vector.load %arg2[%c5_53, %c0_54, %c0_55] : memref<8x128x128xbf16, #tpu.memory_space<vmem>>, vector<1x128x128xbf16>
    %52 = vector.shape_cast %51 : vector<1x128x128xbf16> to vector<128x128xbf16>
    %cst_56 = arith.constant dense<0.000000e+00> : vector<16x128xf32>
    %53 = tpu.matmul %50, %52, %cst_56 {dimension_numbers = #tpu.dot_dimension_numbers<[1], [0], [0], [1], [0, 0, 1, 1], [], []>} : vector<16x128xbf16>, vector<128x128xbf16>, vector<16x128xf32> -> vector<16x128xf32>
    %54 = arith.addf %48, %53 : vector<16x128xf32>
    %c6_57 = arith.constant 6 : index
    %c0_58 = arith.constant 0 : index
    %55 = vector.load %arg15[%c6_57, %c0_58] : memref<24x128xf32, #tpu.memory_space<vmem>>, vector<16x128xf32>
    %56 = arith.truncf %55 : vector<16x128xf32> to vector<16x128xbf16>
    %c6_59 = arith.constant 6 : index
    %c0_60 = arith.constant 0 : index
    %c0_61 = arith.constant 0 : index
    %57 = vector.load %arg2[%c6_59, %c0_60, %c0_61] : memref<8x128x128xbf16, #tpu.memory_space<vmem>>, vector<1x128x128xbf16>
    %58 = vector.shape_cast %57 : vector<1x128x128xbf16> to vector<128x128xbf16>
    %cst_62 = arith.constant dense<0.000000e+00> : vector<16x128xf32>
    %59 = tpu.matmul %56, %58, %cst_62 {dimension_numbers = #tpu.dot_dimension_numbers<[1], [0], [0], [1], [0, 0, 1, 1], [], []>} : vector<16x128xbf16>, vector<128x128xbf16>, vector<16x128xf32> -> vector<16x128xf32>
    %60 = arith.addf %54, %59 : vector<16x128xf32>
    %c7_63 = arith.constant 7 : index
    %c0_64 = arith.constant 0 : index
    %61 = vector.load %arg15[%c7_63, %c0_64] : memref<24x128xf32, #tpu.memory_space<vmem>>, vector<16x128xf32>
    %62 = arith.truncf %61 : vector<16x128xf32> to vector<16x128xbf16>
    %c7_65 = arith.constant 7 : index
    %c0_66 = arith.constant 0 : index
    %c0_67 = arith.constant 0 : index
    %63 = vector.load %arg2[%c7_65, %c0_66, %c0_67] : memref<8x128x128xbf16, #tpu.memory_space<vmem>>, vector<1x128x128xbf16>
    %64 = vector.shape_cast %63 : vector<1x128x128xbf16> to vector<128x128xbf16>
    %cst_68 = arith.constant dense<0.000000e+00> : vector<16x128xf32>
    %65 = tpu.matmul %62, %64, %cst_68 {dimension_numbers = #tpu.dot_dimension_numbers<[1], [0], [0], [1], [0, 0, 1, 1], [], []>} : vector<16x128xbf16>, vector<128x128xbf16>, vector<16x128xf32> -> vector<16x128xf32>
    %66 = arith.addf %60, %65 : vector<16x128xf32>
    %67 = vector.broadcast %2 : vector<1x128xf32> to vector<16x128xf32>
    %68 = arith.addf %66, %67 : vector<16x128xf32>
    %69 = arith.truncf %68 : vector<16x128xf32> to vector<16x128xbf16>
    %c0_69 = arith.constant 0 : index
    %c0_70 = arith.constant 0 : index
    %c0_71 = arith.constant 0 : index
    %70 = vector.load %arg4[%c0_69, %c0_70, %c0_71] : memref<2x128x128xbf16, #tpu.memory_space<vmem>>, vector<1x128x128xbf16>
    %71 = vector.shape_cast %70 : vector<1x128x128xbf16> to vector<128x128xbf16>
    %cst_72 = arith.constant dense<0.000000e+00> : vector<16x128xf32>
    %72 = tpu.matmul %69, %71, %cst_72 {dimension_numbers = #tpu.dot_dimension_numbers<[1], [0], [0], [1], [0, 0, 1, 1], [], []>} : vector<16x128xbf16>, vector<128x128xbf16>, vector<16x128xf32> -> vector<16x128xf32>
    %c0_73 = arith.constant 0 : index
    %c0_74 = arith.constant 0 : index
    %c0_75 = arith.constant 0 : index
    %73 = vector.load %arg5[%c0_73, %c0_74, %c0_75] : memref<2x1x128xf32, #tpu.memory_space<vmem>>, vector<1x1x128xf32>
    %74 = vector.shape_cast %73 : vector<1x1x128xf32> to vector<1x128xf32>
    %75 = vector.broadcast %74 : vector<1x128xf32> to vector<16x128xf32>
    %76 = arith.addf %72, %75 : vector<16x128xf32>
    %cst_76 = arith.constant 0.000000e+00 : f32
    %77 = vector.broadcast %cst_76 : f32 to vector<16x128xf32>
    %78 = arith.maximumf %76, %77 : vector<16x128xf32>
    %c0_77 = arith.constant 0 : index
    %c0_78 = arith.constant 0 : index
    %c0_79 = arith.constant 0 : index
    %79 = vector.load %arg6[%c0_77, %c0_78, %c0_79] : memref<2x1x128xf32, #tpu.memory_space<vmem>>, vector<1x1x128xf32>
    %80 = vector.shape_cast %79 : vector<1x1x128xf32> to vector<1x128xf32>
    %81 = vector.broadcast %80 : vector<1x128xf32> to vector<16x128xf32>
    %82 = arith.mulf %78, %81 : vector<16x128xf32>
    %c0_80 = arith.constant 0 : index
    %c0_81 = arith.constant 0 : index
    %c0_82 = arith.constant 0 : index
    %83 = vector.load %arg7[%c0_80, %c0_81, %c0_82] : memref<2x1x128xf32, #tpu.memory_space<vmem>>, vector<1x1x128xf32>
    %84 = vector.shape_cast %83 : vector<1x1x128xf32> to vector<1x128xf32>
    %85 = vector.broadcast %84 : vector<1x128xf32> to vector<16x128xf32>
    %86 = arith.addf %82, %85 : vector<16x128xf32>
    %c0_83 = arith.constant 0 : index
    %c0_84 = arith.constant 0 : index
    %c0_85 = arith.constant 0 : index
    %87 = vector.load %arg9[%c0_83, %c0_84, %c0_85] : memref<2x1x128xf32, #tpu.memory_space<vmem>>, vector<1x1x128xf32>
    %88 = vector.shape_cast %87 : vector<1x1x128xf32> to vector<1x128xf32>
    %c4_86 = arith.constant 4 : index
    %c0_87 = arith.constant 0 : index
    %89 = vector.load %arg15[%c4_86, %c0_87] : memref<24x128xf32, #tpu.memory_space<vmem>>, vector<16x128xf32>
    tpu.vector_store %arg15[%c4_86, %c0_87], %86 {strides = array<i32>} : memref<24x128xf32, #tpu.memory_space<vmem>>, vector<16x128xf32>,
    %c5_88 = arith.constant 5 : index
    %c0_89 = arith.constant 0 : index
    %90 = vector.load %arg15[%c5_88, %c0_89] : memref<24x128xf32, #tpu.memory_space<vmem>>, vector<1x128xf32>
    %c3_90 = arith.constant 3 : index
    %c0_91 = arith.constant 0 : index
    %91 = vector.load %arg15[%c3_90, %c0_91] : memref<24x128xf32, #tpu.memory_space<vmem>>, vector<1x128xf32>
    tpu.vector_store %arg15[%c3_90, %c0_91], %90 {strides = array<i32>} : memref<24x128xf32, #tpu.memory_space<vmem>>, vector<1x128xf32>,
    %c18_92 = arith.constant 18 : index
    %c0_93 = arith.constant 0 : index
    %92 = vector.load %arg15[%c18_92, %c0_93] : memref<24x128xf32, #tpu.memory_space<vmem>>, vector<1x128xf32>
    %c20_94 = arith.constant 20 : index
    %c0_95 = arith.constant 0 : index
    %93 = vector.load %arg15[%c20_94, %c0_95] : memref<24x128xf32, #tpu.memory_space<vmem>>, vector<1x128xf32>
    tpu.vector_store %arg15[%c20_94, %c0_95], %92 {strides = array<i32>} : memref<24x128xf32, #tpu.memory_space<vmem>>, vector<1x128xf32>,
    %c6_96 = arith.constant 6 : index
    %c0_97 = arith.constant 0 : index
    %94 = vector.load %arg15[%c6_96, %c0_97] : memref<24x128xf32, #tpu.memory_space<vmem>>, vector<1x128xf32>
    %c2_98 = arith.constant 2 : index
    %c0_99 = arith.constant 0 : index
    %95 = vector.load %arg15[%c2_98, %c0_99] : memref<24x128xf32, #tpu.memory_space<vmem>>, vector<1x128xf32>
    tpu.vector_store %arg15[%c2_98, %c0_99], %94 {strides = array<i32>} : memref<24x128xf32, #tpu.memory_space<vmem>>, vector<1x128xf32>,
    %c17_100 = arith.constant 17 : index
    %c0_101 = arith.constant 0 : index
    %96 = vector.load %arg15[%c17_100, %c0_101] : memref<24x128xf32, #tpu.memory_space<vmem>>, vector<1x128xf32>
    %c21_102 = arith.constant 21 : index
    %c0_103 = arith.constant 0 : index
    %97 = vector.load %arg15[%c21_102, %c0_103] : memref<24x128xf32, #tpu.memory_space<vmem>>, vector<1x128xf32>
    tpu.vector_store %arg15[%c21_102, %c0_103], %96 {strides = array<i32>} : memref<24x128xf32, #tpu.memory_space<vmem>>, vector<1x128xf32>,
    %c7_104 = arith.constant 7 : index
    %c0_105 = arith.constant 0 : index
    %98 = vector.load %arg15[%c7_104, %c0_105] : memref<24x128xf32, #tpu.memory_space<vmem>>, vector<1x128xf32>
    %c1_106 = arith.constant 1 : index
    %c0_107 = arith.constant 0 : index
    %99 = vector.load %arg15[%c1_106, %c0_107] : memref<24x128xf32, #tpu.memory_space<vmem>>, vector<1x128xf32>
    tpu.vector_store %arg15[%c1_106, %c0_107], %98 {strides = array<i32>} : memref<24x128xf32, #tpu.memory_space<vmem>>, vector<1x128xf32>,
    %c16_108 = arith.constant 16 : index
    %c0_109 = arith.constant 0 : index
    %100 = vector.load %arg15[%c16_108, %c0_109] : memref<24x128xf32, #tpu.memory_space<vmem>>, vector<1x128xf32>
    %c22_110 = arith.constant 22 : index
    %c0_111 = arith.constant 0 : index
    %101 = vector.load %arg15[%c22_110, %c0_111] : memref<24x128xf32, #tpu.memory_space<vmem>>, vector<1x128xf32>
    tpu.vector_store %arg15[%c22_110, %c0_111], %100 {strides = array<i32>} : memref<24x128xf32, #tpu.memory_space<vmem>>, vector<1x128xf32>,
    %c8_112 = arith.constant 8 : index
    %c0_113 = arith.constant 0 : index
    %102 = vector.load %arg15[%c8_112, %c0_113] : memref<24x128xf32, #tpu.memory_space<vmem>>, vector<1x128xf32>
    %c0_114 = arith.constant 0 : index
    %c0_115 = arith.constant 0 : index
    %103 = vector.load %arg15[%c0_114, %c0_115] : memref<24x128xf32, #tpu.memory_space<vmem>>, vector<1x128xf32>
    tpu.vector_store %arg15[%c0_114, %c0_115], %102 {strides = array<i32>} : memref<24x128xf32, #tpu.memory_space<vmem>>, vector<1x128xf32>,
    %c15_116 = arith.constant 15 : index
    %c0_117 = arith.constant 0 : index
    %104 = vector.load %arg15[%c15_116, %c0_117] : memref<24x128xf32, #tpu.memory_space<vmem>>, vector<1x128xf32>
    %c23_118 = arith.constant 23 : index
    %c0_119 = arith.constant 0 : index
    %105 = vector.load %arg15[%c23_118, %c0_119] : memref<24x128xf32, #tpu.memory_space<vmem>>, vector<1x128xf32>
    tpu.vector_store %arg15[%c23_118, %c0_119], %104 {strides = array<i32>} : memref<24x128xf32, #tpu.memory_space<vmem>>, vector<1x128xf32>,
    %c0_120 = arith.constant 0 : index
    %c0_121 = arith.constant 0 : index
    %106 = vector.load %arg15[%c0_120, %c0_121] : memref<24x128xf32, #tpu.memory_space<vmem>>, vector<16x128xf32>
    %107 = arith.truncf %106 : vector<16x128xf32> to vector<16x128xbf16>
    %c0_122 = arith.constant 0 : index
    %c0_123 = arith.constant 0 : index
    %c0_124 = arith.constant 0 : index
    %c0_125 = arith.constant 0 : index
    %108 = vector.load %arg8[%c0_122, %c0_123, %c0_124, %c0_125] : memref<2x8x128x128xbf16, #tpu.memory_space<vmem>>, vector<1x1x128x128xbf16>
    %109 = vector.shape_cast %108 : vector<1x1x128x128xbf16> to vector<128x128xbf16>
    %cst_126 = arith.constant dense<0.000000e+00> : vector<16x128xf32>
    %110 = tpu.matmul %107, %109, %cst_126 {dimension_numbers = #tpu.dot_dimension_numbers<[1], [0], [0], [1], [0, 0, 1, 1], [], []>} : vector<16x128xbf16>, vector<128x128xbf16>, vector<16x128xf32> -> vector<16x128xf32>
    %c1_127 = arith.constant 1 : index
    %c0_128 = arith.constant 0 : index
    %111 = vector.load %arg15[%c1_127, %c0_128] : memref<24x128xf32, #tpu.memory_space<vmem>>, vector<16x128xf32>
    %112 = arith.truncf %111 : vector<16x128xf32> to vector<16x128xbf16>
    %c0_129 = arith.constant 0 : index
    %c1_130 = arith.constant 1 : index
    %c0_131 = arith.constant 0 : index
    %c0_132 = arith.constant 0 : index
    %113 = vector.load %arg8[%c0_129, %c1_130, %c0_131, %c0_132] : memref<2x8x128x128xbf16, #tpu.memory_space<vmem>>, vector<1x1x128x128xbf16>
    %114 = vector.shape_cast %113 : vector<1x1x128x128xbf16> to vector<128x128xbf16>
    %cst_133 = arith.constant dense<0.000000e+00> : vector<16x128xf32>
    %115 = tpu.matmul %112, %114, %cst_133 {dimension_numbers = #tpu.dot_dimension_numbers<[1], [0], [0], [1], [0, 0, 1, 1], [], []>} : vector<16x128xbf16>, vector<128x128xbf16>, vector<16x128xf32> -> vector<16x128xf32>
    %116 = arith.addf %110, %115 : vector<16x128xf32>
    %c2_134 = arith.constant 2 : index
    %c0_135 = arith.constant 0 : index
    %117 = vector.load %arg15[%c2_134, %c0_135] : memref<24x128xf32, #tpu.memory_space<vmem>>, vector<16x128xf32>
    %118 = arith.truncf %117 : vector<16x128xf32> to vector<16x128xbf16>
    %c0_136 = arith.constant 0 : index
    %c2_137 = arith.constant 2 : index
    %c0_138 = arith.constant 0 : index
    %c0_139 = arith.constant 0 : index
    %119 = vector.load %arg8[%c0_136, %c2_137, %c0_138, %c0_139] : memref<2x8x128x128xbf16, #tpu.memory_space<vmem>>, vector<1x1x128x128xbf16>
    %120 = vector.shape_cast %119 : vector<1x1x128x128xbf16> to vector<128x128xbf16>
    %cst_140 = arith.constant dense<0.000000e+00> : vector<16x128xf32>
    %121 = tpu.matmul %118, %120, %cst_140 {dimension_numbers = #tpu.dot_dimension_numbers<[1], [0], [0], [1], [0, 0, 1, 1], [], []>} : vector<16x128xbf16>, vector<128x128xbf16>, vector<16x128xf32> -> vector<16x128xf32>
    %122 = arith.addf %116, %121 : vector<16x128xf32>
    %c3_141 = arith.constant 3 : index
    %c0_142 = arith.constant 0 : index
    %123 = vector.load %arg15[%c3_141, %c0_142] : memref<24x128xf32, #tpu.memory_space<vmem>>, vector<16x128xf32>
    %124 = arith.truncf %123 : vector<16x128xf32> to vector<16x128xbf16>
    %c0_143 = arith.constant 0 : index
    %c3_144 = arith.constant 3 : index
    %c0_145 = arith.constant 0 : index
    %c0_146 = arith.constant 0 : index
    %125 = vector.load %arg8[%c0_143, %c3_144, %c0_145, %c0_146] : memref<2x8x128x128xbf16, #tpu.memory_space<vmem>>, vector<1x1x128x128xbf16>
    %126 = vector.shape_cast %125 : vector<1x1x128x128xbf16> to vector<128x128xbf16>
    %cst_147 = arith.constant dense<0.000000e+00> : vector<16x128xf32>
    %127 = tpu.matmul %124, %126, %cst_147 {dimension_numbers = #tpu.dot_dimension_numbers<[1], [0], [0], [1], [0, 0, 1, 1], [], []>} : vector<16x128xbf16>, vector<128x128xbf16>, vector<16x128xf32> -> vector<16x128xf32>
    %128 = arith.addf %122, %127 : vector<16x128xf32>
    %c4_148 = arith.constant 4 : index
    %c0_149 = arith.constant 0 : index
    %129 = vector.load %arg15[%c4_148, %c0_149] : memref<24x128xf32, #tpu.memory_space<vmem>>, vector<16x128xf32>
    %130 = arith.truncf %129 : vector<16x128xf32> to vector<16x128xbf16>
    %c0_150 = arith.constant 0 : index
    %c4_151 = arith.constant 4 : index
    %c0_152 = arith.constant 0 : index
    %c0_153 = arith.constant 0 : index
    %131 = vector.load %arg8[%c0_150, %c4_151, %c0_152, %c0_153] : memref<2x8x128x128xbf16, #tpu.memory_space<vmem>>, vector<1x1x128x128xbf16>
    %132 = vector.shape_cast %131 : vector<1x1x128x128xbf16> to vector<128x128xbf16>
    %cst_154 = arith.constant dense<0.000000e+00> : vector<16x128xf32>
    %133 = tpu.matmul %130, %132, %cst_154 {dimension_numbers = #tpu.dot_dimension_numbers<[1], [0], [0], [1], [0, 0, 1, 1], [], []>} : vector<16x128xbf16>, vector<128x128xbf16>, vector<16x128xf32> -> vector<16x128xf32>
    %134 = arith.addf %128, %133 : vector<16x128xf32>
    %c5_155 = arith.constant 5 : index
    %c0_156 = arith.constant 0 : index
    %135 = vector.load %arg15[%c5_155, %c0_156] : memref<24x128xf32, #tpu.memory_space<vmem>>, vector<16x128xf32>
    %136 = arith.truncf %135 : vector<16x128xf32> to vector<16x128xbf16>
    %c0_157 = arith.constant 0 : index
    %c5_158 = arith.constant 5 : index
    %c0_159 = arith.constant 0 : index
    %c0_160 = arith.constant 0 : index
    %137 = vector.load %arg8[%c0_157, %c5_158, %c0_159, %c0_160] : memref<2x8x128x128xbf16, #tpu.memory_space<vmem>>, vector<1x1x128x128xbf16>
    %138 = vector.shape_cast %137 : vector<1x1x128x128xbf16> to vector<128x128xbf16>
    %cst_161 = arith.constant dense<0.000000e+00> : vector<16x128xf32>
    %139 = tpu.matmul %136, %138, %cst_161 {dimension_numbers = #tpu.dot_dimension_numbers<[1], [0], [0], [1], [0, 0, 1, 1], [], []>} : vector<16x128xbf16>, vector<128x128xbf16>, vector<16x128xf32> -> vector<16x128xf32>
    %140 = arith.addf %134, %139 : vector<16x128xf32>
    %c6_162 = arith.constant 6 : index
    %c0_163 = arith.constant 0 : index
    %141 = vector.load %arg15[%c6_162, %c0_163] : memref<24x128xf32, #tpu.memory_space<vmem>>, vector<16x128xf32>
    %142 = arith.truncf %141 : vector<16x128xf32> to vector<16x128xbf16>
    %c0_164 = arith.constant 0 : index
    %c6_165 = arith.constant 6 : index
    %c0_166 = arith.constant 0 : index
    %c0_167 = arith.constant 0 : index
    %143 = vector.load %arg8[%c0_164, %c6_165, %c0_166, %c0_167] : memref<2x8x128x128xbf16, #tpu.memory_space<vmem>>, vector<1x1x128x128xbf16>
    %144 = vector.shape_cast %143 : vector<1x1x128x128xbf16> to vector<128x128xbf16>
    %cst_168 = arith.constant dense<0.000000e+00> : vector<16x128xf32>
    %145 = tpu.matmul %142, %144, %cst_168 {dimension_numbers = #tpu.dot_dimension_numbers<[1], [0], [0], [1], [0, 0, 1, 1], [], []>} : vector<16x128xbf16>, vector<128x128xbf16>, vector<16x128xf32> -> vector<16x128xf32>
    %146 = arith.addf %140, %145 : vector<16x128xf32>
    %c7_169 = arith.constant 7 : index
    %c0_170 = arith.constant 0 : index
    %147 = vector.load %arg15[%c7_169, %c0_170] : memref<24x128xf32, #tpu.memory_space<vmem>>, vector<16x128xf32>
    %148 = arith.truncf %147 : vector<16x128xf32> to vector<16x128xbf16>
    %c0_171 = arith.constant 0 : index
    %c7_172 = arith.constant 7 : index
    %c0_173 = arith.constant 0 : index
    %c0_174 = arith.constant 0 : index
    %149 = vector.load %arg8[%c0_171, %c7_172, %c0_173, %c0_174] : memref<2x8x128x128xbf16, #tpu.memory_space<vmem>>, vector<1x1x128x128xbf16>
    %150 = vector.shape_cast %149 : vector<1x1x128x128xbf16> to vector<128x128xbf16>
    %cst_175 = arith.constant dense<0.000000e+00> : vector<16x128xf32>
    %151 = tpu.matmul %148, %150, %cst_175 {dimension_numbers = #tpu.dot_dimension_numbers<[1], [0], [0], [1], [0, 0, 1, 1], [], []>} : vector<16x128xbf16>, vector<128x128xbf16>, vector<16x128xf32> -> vector<16x128xf32>
    %152 = arith.addf %146, %151 : vector<16x128xf32>
    %153 = vector.broadcast %88 : vector<1x128xf32> to vector<16x128xf32>
    %154 = arith.addf %152, %153 : vector<16x128xf32>
    %155 = arith.addf %68, %154 : vector<16x128xf32>
    %156 = arith.truncf %155 : vector<16x128xf32> to vector<16x128xbf16>
    %c1_176 = arith.constant 1 : index
    %c0_177 = arith.constant 0 : index
    %c0_178 = arith.constant 0 : index
    %157 = vector.load %arg4[%c1_176, %c0_177, %c0_178] : memref<2x128x128xbf16, #tpu.memory_space<vmem>>, vector<1x128x128xbf16>
    %158 = vector.shape_cast %157 : vector<1x128x128xbf16> to vector<128x128xbf16>
    %cst_179 = arith.constant dense<0.000000e+00> : vector<16x128xf32>
    %159 = tpu.matmul %156, %158, %cst_179 {dimension_numbers = #tpu.dot_dimension_numbers<[1], [0], [0], [1], [0, 0, 1, 1], [], []>} : vector<16x128xbf16>, vector<128x128xbf16>, vector<16x128xf32> -> vector<16x128xf32>
    %c1_180 = arith.constant 1 : index
    %c0_181 = arith.constant 0 : index
    %c0_182 = arith.constant 0 : index
    %160 = vector.load %arg5[%c1_180, %c0_181, %c0_182] : memref<2x1x128xf32, #tpu.memory_space<vmem>>, vector<1x1x128xf32>
    %161 = vector.shape_cast %160 : vector<1x1x128xf32> to vector<1x128xf32>
    %162 = vector.broadcast %161 : vector<1x128xf32> to vector<16x128xf32>
    %163 = arith.addf %159, %162 : vector<16x128xf32>
    %cst_183 = arith.constant 0.000000e+00 : f32
    %164 = vector.broadcast %cst_183 : f32 to vector<16x128xf32>
    %165 = arith.maximumf %163, %164 : vector<16x128xf32>
    %c1_184 = arith.constant 1 : index
    %c0_185 = arith.constant 0 : index
    %c0_186 = arith.constant 0 : index
    %166 = vector.load %arg6[%c1_184, %c0_185, %c0_186] : memref<2x1x128xf32, #tpu.memory_space<vmem>>, vector<1x1x128xf32>
    %167 = vector.shape_cast %166 : vector<1x1x128xf32> to vector<1x128xf32>
    %168 = vector.broadcast %167 : vector<1x128xf32> to vector<16x128xf32>
    %169 = arith.mulf %165, %168 : vector<16x128xf32>
    %c1_187 = arith.constant 1 : index
    %c0_188 = arith.constant 0 : index
    %c0_189 = arith.constant 0 : index
    %170 = vector.load %arg7[%c1_187, %c0_188, %c0_189] : memref<2x1x128xf32, #tpu.memory_space<vmem>>, vector<1x1x128xf32>
    %171 = vector.shape_cast %170 : vector<1x1x128xf32> to vector<1x128xf32>
    %172 = vector.broadcast %171 : vector<1x128xf32> to vector<16x128xf32>
    %173 = arith.addf %169, %172 : vector<16x128xf32>
    %c1_190 = arith.constant 1 : index
    %c0_191 = arith.constant 0 : index
    %c0_192 = arith.constant 0 : index
    %174 = vector.load %arg9[%c1_190, %c0_191, %c0_192] : memref<2x1x128xf32, #tpu.memory_space<vmem>>, vector<1x1x128xf32>
    %175 = vector.shape_cast %174 : vector<1x1x128xf32> to vector<1x128xf32>
    %c4_193 = arith.constant 4 : index
    %c0_194 = arith.constant 0 : index
    %176 = vector.load %arg15[%c4_193, %c0_194] : memref<24x128xf32, #tpu.memory_space<vmem>>, vector<16x128xf32>
    tpu.vector_store %arg15[%c4_193, %c0_194], %173 {strides = array<i32>} : memref<24x128xf32, #tpu.memory_space<vmem>>, vector<16x128xf32>,
    %c5_195 = arith.constant 5 : index
    %c0_196 = arith.constant 0 : index
    %177 = vector.load %arg15[%c5_195, %c0_196] : memref<24x128xf32, #tpu.memory_space<vmem>>, vector<1x128xf32>
    %c3_197 = arith.constant 3 : index
    %c0_198 = arith.constant 0 : index
    %178 = vector.load %arg15[%c3_197, %c0_198] : memref<24x128xf32, #tpu.memory_space<vmem>>, vector<1x128xf32>
    tpu.vector_store %arg15[%c3_197, %c0_198], %177 {strides = array<i32>} : memref<24x128xf32, #tpu.memory_space<vmem>>, vector<1x128xf32>,
    %c18_199 = arith.constant 18 : index
    %c0_200 = arith.constant 0 : index
    %179 = vector.load %arg15[%c18_199, %c0_200] : memref<24x128xf32, #tpu.memory_space<vmem>>, vector<1x128xf32>
    %c20_201 = arith.constant 20 : index
    %c0_202 = arith.constant 0 : index
    %180 = vector.load %arg15[%c20_201, %c0_202] : memref<24x128xf32, #tpu.memory_space<vmem>>, vector<1x128xf32>
    tpu.vector_store %arg15[%c20_201, %c0_202], %179 {strides = array<i32>} : memref<24x128xf32, #tpu.memory_space<vmem>>, vector<1x128xf32>,
    %c6_203 = arith.constant 6 : index
    %c0_204 = arith.constant 0 : index
    %181 = vector.load %arg15[%c6_203, %c0_204] : memref<24x128xf32, #tpu.memory_space<vmem>>, vector<1x128xf32>
    %c2_205 = arith.constant 2 : index
    %c0_206 = arith.constant 0 : index
    %182 = vector.load %arg15[%c2_205, %c0_206] : memref<24x128xf32, #tpu.memory_space<vmem>>, vector<1x128xf32>
    tpu.vector_store %arg15[%c2_205, %c0_206], %181 {strides = array<i32>} : memref<24x128xf32, #tpu.memory_space<vmem>>, vector<1x128xf32>,
    %c17_207 = arith.constant 17 : index
    %c0_208 = arith.constant 0 : index
    %183 = vector.load %arg15[%c17_207, %c0_208] : memref<24x128xf32, #tpu.memory_space<vmem>>, vector<1x128xf32>
    %c21_209 = arith.constant 21 : index
    %c0_210 = arith.constant 0 : index
    %184 = vector.load %arg15[%c21_209, %c0_210] : memref<24x128xf32, #tpu.memory_space<vmem>>, vector<1x128xf32>
    tpu.vector_store %arg15[%c21_209, %c0_210], %183 {strides = array<i32>} : memref<24x128xf32, #tpu.memory_space<vmem>>, vector<1x128xf32>,
    %c7_211 = arith.constant 7 : index
    %c0_212 = arith.constant 0 : index
    %185 = vector.load %arg15[%c7_211, %c0_212] : memref<24x128xf32, #tpu.memory_space<vmem>>, vector<1x128xf32>
    %c1_213 = arith.constant 1 : index
    %c0_214 = arith.constant 0 : index
    %186 = vector.load %arg15[%c1_213, %c0_214] : memref<24x128xf32, #tpu.memory_space<vmem>>, vector<1x128xf32>
    tpu.vector_store %arg15[%c1_213, %c0_214], %185 {strides = array<i32>} : memref<24x128xf32, #tpu.memory_space<vmem>>, vector<1x128xf32>,
    %c16_215 = arith.constant 16 : index
    %c0_216 = arith.constant 0 : index
    %187 = vector.load %arg15[%c16_215, %c0_216] : memref<24x128xf32, #tpu.memory_space<vmem>>, vector<1x128xf32>
    %c22_217 = arith.constant 22 : index
    %c0_218 = arith.constant 0 : index
    %188 = vector.load %arg15[%c22_217, %c0_218] : memref<24x128xf32, #tpu.memory_space<vmem>>, vector<1x128xf32>
    tpu.vector_store %arg15[%c22_217, %c0_218], %187 {strides = array<i32>} : memref<24x128xf32, #tpu.memory_space<vmem>>, vector<1x128xf32>,
    %c8_219 = arith.constant 8 : index
    %c0_220 = arith.constant 0 : index
    %189 = vector.load %arg15[%c8_219, %c0_220] : memref<24x128xf32, #tpu.memory_space<vmem>>, vector<1x128xf32>
    %c0_221 = arith.constant 0 : index
    %c0_222 = arith.constant 0 : index
    %190 = vector.load %arg15[%c0_221, %c0_222] : memref<24x128xf32, #tpu.memory_space<vmem>>, vector<1x128xf32>
    tpu.vector_store %arg15[%c0_221, %c0_222], %189 {strides = array<i32>} : memref<24x128xf32, #tpu.memory_space<vmem>>, vector<1x128xf32>,
    %c15_223 = arith.constant 15 : index
    %c0_224 = arith.constant 0 : index
    %191 = vector.load %arg15[%c15_223, %c0_224] : memref<24x128xf32, #tpu.memory_space<vmem>>, vector<1x128xf32>
    %c23_225 = arith.constant 23 : index
    %c0_226 = arith.constant 0 : index
    %192 = vector.load %arg15[%c23_225, %c0_226] : memref<24x128xf32, #tpu.memory_space<vmem>>, vector<1x128xf32>
    tpu.vector_store %arg15[%c23_225, %c0_226], %191 {strides = array<i32>} : memref<24x128xf32, #tpu.memory_space<vmem>>, vector<1x128xf32>,
    %c0_227 = arith.constant 0 : index
    %c0_228 = arith.constant 0 : index
    %193 = vector.load %arg15[%c0_227, %c0_228] : memref<24x128xf32, #tpu.memory_space<vmem>>, vector<16x128xf32>
    %194 = arith.truncf %193 : vector<16x128xf32> to vector<16x128xbf16>
    %c1_229 = arith.constant 1 : index
    %c0_230 = arith.constant 0 : index
    %c0_231 = arith.constant 0 : index
    %c0_232 = arith.constant 0 : index
    %195 = vector.load %arg8[%c1_229, %c0_230, %c0_231, %c0_232] : memref<2x8x128x128xbf16, #tpu.memory_space<vmem>>, vector<1x1x128x128xbf16>
    %196 = vector.shape_cast %195 : vector<1x1x128x128xbf16> to vector<128x128xbf16>
    %cst_233 = arith.constant dense<0.000000e+00> : vector<16x128xf32>
    %197 = tpu.matmul %194, %196, %cst_233 {dimension_numbers = #tpu.dot_dimension_numbers<[1], [0], [0], [1], [0, 0, 1, 1], [], []>} : vector<16x128xbf16>, vector<128x128xbf16>, vector<16x128xf32> -> vector<16x128xf32>
    %c1_234 = arith.constant 1 : index
    %c0_235 = arith.constant 0 : index
    %198 = vector.load %arg15[%c1_234, %c0_235] : memref<24x128xf32, #tpu.memory_space<vmem>>, vector<16x128xf32>
    %199 = arith.truncf %198 : vector<16x128xf32> to vector<16x128xbf16>
    %c1_236 = arith.constant 1 : index
    %c1_237 = arith.constant 1 : index
    %c0_238 = arith.constant 0 : index
    %c0_239 = arith.constant 0 : index
    %200 = vector.load %arg8[%c1_236, %c1_237, %c0_238, %c0_239] : memref<2x8x128x128xbf16, #tpu.memory_space<vmem>>, vector<1x1x128x128xbf16>
    %201 = vector.shape_cast %200 : vector<1x1x128x128xbf16> to vector<128x128xbf16>
    %cst_240 = arith.constant dense<0.000000e+00> : vector<16x128xf32>
    %202 = tpu.matmul %199, %201, %cst_240 {dimension_numbers = #tpu.dot_dimension_numbers<[1], [0], [0], [1], [0, 0, 1, 1], [], []>} : vector<16x128xbf16>, vector<128x128xbf16>, vector<16x128xf32> -> vector<16x128xf32>
    %203 = arith.addf %197, %202 : vector<16x128xf32>
    %c2_241 = arith.constant 2 : index
    %c0_242 = arith.constant 0 : index
    %204 = vector.load %arg15[%c2_241, %c0_242] : memref<24x128xf32, #tpu.memory_space<vmem>>, vector<16x128xf32>
    %205 = arith.truncf %204 : vector<16x128xf32> to vector<16x128xbf16>
    %c1_243 = arith.constant 1 : index
    %c2_244 = arith.constant 2 : index
    %c0_245 = arith.constant 0 : index
    %c0_246 = arith.constant 0 : index
    %206 = vector.load %arg8[%c1_243, %c2_244, %c0_245, %c0_246] : memref<2x8x128x128xbf16, #tpu.memory_space<vmem>>, vector<1x1x128x128xbf16>
    %207 = vector.shape_cast %206 : vector<1x1x128x128xbf16> to vector<128x128xbf16>
    %cst_247 = arith.constant dense<0.000000e+00> : vector<16x128xf32>
    %208 = tpu.matmul %205, %207, %cst_247 {dimension_numbers = #tpu.dot_dimension_numbers<[1], [0], [0], [1], [0, 0, 1, 1], [], []>} : vector<16x128xbf16>, vector<128x128xbf16>, vector<16x128xf32> -> vector<16x128xf32>
    %209 = arith.addf %203, %208 : vector<16x128xf32>
    %c3_248 = arith.constant 3 : index
    %c0_249 = arith.constant 0 : index
    %210 = vector.load %arg15[%c3_248, %c0_249] : memref<24x128xf32, #tpu.memory_space<vmem>>, vector<16x128xf32>
    %211 = arith.truncf %210 : vector<16x128xf32> to vector<16x128xbf16>
    %c1_250 = arith.constant 1 : index
    %c3_251 = arith.constant 3 : index
    %c0_252 = arith.constant 0 : index
    %c0_253 = arith.constant 0 : index
    %212 = vector.load %arg8[%c1_250, %c3_251, %c0_252, %c0_253] : memref<2x8x128x128xbf16, #tpu.memory_space<vmem>>, vector<1x1x128x128xbf16>
    %213 = vector.shape_cast %212 : vector<1x1x128x128xbf16> to vector<128x128xbf16>
    %cst_254 = arith.constant dense<0.000000e+00> : vector<16x128xf32>
    %214 = tpu.matmul %211, %213, %cst_254 {dimension_numbers = #tpu.dot_dimension_numbers<[1], [0], [0], [1], [0, 0, 1, 1], [], []>} : vector<16x128xbf16>, vector<128x128xbf16>, vector<16x128xf32> -> vector<16x128xf32>
    %215 = arith.addf %209, %214 : vector<16x128xf32>
    %c4_255 = arith.constant 4 : index
    %c0_256 = arith.constant 0 : index
    %216 = vector.load %arg15[%c4_255, %c0_256] : memref<24x128xf32, #tpu.memory_space<vmem>>, vector<16x128xf32>
    %217 = arith.truncf %216 : vector<16x128xf32> to vector<16x128xbf16>
    %c1_257 = arith.constant 1 : index
    %c4_258 = arith.constant 4 : index
    %c0_259 = arith.constant 0 : index
    %c0_260 = arith.constant 0 : index
    %218 = vector.load %arg8[%c1_257, %c4_258, %c0_259, %c0_260] : memref<2x8x128x128xbf16, #tpu.memory_space<vmem>>, vector<1x1x128x128xbf16>
    %219 = vector.shape_cast %218 : vector<1x1x128x128xbf16> to vector<128x128xbf16>
    %cst_261 = arith.constant dense<0.000000e+00> : vector<16x128xf32>
    %220 = tpu.matmul %217, %219, %cst_261 {dimension_numbers = #tpu.dot_dimension_numbers<[1], [0], [0], [1], [0, 0, 1, 1], [], []>} : vector<16x128xbf16>, vector<128x128xbf16>, vector<16x128xf32> -> vector<16x128xf32>
    %221 = arith.addf %215, %220 : vector<16x128xf32>
    %c5_262 = arith.constant 5 : index
    %c0_263 = arith.constant 0 : index
    %222 = vector.load %arg15[%c5_262, %c0_263] : memref<24x128xf32, #tpu.memory_space<vmem>>, vector<16x128xf32>
    %223 = arith.truncf %222 : vector<16x128xf32> to vector<16x128xbf16>
    %c1_264 = arith.constant 1 : index
    %c5_265 = arith.constant 5 : index
    %c0_266 = arith.constant 0 : index
    %c0_267 = arith.constant 0 : index
    %224 = vector.load %arg8[%c1_264, %c5_265, %c0_266, %c0_267] : memref<2x8x128x128xbf16, #tpu.memory_space<vmem>>, vector<1x1x128x128xbf16>
    %225 = vector.shape_cast %224 : vector<1x1x128x128xbf16> to vector<128x128xbf16>
    %cst_268 = arith.constant dense<0.000000e+00> : vector<16x128xf32>
    %226 = tpu.matmul %223, %225, %cst_268 {dimension_numbers = #tpu.dot_dimension_numbers<[1], [0], [0], [1], [0, 0, 1, 1], [], []>} : vector<16x128xbf16>, vector<128x128xbf16>, vector<16x128xf32> -> vector<16x128xf32>
    %227 = arith.addf %221, %226 : vector<16x128xf32>
    %c6_269 = arith.constant 6 : index
    %c0_270 = arith.constant 0 : index
    %228 = vector.load %arg15[%c6_269, %c0_270] : memref<24x128xf32, #tpu.memory_space<vmem>>, vector<16x128xf32>
    %229 = arith.truncf %228 : vector<16x128xf32> to vector<16x128xbf16>
    %c1_271 = arith.constant 1 : index
    %c6_272 = arith.constant 6 : index
    %c0_273 = arith.constant 0 : index
    %c0_274 = arith.constant 0 : index
    %230 = vector.load %arg8[%c1_271, %c6_272, %c0_273, %c0_274] : memref<2x8x128x128xbf16, #tpu.memory_space<vmem>>, vector<1x1x128x128xbf16>
    %231 = vector.shape_cast %230 : vector<1x1x128x128xbf16> to vector<128x128xbf16>
    %cst_275 = arith.constant dense<0.000000e+00> : vector<16x128xf32>
    %232 = tpu.matmul %229, %231, %cst_275 {dimension_numbers = #tpu.dot_dimension_numbers<[1], [0], [0], [1], [0, 0, 1, 1], [], []>} : vector<16x128xbf16>, vector<128x128xbf16>, vector<16x128xf32> -> vector<16x128xf32>
    %233 = arith.addf %227, %232 : vector<16x128xf32>
    %c7_276 = arith.constant 7 : index
    %c0_277 = arith.constant 0 : index
    %234 = vector.load %arg15[%c7_276, %c0_277] : memref<24x128xf32, #tpu.memory_space<vmem>>, vector<16x128xf32>
    %235 = arith.truncf %234 : vector<16x128xf32> to vector<16x128xbf16>
    %c1_278 = arith.constant 1 : index
    %c7_279 = arith.constant 7 : index
    %c0_280 = arith.constant 0 : index
    %c0_281 = arith.constant 0 : index
    %236 = vector.load %arg8[%c1_278, %c7_279, %c0_280, %c0_281] : memref<2x8x128x128xbf16, #tpu.memory_space<vmem>>, vector<1x1x128x128xbf16>
    %237 = vector.shape_cast %236 : vector<1x1x128x128xbf16> to vector<128x128xbf16>
    %cst_282 = arith.constant dense<0.000000e+00> : vector<16x128xf32>
    %238 = tpu.matmul %235, %237, %cst_282 {dimension_numbers = #tpu.dot_dimension_numbers<[1], [0], [0], [1], [0, 0, 1, 1], [], []>} : vector<16x128xbf16>, vector<128x128xbf16>, vector<16x128xf32> -> vector<16x128xf32>
    %239 = arith.addf %233, %238 : vector<16x128xf32>
    %240 = vector.broadcast %175 : vector<1x128xf32> to vector<16x128xf32>
    %241 = arith.addf %239, %240 : vector<16x128xf32>
    %242 = arith.addf %155, %241 : vector<16x128xf32>
    %cst_283 = arith.constant 0.000000e+00 : f32
    %243 = vector.broadcast %cst_283 : f32 to vector<16x128xf32>
    %244 = arith.maximumf %242, %243 : vector<16x128xf32>
    %c0_284 = arith.constant 0 : index
    %c0_285 = arith.constant 0 : index
    %245 = vector.load %arg10[%c0_284, %c0_285] : memref<1x128xf32, #tpu.memory_space<vmem>>, vector<1x128xf32>
    %246 = vector.broadcast %245 : vector<1x128xf32> to vector<16x128xf32>
    %247 = arith.mulf %244, %246 : vector<16x128xf32>
    %c0_286 = arith.constant 0 : index
    %c0_287 = arith.constant 0 : index
    %248 = vector.load %arg11[%c0_286, %c0_287] : memref<1x128xf32, #tpu.memory_space<vmem>>, vector<1x128xf32>
    %249 = vector.broadcast %248 : vector<1x128xf32> to vector<16x128xf32>
    %250 = arith.addf %247, %249 : vector<16x128xf32>
    %c0_288 = arith.constant 0 : index
    %c0_289 = arith.constant 0 : index
    %251 = vector.load %arg13[%c0_288, %c0_289] : memref<1x128xf32, #tpu.memory_space<vmem>>, vector<1x128xf32>
    %c4_290 = arith.constant 4 : index
    %c0_291 = arith.constant 0 : index
    %252 = vector.load %arg15[%c4_290, %c0_291] : memref<24x128xf32, #tpu.memory_space<vmem>>, vector<16x128xf32>
    tpu.vector_store %arg15[%c4_290, %c0_291], %250 {strides = array<i32>} : memref<24x128xf32, #tpu.memory_space<vmem>>, vector<16x128xf32>,
    %c5_292 = arith.constant 5 : index
    %c0_293 = arith.constant 0 : index
    %253 = vector.load %arg15[%c5_292, %c0_293] : memref<24x128xf32, #tpu.memory_space<vmem>>, vector<1x128xf32>
    %c3_294 = arith.constant 3 : index
    %c0_295 = arith.constant 0 : index
    %254 = vector.load %arg15[%c3_294, %c0_295] : memref<24x128xf32, #tpu.memory_space<vmem>>, vector<1x128xf32>
    tpu.vector_store %arg15[%c3_294, %c0_295], %253 {strides = array<i32>} : memref<24x128xf32, #tpu.memory_space<vmem>>, vector<1x128xf32>,
    %c18_296 = arith.constant 18 : index
    %c0_297 = arith.constant 0 : index
    %255 = vector.load %arg15[%c18_296, %c0_297] : memref<24x128xf32, #tpu.memory_space<vmem>>, vector<1x128xf32>
    %c20_298 = arith.constant 20 : index
    %c0_299 = arith.constant 0 : index
    %256 = vector.load %arg15[%c20_298, %c0_299] : memref<24x128xf32, #tpu.memory_space<vmem>>, vector<1x128xf32>
    tpu.vector_store %arg15[%c20_298, %c0_299], %255 {strides = array<i32>} : memref<24x128xf32, #tpu.memory_space<vmem>>, vector<1x128xf32>,
    %c6_300 = arith.constant 6 : index
    %c0_301 = arith.constant 0 : index
    %257 = vector.load %arg15[%c6_300, %c0_301] : memref<24x128xf32, #tpu.memory_space<vmem>>, vector<1x128xf32>
    %c2_302 = arith.constant 2 : index
    %c0_303 = arith.constant 0 : index
    %258 = vector.load %arg15[%c2_302, %c0_303] : memref<24x128xf32, #tpu.memory_space<vmem>>, vector<1x128xf32>
    tpu.vector_store %arg15[%c2_302, %c0_303], %257 {strides = array<i32>} : memref<24x128xf32, #tpu.memory_space<vmem>>, vector<1x128xf32>,
    %c17_304 = arith.constant 17 : index
    %c0_305 = arith.constant 0 : index
    %259 = vector.load %arg15[%c17_304, %c0_305] : memref<24x128xf32, #tpu.memory_space<vmem>>, vector<1x128xf32>
    %c21_306 = arith.constant 21 : index
    %c0_307 = arith.constant 0 : index
    %260 = vector.load %arg15[%c21_306, %c0_307] : memref<24x128xf32, #tpu.memory_space<vmem>>, vector<1x128xf32>
    tpu.vector_store %arg15[%c21_306, %c0_307], %259 {strides = array<i32>} : memref<24x128xf32, #tpu.memory_space<vmem>>, vector<1x128xf32>,
    %c7_308 = arith.constant 7 : index
    %c0_309 = arith.constant 0 : index
    %261 = vector.load %arg15[%c7_308, %c0_309] : memref<24x128xf32, #tpu.memory_space<vmem>>, vector<1x128xf32>
    %c1_310 = arith.constant 1 : index
    %c0_311 = arith.constant 0 : index
    %262 = vector.load %arg15[%c1_310, %c0_311] : memref<24x128xf32, #tpu.memory_space<vmem>>, vector<1x128xf32>
    tpu.vector_store %arg15[%c1_310, %c0_311], %261 {strides = array<i32>} : memref<24x128xf32, #tpu.memory_space<vmem>>, vector<1x128xf32>,
    %c16_312 = arith.constant 16 : index
    %c0_313 = arith.constant 0 : index
    %263 = vector.load %arg15[%c16_312, %c0_313] : memref<24x128xf32, #tpu.memory_space<vmem>>, vector<1x128xf32>
    %c22_314 = arith.constant 22 : index
    %c0_315 = arith.constant 0 : index
    %264 = vector.load %arg15[%c22_314, %c0_315] : memref<24x128xf32, #tpu.memory_space<vmem>>, vector<1x128xf32>
    tpu.vector_store %arg15[%c22_314, %c0_315], %263 {strides = array<i32>} : memref<24x128xf32, #tpu.memory_space<vmem>>, vector<1x128xf32>,
    %c8_316 = arith.constant 8 : index
    %c0_317 = arith.constant 0 : index
    %265 = vector.load %arg15[%c8_316, %c0_317] : memref<24x128xf32, #tpu.memory_space<vmem>>, vector<1x128xf32>
    %c0_318 = arith.constant 0 : index
    %c0_319 = arith.constant 0 : index
    %266 = vector.load %arg15[%c0_318, %c0_319] : memref<24x128xf32, #tpu.memory_space<vmem>>, vector<1x128xf32>
    tpu.vector_store %arg15[%c0_318, %c0_319], %265 {strides = array<i32>} : memref<24x128xf32, #tpu.memory_space<vmem>>, vector<1x128xf32>,
    %c15_320 = arith.constant 15 : index
    %c0_321 = arith.constant 0 : index
    %267 = vector.load %arg15[%c15_320, %c0_321] : memref<24x128xf32, #tpu.memory_space<vmem>>, vector<1x128xf32>
    %c23_322 = arith.constant 23 : index
    %c0_323 = arith.constant 0 : index
    %268 = vector.load %arg15[%c23_322, %c0_323] : memref<24x128xf32, #tpu.memory_space<vmem>>, vector<1x128xf32>
    tpu.vector_store %arg15[%c23_322, %c0_323], %267 {strides = array<i32>} : memref<24x128xf32, #tpu.memory_space<vmem>>, vector<1x128xf32>,
    %c0_324 = arith.constant 0 : index
    %c0_325 = arith.constant 0 : index
    %269 = vector.load %arg15[%c0_324, %c0_325] : memref<24x128xf32, #tpu.memory_space<vmem>>, vector<16x128xf32>
    %270 = arith.truncf %269 : vector<16x128xf32> to vector<16x128xbf16>
    %c0_326 = arith.constant 0 : index
    %c0_327 = arith.constant 0 : index
    %c0_328 = arith.constant 0 : index
    %271 = vector.load %arg12[%c0_326, %c0_327, %c0_328] : memref<8x128x128xbf16, #tpu.memory_space<vmem>>, vector<1x128x128xbf16>
    %272 = vector.shape_cast %271 : vector<1x128x128xbf16> to vector<128x128xbf16>
    %cst_329 = arith.constant dense<0.000000e+00> : vector<16x128xf32>
    %273 = tpu.matmul %270, %272, %cst_329 {dimension_numbers = #tpu.dot_dimension_numbers<[1], [0], [0], [1], [0, 0, 1, 1], [], []>} : vector<16x128xbf16>, vector<128x128xbf16>, vector<16x128xf32> -> vector<16x128xf32>
    %c1_330 = arith.constant 1 : index
    %c0_331 = arith.constant 0 : index
    %274 = vector.load %arg15[%c1_330, %c0_331] : memref<24x128xf32, #tpu.memory_space<vmem>>, vector<16x128xf32>
    %275 = arith.truncf %274 : vector<16x128xf32> to vector<16x128xbf16>
    %c1_332 = arith.constant 1 : index
    %c0_333 = arith.constant 0 : index
    %c0_334 = arith.constant 0 : index
    %276 = vector.load %arg12[%c1_332, %c0_333, %c0_334] : memref<8x128x128xbf16, #tpu.memory_space<vmem>>, vector<1x128x128xbf16>
    %277 = vector.shape_cast %276 : vector<1x128x128xbf16> to vector<128x128xbf16>
    %cst_335 = arith.constant dense<0.000000e+00> : vector<16x128xf32>
    %278 = tpu.matmul %275, %277, %cst_335 {dimension_numbers = #tpu.dot_dimension_numbers<[1], [0], [0], [1], [0, 0, 1, 1], [], []>} : vector<16x128xbf16>, vector<128x128xbf16>, vector<16x128xf32> -> vector<16x128xf32>
    %279 = arith.addf %273, %278 : vector<16x128xf32>
    %c2_336 = arith.constant 2 : index
    %c0_337 = arith.constant 0 : index
    %280 = vector.load %arg15[%c2_336, %c0_337] : memref<24x128xf32, #tpu.memory_space<vmem>>, vector<16x128xf32>
    %281 = arith.truncf %280 : vector<16x128xf32> to vector<16x128xbf16>
    %c2_338 = arith.constant 2 : index
    %c0_339 = arith.constant 0 : index
    %c0_340 = arith.constant 0 : index
    %282 = vector.load %arg12[%c2_338, %c0_339, %c0_340] : memref<8x128x128xbf16, #tpu.memory_space<vmem>>, vector<1x128x128xbf16>
    %283 = vector.shape_cast %282 : vector<1x128x128xbf16> to vector<128x128xbf16>
    %cst_341 = arith.constant dense<0.000000e+00> : vector<16x128xf32>
    %284 = tpu.matmul %281, %283, %cst_341 {dimension_numbers = #tpu.dot_dimension_numbers<[1], [0], [0], [1], [0, 0, 1, 1], [], []>} : vector<16x128xbf16>, vector<128x128xbf16>, vector<16x128xf32> -> vector<16x128xf32>
    %285 = arith.addf %279, %284 : vector<16x128xf32>
    %c3_342 = arith.constant 3 : index
    %c0_343 = arith.constant 0 : index
    %286 = vector.load %arg15[%c3_342, %c0_343] : memref<24x128xf32, #tpu.memory_space<vmem>>, vector<16x128xf32>
    %287 = arith.truncf %286 : vector<16x128xf32> to vector<16x128xbf16>
    %c3_344 = arith.constant 3 : index
    %c0_345 = arith.constant 0 : index
    %c0_346 = arith.constant 0 : index
    %288 = vector.load %arg12[%c3_344, %c0_345, %c0_346] : memref<8x128x128xbf16, #tpu.memory_space<vmem>>, vector<1x128x128xbf16>
    %289 = vector.shape_cast %288 : vector<1x128x128xbf16> to vector<128x128xbf16>
    %cst_347 = arith.constant dense<0.000000e+00> : vector<16x128xf32>
    %290 = tpu.matmul %287, %289, %cst_347 {dimension_numbers = #tpu.dot_dimension_numbers<[1], [0], [0], [1], [0, 0, 1, 1], [], []>} : vector<16x128xbf16>, vector<128x128xbf16>, vector<16x128xf32> -> vector<16x128xf32>
    %291 = arith.addf %285, %290 : vector<16x128xf32>
    %c4_348 = arith.constant 4 : index
    %c0_349 = arith.constant 0 : index
    %292 = vector.load %arg15[%c4_348, %c0_349] : memref<24x128xf32, #tpu.memory_space<vmem>>, vector<16x128xf32>
    %293 = arith.truncf %292 : vector<16x128xf32> to vector<16x128xbf16>
    %c4_350 = arith.constant 4 : index
    %c0_351 = arith.constant 0 : index
    %c0_352 = arith.constant 0 : index
    %294 = vector.load %arg12[%c4_350, %c0_351, %c0_352] : memref<8x128x128xbf16, #tpu.memory_space<vmem>>, vector<1x128x128xbf16>
    %295 = vector.shape_cast %294 : vector<1x128x128xbf16> to vector<128x128xbf16>
    %cst_353 = arith.constant dense<0.000000e+00> : vector<16x128xf32>
    %296 = tpu.matmul %293, %295, %cst_353 {dimension_numbers = #tpu.dot_dimension_numbers<[1], [0], [0], [1], [0, 0, 1, 1], [], []>} : vector<16x128xbf16>, vector<128x128xbf16>, vector<16x128xf32> -> vector<16x128xf32>
    %297 = arith.addf %291, %296 : vector<16x128xf32>
    %c5_354 = arith.constant 5 : index
    %c0_355 = arith.constant 0 : index
    %298 = vector.load %arg15[%c5_354, %c0_355] : memref<24x128xf32, #tpu.memory_space<vmem>>, vector<16x128xf32>
    %299 = arith.truncf %298 : vector<16x128xf32> to vector<16x128xbf16>
    %c5_356 = arith.constant 5 : index
    %c0_357 = arith.constant 0 : index
    %c0_358 = arith.constant 0 : index
    %300 = vector.load %arg12[%c5_356, %c0_357, %c0_358] : memref<8x128x128xbf16, #tpu.memory_space<vmem>>, vector<1x128x128xbf16>
    %301 = vector.shape_cast %300 : vector<1x128x128xbf16> to vector<128x128xbf16>
    %cst_359 = arith.constant dense<0.000000e+00> : vector<16x128xf32>
    %302 = tpu.matmul %299, %301, %cst_359 {dimension_numbers = #tpu.dot_dimension_numbers<[1], [0], [0], [1], [0, 0, 1, 1], [], []>} : vector<16x128xbf16>, vector<128x128xbf16>, vector<16x128xf32> -> vector<16x128xf32>
    %303 = arith.addf %297, %302 : vector<16x128xf32>
    %c6_360 = arith.constant 6 : index
    %c0_361 = arith.constant 0 : index
    %304 = vector.load %arg15[%c6_360, %c0_361] : memref<24x128xf32, #tpu.memory_space<vmem>>, vector<16x128xf32>
    %305 = arith.truncf %304 : vector<16x128xf32> to vector<16x128xbf16>
    %c6_362 = arith.constant 6 : index
    %c0_363 = arith.constant 0 : index
    %c0_364 = arith.constant 0 : index
    %306 = vector.load %arg12[%c6_362, %c0_363, %c0_364] : memref<8x128x128xbf16, #tpu.memory_space<vmem>>, vector<1x128x128xbf16>
    %307 = vector.shape_cast %306 : vector<1x128x128xbf16> to vector<128x128xbf16>
    %cst_365 = arith.constant dense<0.000000e+00> : vector<16x128xf32>
    %308 = tpu.matmul %305, %307, %cst_365 {dimension_numbers = #tpu.dot_dimension_numbers<[1], [0], [0], [1], [0, 0, 1, 1], [], []>} : vector<16x128xbf16>, vector<128x128xbf16>, vector<16x128xf32> -> vector<16x128xf32>
    %309 = arith.addf %303, %308 : vector<16x128xf32>
    %c7_366 = arith.constant 7 : index
    %c0_367 = arith.constant 0 : index
    %310 = vector.load %arg15[%c7_366, %c0_367] : memref<24x128xf32, #tpu.memory_space<vmem>>, vector<16x128xf32>
    %311 = arith.truncf %310 : vector<16x128xf32> to vector<16x128xbf16>
    %c7_368 = arith.constant 7 : index
    %c0_369 = arith.constant 0 : index
    %c0_370 = arith.constant 0 : index
    %312 = vector.load %arg12[%c7_368, %c0_369, %c0_370] : memref<8x128x128xbf16, #tpu.memory_space<vmem>>, vector<1x128x128xbf16>
    %313 = vector.shape_cast %312 : vector<1x128x128xbf16> to vector<128x128xbf16>
    %cst_371 = arith.constant dense<0.000000e+00> : vector<16x128xf32>
    %314 = tpu.matmul %311, %313, %cst_371 {dimension_numbers = #tpu.dot_dimension_numbers<[1], [0], [0], [1], [0, 0, 1, 1], [], []>} : vector<16x128xbf16>, vector<128x128xbf16>, vector<16x128xf32> -> vector<16x128xf32>
    %315 = arith.addf %309, %314 : vector<16x128xf32>
    %316 = vector.broadcast %251 : vector<1x128xf32> to vector<16x128xf32>
    %317 = arith.addf %315, %316 : vector<16x128xf32>
    %c0_372 = arith.constant 0 : index
    %c0_373 = arith.constant 0 : index
    %c0_374 = arith.constant 0 : index
    %318 = vector.load %arg14[%c0_372, %c0_373, %c0_374] : memref<1x16x128xf32, #tpu.memory_space<vmem>>, vector<1x16x128xf32>
    %319 = vector.shape_cast %318 : vector<1x16x128xf32> to vector<16x128xf32>
    %320 = vector.shape_cast %317 : vector<16x128xf32> to vector<1x16x128xf32>
    tpu.vector_store %arg14[%c0_372, %c0_373, %c0_374], %320 {strides = array<i32>} : memref<1x16x128xf32, #tpu.memory_space<vmem>>, vector<1x16x128xf32>,
    return
  }
  func.func @transform_0(%arg0: i32) -> (i32, i32, i32) {
    %c0_i32 = arith.constant 0 : i32
    %c0_i32_0 = arith.constant 0 : i32
    %c0_i32_1 = arith.constant 0 : i32
    return %arg0, %c0_i32, %c0_i32_0 : i32, i32, i32
  }
  func.func @transform_1(%arg0: i32) -> (i32, i32, i32) {
    %c0_i32 = arith.constant 0 : i32
    %c0_i32_0 = arith.constant 0 : i32
    %c0_i32_1 = arith.constant 0 : i32
    %c0_i32_2 = arith.constant 0 : i32
    return %c0_i32, %c0_i32_0, %c0_i32_1 : i32, i32, i32
  }
  func.func @transform_2(%arg0: i32) -> (i32, i32) {
    %c0_i32 = arith.constant 0 : i32
    %c0_i32_0 = arith.constant 0 : i32
    %c0_i32_1 = arith.constant 0 : i32
    return %c0_i32, %c0_i32_0 : i32, i32
  }
  func.func @transform_3(%arg0: i32) -> (i32, i32, i32) {
    %c0_i32 = arith.constant 0 : i32
    %c0_i32_0 = arith.constant 0 : i32
    %c0_i32_1 = arith.constant 0 : i32
    %c0_i32_2 = arith.constant 0 : i32
    return %c0_i32, %c0_i32_0, %c0_i32_1 : i32, i32, i32
  }
  func.func @transform_4(%arg0: i32) -> (i32, i32, i32) {
    %c0_i32 = arith.constant 0 : i32
    %c0_i32_0 = arith.constant 0 : i32
    %c0_i32_1 = arith.constant 0 : i32
    %c0_i32_2 = arith.constant 0 : i32
    return %c0_i32, %c0_i32_0, %c0_i32_1 : i32, i32, i32
  }
  func.func @transform_5(%arg0: i32) -> (i32, i32, i32) {
    %c0_i32 = arith.constant 0 : i32
    %c0_i32_0 = arith.constant 0 : i32
    %c0_i32_1 = arith.constant 0 : i32
    %c0_i32_2 = arith.constant 0 : i32
    return %c0_i32, %c0_i32_0, %c0_i32_1 : i32, i32, i32
  }
  func.func @transform_6(%arg0: i32) -> (i32, i32, i32) {
    %c0_i32 = arith.constant 0 : i32
    %c0_i32_0 = arith.constant 0 : i32
    %c0_i32_1 = arith.constant 0 : i32
    %c0_i32_2 = arith.constant 0 : i32
    return %c0_i32, %c0_i32_0, %c0_i32_1 : i32, i32, i32
  }
  func.func @transform_7(%arg0: i32) -> (i32, i32, i32, i32) {
    %c0_i32 = arith.constant 0 : i32
    %c0_i32_0 = arith.constant 0 : i32
    %c0_i32_1 = arith.constant 0 : i32
    %c0_i32_2 = arith.constant 0 : i32
    %c0_i32_3 = arith.constant 0 : i32
    return %c0_i32, %c0_i32_0, %c0_i32_1, %c0_i32_2 : i32, i32, i32, i32
  }
  func.func @transform_8(%arg0: i32) -> (i32, i32, i32) {
    %c0_i32 = arith.constant 0 : i32
    %c0_i32_0 = arith.constant 0 : i32
    %c0_i32_1 = arith.constant 0 : i32
    %c0_i32_2 = arith.constant 0 : i32
    return %c0_i32, %c0_i32_0, %c0_i32_1 : i32, i32, i32
  }
  func.func @transform_9(%arg0: i32) -> (i32, i32) {
    %c0_i32 = arith.constant 0 : i32
    %c0_i32_0 = arith.constant 0 : i32
    %c0_i32_1 = arith.constant 0 : i32
    return %c0_i32, %c0_i32_0 : i32, i32
  }
  func.func @transform_10(%arg0: i32) -> (i32, i32) {
    %c0_i32 = arith.constant 0 : i32
    %c0_i32_0 = arith.constant 0 : i32
    %c0_i32_1 = arith.constant 0 : i32
    return %c0_i32, %c0_i32_0 : i32, i32
  }
  func.func @transform_11(%arg0: i32) -> (i32, i32, i32) {
    %c0_i32 = arith.constant 0 : i32
    %c0_i32_0 = arith.constant 0 : i32
    %c0_i32_1 = arith.constant 0 : i32
    %c0_i32_2 = arith.constant 0 : i32
    return %c0_i32, %c0_i32_0, %c0_i32_1 : i32, i32, i32
  }
  func.func @transform_12(%arg0: i32) -> (i32, i32) {
    %c0_i32 = arith.constant 0 : i32
    %c0_i32_0 = arith.constant 0 : i32
    %c0_i32_1 = arith.constant 0 : i32
    return %c0_i32, %c0_i32_0 : i32, i32
  }
  func.func @transform_13(%arg0: i32) -> (i32, i32, i32) {
    %c0_i32 = arith.constant 0 : i32
    %c0_i32_0 = arith.constant 0 : i32
    %c0_i32_1 = arith.constant 0 : i32
    return %arg0, %c0_i32, %c0_i32_0 : i32, i32, i32
  }
}

</mosaic_0001>

<llo_original>
// kernel: convolutional_encoder.1
$region0: #{convolutional_encoder.1}
  #allocation0 [shape = 'u32[]', space=smem, size = 0x4, offset = 0x4, fixed_abs, tag = 'smem constant byte address 0x4 - core index']
  #allocation1 [shape = 'u32[72,128]{1,0:T(1,128)}', space=vmem, size = 0x9000, scoped, tag = 'internal scratch']
  #allocation2 [shape = 'f32[24,128]{1,0:T(8,128)}', space=vmem, size = 0x3000, scoped, tag = 'scratch operand']
  %s0 = inlined_call_operand.vmem [shape: f32[2,16,128], index: 0, kind: input, shape index: {}]
  %s1 = inlined_call_operand.hbm [shape: bf16[8,128,128], index: 1, kind: input, shape index: {}]
  %s2 = inlined_call_operand.vmem [shape: f32[1,128], index: 2, kind: input, shape index: {}]
  %s3 = inlined_call_operand.hbm [shape: bf16[2,128,128], index: 3, kind: input, shape index: {}]
  %s4 = inlined_call_operand.vmem [shape: f32[2,1,128], index: 4, kind: input, shape index: {}]
  %s5 = inlined_call_operand.vmem [shape: f32[2,1,128], index: 5, kind: input, shape index: {}]
  %s6 = inlined_call_operand.vmem [shape: f32[2,1,128], index: 6, kind: input, shape index: {}]
  %s7 = inlined_call_operand.hbm [shape: bf16[2,8,128,128], index: 7, kind: input, shape index: {}]
  %s8 = inlined_call_operand.vmem [shape: f32[2,1,128], index: 8, kind: input, shape index: {}]
  %s9 = inlined_call_operand.vmem [shape: f32[1,128], index: 9, kind: input, shape index: {}]
  %s10 = inlined_call_operand.vmem [shape: f32[1,128], index: 10, kind: input, shape index: {}]
  %s11 = inlined_call_operand.hbm [shape: bf16[8,128,128], index: 11, kind: input, shape index: {}]
  %s12 = inlined_call_operand.vmem [shape: f32[1,128], index: 12, kind: input, shape index: {}]
  %s13 = inlined_call_operand.vmem [shape: f32[2,16,128], index: 13, kind: output, shape index: {}]
  %s14 = sld [smem:[#allocation0]]
  $region101: #{convolutional_encoder.1} parent=0
    _
  %s16 = ssub.s32 1, %s14
  %s17 = scalar_select 0, %s16, %s14
  $region1: #{convolutional_encoder.1} parent=0
    #allocation3 [shape = 'u8[262144]{0}', space=vmem, size = 0x40000, scoped, tag = 'input window, operand 1, single buffered']
    #allocation4 [shape = 's32[2]{0}', space=sflag, size = 0x8, scoped, tag = 'scoped memory for convolutional_encoder.1']
    #allocation5 [shape = 'u8[65536]{0}', space=vmem, size = 0x10000, scoped, tag = 'input window, operand 3, single buffered']
    #allocation6 [shape = 's32[1]{0}', space=sflag, size = 0x4, scoped, tag = 'scoped memory for convolutional_encoder.1']
    #allocation7 [shape = 'u8[524288]{0}', space=vmem, size = 0x80000, scoped, tag = 'input window, operand 7, single buffered']
    #allocation8 [shape = 'u8[262144]{0}', space=vmem, size = 0x40000, scoped, tag = 'input window, operand 11, single buffered']
    #allocation9 [shape = 's32[1]{0}', space=sflag, size = 0x4, scoped, tag = 'scoped memory for convolutional_encoder.1']
    %18 = vsyncpa [#allocation4], 0
    %19 = vsyncpa [#allocation6], 0
    %20 = vsyncpa [#allocation9], 0
    loop: start=0, step=1, limit=4
    $region2: #{convolutional_encoder.1} parent=1 // loop_pre_header
      _
    $region3: #{convolutional_encoder.1} parent=1 // loop_header
      %s22 = sphi 0, %s26
      %p23 = scmp.ge.s32.totalorder %s22, 4
      %s32 = sphi 0, %s34
      %s35 = sphi 0, %s32
      %s36 = sphi 0, %s35
      %s52 = sphi 0, %s36
      %s56 = sphi 0, %s56
      %s58 = sphi 0, %s56
      %s59 = sphi 0, %s58
      %s73 = sphi 0, %s59
      %s77 = sphi 0, %s77
      %s79 = sphi 0, %s77
      %s80 = sphi 0, %s79
      %s94 = sphi 0, %s80
      %s98 = sphi 0, %s98
      %s100 = sphi 0, %s98
      %s101 = sphi 0, %s100
      %s115 = sphi 0, %s101
      %s119 = sphi 0, %s119
      %s121 = sphi 0, %s119
      %s122 = sphi 0, %s121
      %s136 = sphi 0, %s122
      %s140 = sphi 0, %s140
      %s142 = sphi 0, %s140
      %s143 = sphi 0, %s142
      %s157 = sphi 0, %s143
      %s161 = sphi 0, %s161
      %s163 = sphi 0, %s161
      %s164 = sphi 0, %s163
      %s178 = sphi 0, %s164
      %s182 = sphi 0, %s182
      %s184 = sphi 0, %s182
      %s185 = sphi 0, %s184
      %s199 = sphi 0, %s185
      %s203 = sphi 0, %s203
      %s205 = sphi 0, %s203
      %s206 = sphi 0, %s205
      %s220 = sphi 0, %s206
      %s224 = sphi 0, %s224
      %s226 = sphi 0, %s224
      %s227 = sphi 0, %s226
      %s241 = sphi 0, %s227
      %s245 = sphi 0, %s245
      %s247 = sphi 0, %s245
      %s248 = sphi 0, %s247
      %s262 = sphi 0, %s248
      %s266 = sphi 0, %s266
      %s268 = sphi 0, %s266
      %s269 = sphi 0, %s268
      %s283 = sphi 0, %s269
      %s287 = sphi 0, %s287
      %s289 = sphi 0, %s287
      %s290 = sphi 0, %s289
      %s304 = sphi 0, %s290
      %s310 = sphi 0, %s312
      %s313 = sphi 0, %s310
      %s314 = sphi 0, %s313
      %s330 = sphi 0, %s314
    $region4: #{convolutional_encoder.1} parent=1 // loop_header_branch
      %25 = sbr.rel (%p23) target = $region8
    $region5: #{convolutional_encoder.1} parent=1 // loop_body
      %s27 = ssub.s32 %s22, 1
      %s28 = ssub.s32 %s22, 2
      %s29 = sadd.s32 %s22, 1
      %s30 = ssub.s32 %s22, %s29
      %p31 = scmp.eq.s32.totalorder %s30, 0
      %s33 = sadd.s32 %s32, 1
      %s34 = scalar_select %p31, %s32, %s33
      %p37 = pneg %p31
      %p38 = scmp.eq.s32.totalorder %s22, 1
      %p39 = por %p37, %p38
      %p40 = scmp.ne.s32.totalorder %s32, %s35
      %p41 = scmp.eq.s32.totalorder %s22, 0
      %p42 = por %p40, %p41
      %p43 = scmp.ne.s32.totalorder %s32, %s35
      %p44 = scmp.eq.s32.totalorder %s27, 1
      %p45 = por %p43, %p44
      %p46 = scmp.ne.s32.totalorder %s35, %s36
      %p47 = scmp.eq.s32.totalorder %s27, 0
      %p48 = por %p46, %p47
      %p49 = scmp.ne.s32.totalorder %s35, %s36
      %p50 = scmp.eq.s32.totalorder %s28, 1
      %p51 = por %p49, %p50
      %p53 = scmp.ne.s32.totalorder %s36, %s52
      %p54 = scmp.eq.s32.totalorder %s28, 0
      %p55 = por %p53, %p54
      %s57 = sadd.s32 %s56, 1
      %p60 = scmp.eq.s32.totalorder %s22, 1
      %p61 = scmp.ne.s32.totalorder %s56, %s58
      %p62 = scmp.eq.s32.totalorder %s22, 0
      %p63 = por %p61, %p62
      %p64 = scmp.ne.s32.totalorder %s56, %s58
      %p65 = scmp.eq.s32.totalorder %s27, 1
      %p66 = por %p64, %p65
      %p67 = scmp.ne.s32.totalorder %s58, %s59
      %p68 = scmp.eq.s32.totalorder %s27, 0
      %p69 = por %p67, %p68
      %p70 = scmp.ne.s32.totalorder %s58, %s59
      %p71 = scmp.eq.s32.totalorder %s28, 1
      %p72 = por %p70, %p71
      %p74 = scmp.ne.s32.totalorder %s59, %s73
      %p75 = scmp.eq.s32.totalorder %s28, 0
      %p76 = por %p74, %p75
      %s78 = sadd.s32 %s77, 1
      %p81 = scmp.eq.s32.totalorder %s22, 1
      %p82 = scmp.ne.s32.totalorder %s77, %s79
      %p83 = scmp.eq.s32.totalorder %s22, 0
      %p84 = por %p82, %p83
      %p85 = scmp.ne.s32.totalorder %s77, %s79
      %p86 = scmp.eq.s32.totalorder %s27, 1
      %p87 = por %p85, %p86
      %p88 = scmp.ne.s32.totalorder %s79, %s80
      %p89 = scmp.eq.s32.totalorder %s27, 0
      %p90 = por %p88, %p89
      %p91 = scmp.ne.s32.totalorder %s79, %s80
      %p92 = scmp.eq.s32.totalorder %s28, 1
      %p93 = por %p91, %p92
      %p95 = scmp.ne.s32.totalorder %s80, %s94
      %p96 = scmp.eq.s32.totalorder %s28, 0
      %p97 = por %p95, %p96
      %s99 = sadd.s32 %s98, 1
      %p102 = scmp.eq.s32.totalorder %s22, 1
      %p103 = scmp.ne.s32.totalorder %s98, %s100
      %p104 = scmp.eq.s32.totalorder %s22, 0
      %p105 = por %p103, %p104
      %p106 = scmp.ne.s32.totalorder %s98, %s100
      %p107 = scmp.eq.s32.totalorder %s27, 1
      %p108 = por %p106, %p107
      %p109 = scmp.ne.s32.totalorder %s100, %s101
      %p110 = scmp.eq.s32.totalorder %s27, 0
      %p111 = por %p109, %p110
      %p112 = scmp.ne.s32.totalorder %s100, %s101
      %p113 = scmp.eq.s32.totalorder %s28, 1
      %p114 = por %p112, %p113
      %p116 = scmp.ne.s32.totalorder %s101, %s115
      %p117 = scmp.eq.s32.totalorder %s28, 0
      %p118 = por %p116, %p117
      %s120 = sadd.s32 %s119, 1
      %p123 = scmp.eq.s32.totalorder %s22, 1
      %p124 = scmp.ne.s32.totalorder %s119, %s121
      %p125 = scmp.eq.s32.totalorder %s22, 0
      %p126 = por %p124, %p125
      %p127 = scmp.ne.s32.totalorder %s119, %s121
      %p128 = scmp.eq.s32.totalorder %s27, 1
      %p129 = por %p127, %p128
      %p130 = scmp.ne.s32.totalorder %s121, %s122
      %p131 = scmp.eq.s32.totalorder %s27, 0
      %p132 = por %p130, %p131
      %p133 = scmp.ne.s32.totalorder %s121, %s122
      %p134 = scmp.eq.s32.totalorder %s28, 1
      %p135 = por %p133, %p134
      %p137 = scmp.ne.s32.totalorder %s122, %s136
      %p138 = scmp.eq.s32.totalorder %s28, 0
      %p139 = por %p137, %p138
      %s141 = sadd.s32 %s140, 1
      %p144 = scmp.eq.s32.totalorder %s22, 1
      %p145 = scmp.ne.s32.totalorder %s140, %s142
      %p146 = scmp.eq.s32.totalorder %s22, 0
      %p147 = por %p145, %p146
      %p148 = scmp.ne.s32.totalorder %s140, %s142
      %p149 = scmp.eq.s32.totalorder %s27, 1
      %p150 = por %p148, %p149
      %p151 = scmp.ne.s32.totalorder %s142, %s143
      %p152 = scmp.eq.s32.totalorder %s27, 0
      %p153 = por %p151, %p152
      %p154 = scmp.ne.s32.totalorder %s142, %s143
      %p155 = scmp.eq.s32.totalorder %s28, 1
      %p156 = por %p154, %p155
      %p158 = scmp.ne.s32.totalorder %s143, %s157
      %p159 = scmp.eq.s32.totalorder %s28, 0
      %p160 = por %p158, %p159
      %s162 = sadd.s32 %s161, 1
      %p165 = scmp.eq.s32.totalorder %s22, 1
      %p166 = scmp.ne.s32.totalorder %s161, %s163
      %p167 = scmp.eq.s32.totalorder %s22, 0
      %p168 = por %p166, %p167
      %p169 = scmp.ne.s32.totalorder %s161, %s163
      %p170 = scmp.eq.s32.totalorder %s27, 1
      %p171 = por %p169, %p170
      %p172 = scmp.ne.s32.totalorder %s163, %s164
      %p173 = scmp.eq.s32.totalorder %s27, 0
      %p174 = por %p172, %p173
      %p175 = scmp.ne.s32.totalorder %s163, %s164
      %p176 = scmp.eq.s32.totalorder %s28, 1
      %p177 = por %p175, %p176
      %p179 = scmp.ne.s32.totalorder %s164, %s178
      %p180 = scmp.eq.s32.totalorder %s28, 0
      %p181 = por %p179, %p180
      %s183 = sadd.s32 %s182, 1
      %p186 = scmp.eq.s32.totalorder %s22, 1
      %p187 = scmp.ne.s32.totalorder %s182, %s184
      %p188 = scmp.eq.s32.totalorder %s22, 0
      %p189 = por %p187, %p188
      %p190 = scmp.ne.s32.totalorder %s182, %s184
      %p191 = scmp.eq.s32.totalorder %s27, 1
      %p192 = por %p190, %p191
      %p193 = scmp.ne.s32.totalorder %s184, %s185
      %p194 = scmp.eq.s32.totalorder %s27, 0
      %p195 = por %p193, %p194
      %p196 = scmp.ne.s32.totalorder %s184, %s185
      %p197 = scmp.eq.s32.totalorder %s28, 1
      %p198 = por %p196, %p197
      %p200 = scmp.ne.s32.totalorder %s185, %s199
      %p201 = scmp.eq.s32.totalorder %s28, 0
      %p202 = por %p200, %p201
      %s204 = sadd.s32 %s203, 1
      %p207 = scmp.eq.s32.totalorder %s22, 1
      %p208 = scmp.ne.s32.totalorder %s203, %s205
      %p209 = scmp.eq.s32.totalorder %s22, 0
      %p210 = por %p208, %p209
      %p211 = scmp.ne.s32.totalorder %s203, %s205
      %p212 = scmp.eq.s32.totalorder %s27, 1
      %p213 = por %p211, %p212
      %p214 = scmp.ne.s32.totalorder %s205, %s206
      %p215 = scmp.eq.s32.totalorder %s27, 0
      %p216 = por %p214, %p215
      %p217 = scmp.ne.s32.totalorder %s205, %s206
      %p218 = scmp.eq.s32.totalorder %s28, 1
      %p219 = por %p217, %p218
      %p221 = scmp.ne.s32.totalorder %s206, %s220
      %p222 = scmp.eq.s32.totalorder %s28, 0
      %p223 = por %p221, %p222
      %s225 = sadd.s32 %s224, 1
      %p228 = scmp.eq.s32.totalorder %s22, 1
      %p229 = scmp.ne.s32.totalorder %s224, %s226
      %p230 = scmp.eq.s32.totalorder %s22, 0
      %p231 = por %p229, %p230
      %p232 = scmp.ne.s32.totalorder %s224, %s226
      %p233 = scmp.eq.s32.totalorder %s27, 1
      %p234 = por %p232, %p233
      %p235 = scmp.ne.s32.totalorder %s226, %s227
      %p236 = scmp.eq.s32.totalorder %s27, 0
      %p237 = por %p235, %p236
      %p238 = scmp.ne.s32.totalorder %s226, %s227
      %p239 = scmp.eq.s32.totalorder %s28, 1
      %p240 = por %p238, %p239
      %p242 = scmp.ne.s32.totalorder %s227, %s241
      %p243 = scmp.eq.s32.totalorder %s28, 0
      %p244 = por %p242, %p243
      %s246 = sadd.s32 %s245, 1
      %p249 = scmp.eq.s32.totalorder %s22, 1
      %p250 = scmp.ne.s32.totalorder %s245, %s247
      %p251 = scmp.eq.s32.totalorder %s22, 0
      %p252 = por %p250, %p251
      %p253 = scmp.ne.s32.totalorder %s245, %s247
      %p254 = scmp.eq.s32.totalorder %s27, 1
      %p255 = por %p253, %p254
      %p256 = scmp.ne.s32.totalorder %s247, %s248
      %p257 = scmp.eq.s32.totalorder %s27, 0
      %p258 = por %p256, %p257
      %p259 = scmp.ne.s32.totalorder %s247, %s248
      %p260 = scmp.eq.s32.totalorder %s28, 1
      %p261 = por %p259, %p260
      %p263 = scmp.ne.s32.totalorder %s248, %s262
      %p264 = scmp.eq.s32.totalorder %s28, 0
      %p265 = por %p263, %p264
      %s267 = sadd.s32 %s266, 1
      %p270 = scmp.eq.s32.totalorder %s22, 1
      %p271 = scmp.ne.s32.totalorder %s266, %s268
      %p272 = scmp.eq.s32.totalorder %s22, 0
      %p273 = por %p271, %p272
      %p274 = scmp.ne.s32.totalorder %s266, %s268
      %p275 = scmp.eq.s32.totalorder %s27, 1
      %p276 = por %p274, %p275
      %p277 = scmp.ne.s32.totalorder %s268, %s269
      %p278 = scmp.eq.s32.totalorder %s27, 0
      %p279 = por %p277, %p278
      %p280 = scmp.ne.s32.totalorder %s268, %s269
      %p281 = scmp.eq.s32.totalorder %s28, 1
      %p282 = por %p280, %p281
      %p284 = scmp.ne.s32.totalorder %s269, %s283
      %p285 = scmp.eq.s32.totalorder %s28, 0
      %p286 = por %p284, %p285
      %s288 = sadd.s32 %s287, 1
      %p291 = scmp.eq.s32.totalorder %s22, 1
      %p292 = scmp.ne.s32.totalorder %s287, %s289
      %p293 = scmp.eq.s32.totalorder %s22, 0
      %p294 = por %p292, %p293
      %p295 = scmp.ne.s32.totalorder %s287, %s289
      %p296 = scmp.eq.s32.totalorder %s27, 1
      %p297 = por %p295, %p296
      %p298 = scmp.ne.s32.totalorder %s289, %s290
      %p299 = scmp.eq.s32.totalorder %s27, 0
      %p300 = por %p298, %p299
      %p301 = scmp.ne.s32.totalorder %s289, %s290
      %p302 = scmp.eq.s32.totalorder %s28, 1
      %p303 = por %p301, %p302
      %p305 = scmp.ne.s32.totalorder %s290, %s304
      %p306 = scmp.eq.s32.totalorder %s28, 0
      %p307 = por %p305, %p306
      %s308 = ssub.s32 %s22, %s29
      %p309 = scmp.eq.s32.totalorder %s308, 0
      %s311 = sadd.s32 %s310, 1
      %s312 = scalar_select %p309, %s310, %s311
      %p315 = pneg %p309
      %p316 = scmp.eq.s32.totalorder %s22, 1
      %p317 = por %p315, %p316
      %p318 = scmp.ne.s32.totalorder %s310, %s313
      %p319 = scmp.eq.s32.totalorder %s22, 0
      %p320 = por %p318, %p319
      %p321 = scmp.ne.s32.totalorder %s310, %s313
      %p322 = scmp.eq.s32.totalorder %s27, 1
      %p323 = por %p321, %p322
      %p324 = scmp.ne.s32.totalorder %s313, %s314
      %p325 = scmp.eq.s32.totalorder %s27, 0
      %p326 = por %p324, %p325
      %p327 = scmp.ne.s32.totalorder %s313, %s314
      %p328 = scmp.eq.s32.totalorder %s28, 1
      %p329 = por %p327, %p328
      %p331 = scmp.ne.s32.totalorder %s314, %s330
      %p332 = scmp.eq.s32.totalorder %s28, 0
      %p333 = por %p331, %p332
      %p334 = scmp.le.s32.totalorder 1, %s22
      %p335 = scmp.lt.s32.totalorder %s22, 3
      %p336 = pnand %p334, %p335
      %p337 = pneg %p336
      // Predicated region
      $region9: #{convolutional_encoder.1} parent=5 // pred_check
        _
      $region10: #{convolutional_encoder.1} parent=5 // pred_check_branch
        %339 = sbr.rel (%p336) target = $region12
      $region11: #{convolutional_encoder.1} parent=5 // pred_region
        %s340 = ssub.s32 %s22, 1
        // Predicated region
        $region13: #{convolutional_encoder.1} parent=11 // pred_check
          %p341 = pneg %p69
        $region14: #{convolutional_encoder.1} parent=11 // pred_check_branch
          %343 = sbr.rel (%p341) target = $region16
        $region15: #{convolutional_encoder.1} parent=11 // pred_region
          %345 = vsyncadd [#allocation4], 0
          %s346 = sshll.u32 %s1, 4
          %s347 = int_to_ptr.hbm [resolvable:$true] %s346
          %s348 = sshll.u32 [#allocation3], 4
          %s349 = int_to_ptr.vmem [resolvable:$true] %s348
          %354 = dma.hbm_to_vmem [thread:$0]  %s347, 8192, %s349, [#allocation4], 64, 64, 4
        $region16: #{convolutional_encoder.1} parent=11 // pred_fallthru
          _
        // Predicated region
        $region17: #{convolutional_encoder.1} parent=11 // pred_check
          %p355 = pneg %p90
        $region18: #{convolutional_encoder.1} parent=11 // pred_check_branch
          %357 = sbr.rel (%p355) target = $region20
        $region19: #{convolutional_encoder.1} parent=11 // pred_region
          _
        $region20: #{convolutional_encoder.1} parent=11 // pred_fallthru
          _
        // Predicated region
        $region21: #{convolutional_encoder.1} parent=11 // pred_check
          %p358 = pneg %p111
        $region22: #{convolutional_encoder.1} parent=11 // pred_check_branch
          %360 = sbr.rel (%p358) target = $region24
        $region23: #{convolutional_encoder.1} parent=11 // pred_region
          %362 = vsyncadd [#allocation6], 0
          %s363 = sshll.u32 %s3, 4
          %s364 = int_to_ptr.hbm [resolvable:$true] %s363
          %s365 = sshll.u32 [#allocation5], 4
          %s366 = int_to_ptr.vmem [resolvable:$true] %s365
          %371 = dma.hbm_to_vmem [thread:$0]  %s364, 2048, %s366, [#allocation6], 64, 64, 4
        $region24: #{convolutional_encoder.1} parent=11 // pred_fallthru
          _
        // Predicated region
        $region25: #{convolutional_encoder.1} parent=11 // pred_check
          %p372 = pneg %p132
        $region26: #{convolutional_encoder.1} parent=11 // pred_check_branch
          %374 = sbr.rel (%p372) target = $region28
        $region27: #{convolutional_encoder.1} parent=11 // pred_region
          _
        $region28: #{convolutional_encoder.1} parent=11 // pred_fallthru
          _
        // Predicated region
        $region29: #{convolutional_encoder.1} parent=11 // pred_check
          %p375 = pneg %p153
        $region30: #{convolutional_encoder.1} parent=11 // pred_check_branch
          %377 = sbr.rel (%p375) target = $region32
        $region31: #{convolutional_encoder.1} parent=11 // pred_region
          _
        $region32: #{convolutional_encoder.1} parent=11 // pred_fallthru
          _
        // Predicated region
        $region33: #{convolutional_encoder.1} parent=11 // pred_check
          %p378 = pneg %p174
        $region34: #{convolutional_encoder.1} parent=11 // pred_check_branch
          %380 = sbr.rel (%p378) target = $region36
        $region35: #{convolutional_encoder.1} parent=11 // pred_region
          _
        $region36: #{convolutional_encoder.1} parent=11 // pred_fallthru
          _
        // Predicated region
        $region37: #{convolutional_encoder.1} parent=11 // pred_check
          %p381 = pneg %p195
        $region38: #{convolutional_encoder.1} parent=11 // pred_check_branch
          %383 = sbr.rel (%p381) target = $region40
        $region39: #{convolutional_encoder.1} parent=11 // pred_region
          %385 = vsyncadd [#allocation6], 0
          %s386 = sshll.u32 %s7, 4
          %s387 = int_to_ptr.hbm [resolvable:$true] %s386
          %s388 = sshll.u32 [#allocation7], 4
          %s389 = int_to_ptr.vmem [resolvable:$true] %s388
          %394 = dma.hbm_to_vmem [thread:$0]  %s387, 16384, %s389, [#allocation6], 64, 64, 4
        $region40: #{convolutional_encoder.1} parent=11 // pred_fallthru
          _
        // Predicated region
        $region41: #{convolutional_encoder.1} parent=11 // pred_check
          %p395 = pneg %p216
        $region42: #{convolutional_encoder.1} parent=11 // pred_check_branch
          %397 = sbr.rel (%p395) target = $region44
        $region43: #{convolutional_encoder.1} parent=11 // pred_region
          _
        $region44: #{convolutional_encoder.1} parent=11 // pred_fallthru
          _
        // Predicated region
        $region45: #{convolutional_encoder.1} parent=11 // pred_check
          %p398 = pneg %p237
        $region46: #{convolutional_encoder.1} parent=11 // pred_check_branch
          %400 = sbr.rel (%p398) target = $region48
        $region47: #{convolutional_encoder.1} parent=11 // pred_region
          _
        $region48: #{convolutional_encoder.1} parent=11 // pred_fallthru
          _
        // Predicated region
        $region49: #{convolutional_encoder.1} parent=11 // pred_check
          %p401 = pneg %p258
        $region50: #{convolutional_encoder.1} parent=11 // pred_check_branch
          %403 = sbr.rel (%p401) target = $region52
        $region51: #{convolutional_encoder.1} parent=11 // pred_region
          _
        $region52: #{convolutional_encoder.1} parent=11 // pred_fallthru
          _
        // Predicated region
        $region53: #{convolutional_encoder.1} parent=11 // pred_check
          %p404 = pneg %p279
        $region54: #{convolutional_encoder.1} parent=11 // pred_check_branch
          %406 = sbr.rel (%p404) target = $region56
        $region55: #{convolutional_encoder.1} parent=11 // pred_region
          %408 = vsyncadd [#allocation9], 0
          %s409 = sshll.u32 %s11, 4
          %s410 = int_to_ptr.hbm [resolvable:$true] %s409
          %s411 = sshll.u32 [#allocation8], 4
          %s412 = int_to_ptr.vmem [resolvable:$true] %s411
          %417 = dma.hbm_to_vmem [thread:$0]  %s410, 8192, %s412, [#allocation9], 64, 64, 4
        $region56: #{convolutional_encoder.1} parent=11 // pred_fallthru
          _
        // Predicated region
        $region57: #{convolutional_encoder.1} parent=11 // pred_check
          %p418 = pneg %p300
        $region58: #{convolutional_encoder.1} parent=11 // pred_check_branch
          %420 = sbr.rel (%p418) target = $region60
        $region59: #{convolutional_encoder.1} parent=11 // pred_region
          _
        $region60: #{convolutional_encoder.1} parent=11 // pred_fallthru
          _
      $region12: #{convolutional_encoder.1} parent=5 // pred_fallthru
        _
      %p421 = scmp.lt.s32.totalorder %s22, 2
      // Predicated region
      $region61: #{convolutional_encoder.1} parent=5 // pred_check
        %p422 = pneg %p421
      $region62: #{convolutional_encoder.1} parent=5 // pred_check_branch
        %424 = sbr.rel (%p422) target = $region64
      $region63: #{convolutional_encoder.1} parent=5 // pred_region
        // Predicated region
        $region65: #{convolutional_encoder.1} parent=63 // pred_check
          %p425 = pneg %p42
        $region66: #{convolutional_encoder.1} parent=63 // pred_check_branch
          %427 = sbr.rel (%p425) target = $region68
        $region67: #{convolutional_encoder.1} parent=63 // pred_region
          %p428 = scmp.lt.s32.totalorder %s22, 1
          %s429 = scalar_select %p428, %s22, 1
          %s430 = smul.addr %s429, 2
          %s431 = smul.addr %s430, 8
          %s432 = scalar_lea.vmem %s0, %s431
        $region68: #{convolutional_encoder.1} parent=63 // pred_fallthru
          _
      $region64: #{convolutional_encoder.1} parent=5 // pred_fallthru
        _
      %p433 = scmp.le.s32.totalorder 1, %s22
      %p434 = scmp.lt.s32.totalorder %s22, 3
      %p435 = pnand %p433, %p434
      %p436 = pneg %p435
      // Predicated region
      $region69: #{convolutional_encoder.1} parent=5 // pred_check
        _
      $region70: #{convolutional_encoder.1} parent=5 // pred_check_branch
        %438 = sbr.rel (%p435) target = $region72
      $region71: #{convolutional_encoder.1} parent=5 // pred_region
        %s439 = ssub.s32 %s22, 1
        // Predicated region
        $region73: #{convolutional_encoder.1} parent=71 // pred_check
          %p440 = pneg %p69
        $region74: #{convolutional_encoder.1} parent=71 // pred_check_branch
          %442 = sbr.rel (%p440) target = $region76
        $region75: #{convolutional_encoder.1} parent=71 // pred_region
          %444 = dma.done [#allocation4], 8192
        $region76: #{convolutional_encoder.1} parent=71 // pred_fallthru
          _
        // Predicated region
        $region77: #{convolutional_encoder.1} parent=71 // pred_check
          %p445 = pneg %p111
        $region78: #{convolutional_encoder.1} parent=71 // pred_check_branch
          %447 = sbr.rel (%p445) target = $region80
        $region79: #{convolutional_encoder.1} parent=71 // pred_region
          %449 = dma.done [#allocation6], 2048
        $region80: #{convolutional_encoder.1} parent=71 // pred_fallthru
          _
        // Predicated region
        $region81: #{convolutional_encoder.1} parent=71 // pred_check
          %p450 = pneg %p195
        $region82: #{convolutional_encoder.1} parent=71 // pred_check_branch
          %452 = sbr.rel (%p450) target = $region84
        $region83: #{convolutional_encoder.1} parent=71 // pred_region
          %454 = dma.done [#allocation6], 16384
        $region84: #{convolutional_encoder.1} parent=71 // pred_fallthru
          _
        // Predicated region
        $region85: #{convolutional_encoder.1} parent=71 // pred_check
          %p455 = pneg %p279
        $region86: #{convolutional_encoder.1} parent=71 // pred_check_branch
          %457 = sbr.rel (%p455) target = $region88
        $region87: #{convolutional_encoder.1} parent=71 // pred_region
          %459 = dma.done [#allocation9], 8192
        $region88: #{convolutional_encoder.1} parent=71 // pred_fallthru
          _
        %p460 = scmp.lt.s32.totalorder %s27, 1
        %s461 = scalar_select %p460, %s27, 1
        %s462 = smul.addr %s461, 2
        %s463 = smul.addr %s462, 8
        %s464 = scalar_lea.vmem %s0, %s463
        %p465 = pneg %p48
        %p466 = pneg %p45
        %p467 = pneg %p69
        %p468 = pneg %p66
        %p469 = pneg %p90
        %p470 = pneg %p87
        %p471 = pneg %p111
        %p472 = pneg %p108
        %p473 = pneg %p132
        %p474 = pneg %p129
        %p475 = pneg %p153
        %p476 = pneg %p150
        %p477 = pneg %p174
        %p478 = pneg %p171
        %p479 = pneg %p195
        %p480 = pneg %p192
        %p481 = pneg %p216
        %p482 = pneg %p213
        %p483 = pneg %p237
        %p484 = pneg %p234
        %p485 = pneg %p258
        %p486 = pneg %p255
        %p487 = pneg %p279
        %p488 = pneg %p276
        %p489 = pneg %p300
        %p490 = pneg %p297
        %p491 = pneg %p326
        %p492 = pneg %p323
        %p493 = scmp.lt.s32.totalorder %s27, 1
        %s494 = scalar_select %p493, %s27, 1
        %s495 = smul.addr %s494, 2
        %s496 = smul.addr %s495, 8
        %s497 = scalar_lea.vmem %s13, %s496
        %p498 = scmp.lt.s32.totalorder %s27, 1
        %s499 = scalar_select %p498, %s27, 1
        %s500 = smul.addr %s499, 2
        %s501 = smul.addr %s500, 8
        %s502 = scalar_lea.vmem %s0, %s501
        %p503 = scmp.lt.s32.totalorder %s27, 1
        %s504 = scalar_select %p503, %s27, 1
        %s505 = smul.addr %s504, 2
        %s506 = smul.addr %s505, 8
        %s507 = scalar_lea.vmem %s13, %s506
        %v508 = vld [vmem:[%s502] sm:$0xff]
        %v509 = vld [vmem:[%s502 + $0x8] sm:$0xff]
        %v510 = vld [vmem:[%s2] sm:$0x1]
        %511 = vst [vmem:[#allocation2 + $0x4] sm:$0xff] %v508
        %512 = vst [vmem:[#allocation2 + $0xc] sm:$0xff] %v509
        %v513 = vld [vmem:[#allocation2 + $0x5] sm:$0x1]
        %514 = vst [vmem:[#allocation2 + $0x3] sm:$0x1] %v513
        %v515 = vld [vmem:[#allocation2 + $0x12] sm:$0x1]
        %516 = vst [vmem:[#allocation2 + $0x14] sm:$0x1] %v515
        %v517 = vld [vmem:[#allocation2 + $0x6] sm:$0x1]
        %518 = vst [vmem:[#allocation2 + $0x2] sm:$0x1] %v517
        %v519 = vld [vmem:[#allocation2 + $0x11] sm:$0x1]
        %520 = vst [vmem:[#allocation2 + $0x15] sm:$0x1] %v519
        %v521 = vld [vmem:[#allocation2 + $0x7] sm:$0x1]
        %522 = vst [vmem:[#allocation2 + $0x1] sm:$0x1] %v521
        %v523 = vld [vmem:[#allocation2 + $0x10] sm:$0x1]
        %524 = vst [vmem:[#allocation2 + $0x16] sm:$0x1] %v523
        %v525 = vld [vmem:[#allocation2 + $0x8] sm:$0x1]
        %526 = vst [vmem:[#allocation2] sm:$0x1] %v525
        %v527 = vld [vmem:[#allocation2 + $0xf] sm:$0x1]
        %528 = vst [vmem:[#allocation2 + $0x17] sm:$0x1] %v527
        %v529 = vld [vmem:[#allocation2] sm:$0xff]
        %v530 = vld [vmem:[#allocation2 + $0x8] sm:$0xff]
        %v531 = vpack.c.bf16 %v530, %v529
        %v532 = vld [vmem:[#allocation3] sm:$0xf]
        %v533 = vld [vmem:[#allocation3 + $0x4] sm:$0xf]
        %v534 = vld [vmem:[#allocation3 + $0x8] sm:$0xf]
        %v535 = vld [vmem:[#allocation3 + $0xc] sm:$0xf]
        %v536 = vld [vmem:[#allocation3 + $0x10] sm:$0xf]
        %v537 = vld [vmem:[#allocation3 + $0x14] sm:$0xf]
        %v538 = vld [vmem:[#allocation3 + $0x18] sm:$0xf]
        %v539 = vld [vmem:[#allocation3 + $0x1c] sm:$0xf]
        %v540 = vld [vmem:[#allocation3 + $0x20] sm:$0xf]
        %v541 = vld [vmem:[#allocation3 + $0x24] sm:$0xf]
        %v542 = vld [vmem:[#allocation3 + $0x28] sm:$0xf]
        %v543 = vld [vmem:[#allocation3 + $0x2c] sm:$0xf]
        %v544 = vld [vmem:[#allocation3 + $0x30] sm:$0xf]
        %v545 = vld [vmem:[#allocation3 + $0x34] sm:$0xf]
        %v546 = vld [vmem:[#allocation3 + $0x38] sm:$0xf]
        %v547 = vld [vmem:[#allocation3 + $0x3c] sm:$0xf]
        %v548 = vld [vmem:[#allocation2 + $0x1] sm:$0xff]
        %v549 = vld [vmem:[#allocation2 + $0x9] sm:$0xff]
        %v550 = vpack.c.bf16 %v549, %v548
        %s551 = scalar_lea.vmem [#allocation3], 64
        %v552 = vld [vmem:[%s551] sm:$0xf]
        %v553 = vld [vmem:[%s551 + $0x4] sm:$0xf]
        %v554 = vld [vmem:[%s551 + $0x8] sm:$0xf]
        %v555 = vld [vmem:[%s551 + $0xc] sm:$0xf]
        %v556 = vld [vmem:[%s551 + $0x10] sm:$0xf]
        %v557 = vld [vmem:[%s551 + $0x14] sm:$0xf]
        %v558 = vld [vmem:[%s551 + $0x18] sm:$0xf]
        %v559 = vld [vmem:[%s551 + $0x1c] sm:$0xf]
        %v560 = vld [vmem:[%s551 + $0x20] sm:$0xf]
        %v561 = vld [vmem:[%s551 + $0x24] sm:$0xf]
        %v562 = vld [vmem:[%s551 + $0x28] sm:$0xf]
        %v563 = vld [vmem:[%s551 + $0x2c] sm:$0xf]
        %v564 = vld [vmem:[%s551 + $0x30] sm:$0xf]
        %v565 = vld [vmem:[%s551 + $0x34] sm:$0xf]
        %v566 = vld [vmem:[%s551 + $0x38] sm:$0xf]
        %v567 = vld [vmem:[%s551 + $0x3c] sm:$0xf]
        %v584 = vunpack.c.l.b16 %v552
        %v585 = vunpack.c.l.b16 %v553
        %v586 = vunpack.c.l.b16 %v554
        %v587 = vunpack.c.l.b16 %v555
        %v588 = vunpack.c.l.b16 %v556
        %v589 = vunpack.c.l.b16 %v557
        %v590 = vunpack.c.l.b16 %v558
        %v591 = vunpack.c.l.b16 %v559
        %v592 = vunpack.c.l.b16 %v560
        %v593 = vunpack.c.l.b16 %v561
        %v594 = vunpack.c.l.b16 %v562
        %v595 = vunpack.c.l.b16 %v563
        %v596 = vunpack.c.l.b16 %v564
        %v597 = vunpack.c.l.b16 %v565
        %v598 = vunpack.c.l.b16 %v566
        %v599 = vunpack.c.l.b16 %v567
        %v600 = vpack.c.b16 %v585, %v584
        %v601 = vpack.c.b16 %v587, %v586
        %v602 = vpack.c.b16 %v589, %v588
        %v603 = vpack.c.b16 %v591, %v590
        %v604 = vpack.c.b16 %v593, %v592
        %v605 = vpack.c.b16 %v595, %v594
        %v606 = vpack.c.b16 %v597, %v596
        %v607 = vpack.c.b16 %v599, %v598
        %616 = vmatpush.bf16.msra.mxu0 %v607
        %617 = vmatpush.bf16.msra.mxu0 %v606
        %618 = vmatpush.bf16.msra.mxu0 %v605
        %619 = vmatpush.bf16.msra.mxu0 %v604
        %620 = vmatpush.bf16.msra.mxu0 %v603
        %621 = vmatpush.bf16.msra.mxu0 %v602
        %622 = vmatpush.bf16.msra.mxu0 %v601
        %623 = vmatpush.bf16.msra.mxu0 %v600
        %624 = vmatmul.bf16.gmra.mxu0 %v550
        %v625 = vpop.f32.mrf.mxu0
        %v626 = vadd.f32 0.0, %v625
        %v627 = vpop.f32.mrf.mxu0
        %v628 = vadd.f32 0.0, %v627
        %629 = vdwg.mxu0
        %v646 = vunpack.c.l.b16 %v532
        %v647 = vunpack.c.l.b16 %v533
        %v648 = vunpack.c.l.b16 %v534
        %v649 = vunpack.c.l.b16 %v535
        %v650 = vunpack.c.l.b16 %v536
        %v651 = vunpack.c.l.b16 %v537
        %v652 = vunpack.c.l.b16 %v538
        %v653 = vunpack.c.l.b16 %v539
        %v654 = vunpack.c.l.b16 %v540
        %v655 = vunpack.c.l.b16 %v541
        %v656 = vunpack.c.l.b16 %v542
        %v657 = vunpack.c.l.b16 %v543
        %v658 = vunpack.c.l.b16 %v544
        %v659 = vunpack.c.l.b16 %v545
        %v660 = vunpack.c.l.b16 %v546
        %v661 = vunpack.c.l.b16 %v547
        %v662 = vpack.c.b16 %v647, %v646
        %v663 = vpack.c.b16 %v649, %v648
        %v664 = vpack.c.b16 %v651, %v650
        %v665 = vpack.c.b16 %v653, %v652
        %v666 = vpack.c.b16 %v655, %v654
        %v667 = vpack.c.b16 %v657, %v656
        %v668 = vpack.c.b16 %v659, %v658
        %v669 = vpack.c.b16 %v661, %v660
        %678 = vmatpush.bf16.msra.mxu0 %v669
        %679 = vmatpush.bf16.msra.mxu0 %v668
        %680 = vmatpush.bf16.msra.mxu0 %v667
        %681 = vmatpush.bf16.msra.mxu0 %v666
        %682 = vmatpush.bf16.msra.mxu0 %v665
        %683 = vmatpush.bf16.msra.mxu0 %v664
        %684 = vmatpush.bf16.msra.mxu0 %v663
        %685 = vmatpush.bf16.msra.mxu0 %v662
        %686 = vmatmul.bf16.gmra.mxu0 %v531
        %v687 = vpop.f32.mrf.mxu0
        %v688 = vadd.f32 %v626, %v687
        %v689 = vpop.f32.mrf.mxu0
        %v690 = vadd.f32 %v628, %v689
        %691 = vdwg.mxu0
        %v692 = vld [vmem:[#allocation2 + $0x2] sm:$0xff]
        %v693 = vld [vmem:[#allocation2 + $0xa] sm:$0xff]
        %v694 = vpack.c.bf16 %v693, %v692
        %s695 = scalar_lea.vmem [#allocation3], 128
        %v696 = vld [vmem:[%s695] sm:$0xf]
        %v697 = vld [vmem:[%s695 + $0x4] sm:$0xf]
        %v698 = vld [vmem:[%s695 + $0x8] sm:$0xf]
        %v699 = vld [vmem:[%s695 + $0xc] sm:$0xf]
        %v700 = vld [vmem:[%s695 + $0x10] sm:$0xf]
        %v701 = vld [vmem:[%s695 + $0x14] sm:$0xf]
        %v702 = vld [vmem:[%s695 + $0x18] sm:$0xf]
        %v703 = vld [vmem:[%s695 + $0x1c] sm:$0xf]
        %v704 = vld [vmem:[%s695 + $0x20] sm:$0xf]
        %v705 = vld [vmem:[%s695 + $0x24] sm:$0xf]
        %v706 = vld [vmem:[%s695 + $0x28] sm:$0xf]
        %v707 = vld [vmem:[%s695 + $0x2c] sm:$0xf]
        %v708 = vld [vmem:[%s695 + $0x30] sm:$0xf]
        %v709 = vld [vmem:[%s695 + $0x34] sm:$0xf]
        %v710 = vld [vmem:[%s695 + $0x38] sm:$0xf]
        %v711 = vld [vmem:[%s695 + $0x3c] sm:$0xf]
        %v728 = vunpack.c.l.b16 %v696
        %v729 = vunpack.c.l.b16 %v697
        %v730 = vunpack.c.l.b16 %v698
        %v731 = vunpack.c.l.b16 %v699
        %v732 = vunpack.c.l.b16 %v700
        %v733 = vunpack.c.l.b16 %v701
        %v734 = vunpack.c.l.b16 %v702
        %v735 = vunpack.c.l.b16 %v703
        %v736 = vunpack.c.l.b16 %v704
        %v737 = vunpack.c.l.b16 %v705
        %v738 = vunpack.c.l.b16 %v706
        %v739 = vunpack.c.l.b16 %v707
        %v740 = vunpack.c.l.b16 %v708
        %v741 = vunpack.c.l.b16 %v709
        %v742 = vunpack.c.l.b16 %v710
        %v743 = vunpack.c.l.b16 %v711
        %v744 = vpack.c.b16 %v729, %v728
        %v745 = vpack.c.b16 %v731, %v730
        %v746 = vpack.c.b16 %v733, %v732
        %v747 = vpack.c.b16 %v735, %v734
        %v748 = vpack.c.b16 %v737, %v736
        %v749 = vpack.c.b16 %v739, %v738
        %v750 = vpack.c.b16 %v741, %v740
        %v751 = vpack.c.b16 %v743, %v742
        %760 = vmatpush.bf16.msra.mxu0 %v751
        %761 = vmatpush.bf16.msra.mxu0 %v750
        %762 = vmatpush.bf16.msra.mxu0 %v749
        %763 = vmatpush.bf16.msra.mxu0 %v748
        %764 = vmatpush.bf16.msra.mxu0 %v747
        %765 = vmatpush.bf16.msra.mxu0 %v746
        %766 = vmatpush.bf16.msra.mxu0 %v745
        %767 = vmatpush.bf16.msra.mxu0 %v744
        %768 = vmatmul.bf16.gmra.mxu0 %v694
        %v769 = vpop.f32.mrf.mxu0
        %v770 = vadd.f32 0.0, %v769
        %v771 = vpop.f32.mrf.mxu0
        %v772 = vadd.f32 0.0, %v771
        %773 = vdwg.mxu0
        %v774 = vadd.f32 %v688, %v770
        %v775 = vadd.f32 %v690, %v772
        %v776 = vld [vmem:[#allocation2 + $0x3] sm:$0xff]
        %v777 = vld [vmem:[#allocation2 + $0xb] sm:$0xff]
        %v778 = vpack.c.bf16 %v777, %v776
        %s779 = scalar_lea.vmem [#allocation3], 192
        %v780 = vld [vmem:[%s779] sm:$0xf]
        %v781 = vld [vmem:[%s779 + $0x4] sm:$0xf]
        %v782 = vld [vmem:[%s779 + $0x8] sm:$0xf]
        %v783 = vld [vmem:[%s779 + $0xc] sm:$0xf]
        %v784 = vld [vmem:[%s779 + $0x10] sm:$0xf]
        %v785 = vld [vmem:[%s779 + $0x14] sm:$0xf]
        %v786 = vld [vmem:[%s779 + $0x18] sm:$0xf]
        %v787 = vld [vmem:[%s779 + $0x1c] sm:$0xf]
        %v788 = vld [vmem:[%s779 + $0x20] sm:$0xf]
        %v789 = vld [vmem:[%s779 + $0x24] sm:$0xf]
        %v790 = vld [vmem:[%s779 + $0x28] sm:$0xf]
        %v791 = vld [vmem:[%s779 + $0x2c] sm:$0xf]
        %v792 = vld [vmem:[%s779 + $0x30] sm:$0xf]
        %v793 = vld [vmem:[%s779 + $0x34] sm:$0xf]
        %v794 = vld [vmem:[%s779 + $0x38] sm:$0xf]
        %v795 = vld [vmem:[%s779 + $0x3c] sm:$0xf]
        %v812 = vunpack.c.l.b16 %v780
        %v813 = vunpack.c.l.b16 %v781
        %v814 = vunpack.c.l.b16 %v782
        %v815 = vunpack.c.l.b16 %v783
        %v816 = vunpack.c.l.b16 %v784
        %v817 = vunpack.c.l.b16 %v785
        %v818 = vunpack.c.l.b16 %v786
        %v819 = vunpack.c.l.b16 %v787
        %v820 = vunpack.c.l.b16 %v788
        %v821 = vunpack.c.l.b16 %v789
        %v822 = vunpack.c.l.b16 %v790
        %v823 = vunpack.c.l.b16 %v791
        %v824 = vunpack.c.l.b16 %v792
        %v825 = vunpack.c.l.b16 %v793
        %v826 = vunpack.c.l.b16 %v794
        %v827 = vunpack.c.l.b16 %v795
        %v828 = vpack.c.b16 %v813, %v812
        %v829 = vpack.c.b16 %v815, %v814
        %v830 = vpack.c.b16 %v817, %v816
        %v831 = vpack.c.b16 %v819, %v818
        %v832 = vpack.c.b16 %v821, %v820
        %v833 = vpack.c.b16 %v823, %v822
        %v834 = vpack.c.b16 %v825, %v824
        %v835 = vpack.c.b16 %v827, %v826
        %844 = vmatpush.bf16.msra.mxu0 %v835
        %845 = vmatpush.bf16.msra.mxu0 %v834
        %846 = vmatpush.bf16.msra.mxu0 %v833
        %847 = vmatpush.bf16.msra.mxu0 %v832
        %848 = vmatpush.bf16.msra.mxu0 %v831
        %849 = vmatpush.bf16.msra.mxu0 %v830
        %850 = vmatpush.bf16.msra.mxu0 %v829
        %851 = vmatpush.bf16.msra.mxu0 %v828
        %852 = vmatmul.bf16.gmra.mxu0 %v778
        %v853 = vpop.f32.mrf.mxu0
        %v854 = vadd.f32 0.0, %v853
        %v855 = vpop.f32.mrf.mxu0
        %v856 = vadd.f32 0.0, %v855
        %857 = vdwg.mxu0
        %v858 = vadd.f32 %v774, %v854
        %v859 = vadd.f32 %v775, %v856
        %v860 = vld [vmem:[#allocation2 + $0x4] sm:$0xff]
        %v861 = vld [vmem:[#allocation2 + $0xc] sm:$0xff]
        %v862 = vpack.c.bf16 %v861, %v860
        %s863 = scalar_lea.vmem [#allocation3], 256
        %v864 = vld [vmem:[%s863] sm:$0xf]
        %v865 = vld [vmem:[%s863 + $0x4] sm:$0xf]
        %v866 = vld [vmem:[%s863 + $0x8] sm:$0xf]
        %v867 = vld [vmem:[%s863 + $0xc] sm:$0xf]
        %v868 = vld [vmem:[%s863 + $0x10] sm:$0xf]
        %v869 = vld [vmem:[%s863 + $0x14] sm:$0xf]
        %v870 = vld [vmem:[%s863 + $0x18] sm:$0xf]
        %v871 = vld [vmem:[%s863 + $0x1c] sm:$0xf]
        %v872 = vld [vmem:[%s863 + $0x20] sm:$0xf]
        %v873 = vld [vmem:[%s863 + $0x24] sm:$0xf]
        %v874 = vld [vmem:[%s863 + $0x28] sm:$0xf]
        %v875 = vld [vmem:[%s863 + $0x2c] sm:$0xf]
        %v876 = vld [vmem:[%s863 + $0x30] sm:$0xf]
        %v877 = vld [vmem:[%s863 + $0x34] sm:$0xf]
        %v878 = vld [vmem:[%s863 + $0x38] sm:$0xf]
        %v879 = vld [vmem:[%s863 + $0x3c] sm:$0xf]
        %v896 = vunpack.c.l.b16 %v864
        %v897 = vunpack.c.l.b16 %v865
        %v898 = vunpack.c.l.b16 %v866
        %v899 = vunpack.c.l.b16 %v867
        %v900 = vunpack.c.l.b16 %v868
        %v901 = vunpack.c.l.b16 %v869
        %v902 = vunpack.c.l.b16 %v870
        %v903 = vunpack.c.l.b16 %v871
        %v904 = vunpack.c.l.b16 %v872
        %v905 = vunpack.c.l.b16 %v873
        %v906 = vunpack.c.l.b16 %v874
        %v907 = vunpack.c.l.b16 %v875
        %v908 = vunpack.c.l.b16 %v876
        %v909 = vunpack.c.l.b16 %v877
        %v910 = vunpack.c.l.b16 %v878
        %v911 = vunpack.c.l.b16 %v879
        %v912 = vpack.c.b16 %v897, %v896
        %v913 = vpack.c.b16 %v899, %v898
        %v914 = vpack.c.b16 %v901, %v900
        %v915 = vpack.c.b16 %v903, %v902
        %v916 = vpack.c.b16 %v905, %v904
        %v917 = vpack.c.b16 %v907, %v906
        %v918 = vpack.c.b16 %v909, %v908
        %v919 = vpack.c.b16 %v911, %v910
        %928 = vmatpush.bf16.msra.mxu0 %v919
        %929 = vmatpush.bf16.msra.mxu0 %v918
        %930 = vmatpush.bf16.msra.mxu0 %v917
        %931 = vmatpush.bf16.msra.mxu0 %v916
        %932 = vmatpush.bf16.msra.mxu0 %v915
        %933 = vmatpush.bf16.msra.mxu0 %v914
        %934 = vmatpush.bf16.msra.mxu0 %v913
        %935 = vmatpush.bf16.msra.mxu0 %v912
        %936 = vmatmul.bf16.gmra.mxu0 %v862
        %v937 = vpop.f32.mrf.mxu0
        %v938 = vadd.f32 0.0, %v937
        %v939 = vpop.f32.mrf.mxu0
        %v940 = vadd.f32 0.0, %v939
        %941 = vdwg.mxu0
        %v942 = vadd.f32 %v858, %v938
        %v943 = vadd.f32 %v859, %v940
        %v944 = vld [vmem:[#allocation2 + $0x5] sm:$0xff]
        %v945 = vld [vmem:[#allocation2 + $0xd] sm:$0xff]
        %v946 = vpack.c.bf16 %v945, %v944
        %s947 = scalar_lea.vmem [#allocation3], 320
        %v948 = vld [vmem:[%s947] sm:$0xf]
        %v949 = vld [vmem:[%s947 + $0x4] sm:$0xf]
        %v950 = vld [vmem:[%s947 + $0x8] sm:$0xf]
        %v951 = vld [vmem:[%s947 + $0xc] sm:$0xf]
        %v952 = vld [vmem:[%s947 + $0x10] sm:$0xf]
        %v953 = vld [vmem:[%s947 + $0x14] sm:$0xf]
        %v954 = vld [vmem:[%s947 + $0x18] sm:$0xf]
        %v955 = vld [vmem:[%s947 + $0x1c] sm:$0xf]
        %v956 = vld [vmem:[%s947 + $0x20] sm:$0xf]
        %v957 = vld [vmem:[%s947 + $0x24] sm:$0xf]
        %v958 = vld [vmem:[%s947 + $0x28] sm:$0xf]
        %v959 = vld [vmem:[%s947 + $0x2c] sm:$0xf]
        %v960 = vld [vmem:[%s947 + $0x30] sm:$0xf]
        %v961 = vld [vmem:[%s947 + $0x34] sm:$0xf]
        %v962 = vld [vmem:[%s947 + $0x38] sm:$0xf]
        %v963 = vld [vmem:[%s947 + $0x3c] sm:$0xf]
        %v980 = vunpack.c.l.b16 %v948
        %v981 = vunpack.c.l.b16 %v949
        %v982 = vunpack.c.l.b16 %v950
        %v983 = vunpack.c.l.b16 %v951
        %v984 = vunpack.c.l.b16 %v952
        %v985 = vunpack.c.l.b16 %v953
        %v986 = vunpack.c.l.b16 %v954
        %v987 = vunpack.c.l.b16 %v955
        %v988 = vunpack.c.l.b16 %v956
        %v989 = vunpack.c.l.b16 %v957
        %v990 = vunpack.c.l.b16 %v958
        %v991 = vunpack.c.l.b16 %v959
        %v992 = vunpack.c.l.b16 %v960
        %v993 = vunpack.c.l.b16 %v961
        %v994 = vunpack.c.l.b16 %v962
        %v995 = vunpack.c.l.b16 %v963
        %v996 = vpack.c.b16 %v981, %v980
        %v997 = vpack.c.b16 %v983, %v982
        %v998 = vpack.c.b16 %v985, %v984
        %v999 = vpack.c.b16 %v987, %v986
        %v1000 = vpack.c.b16 %v989, %v988
        %v1001 = vpack.c.b16 %v991, %v990
        %v1002 = vpack.c.b16 %v993, %v992
        %v1003 = vpack.c.b16 %v995, %v994
        %1012 = vmatpush.bf16.msra.mxu0 %v1003
        %1013 = vmatpush.bf16.msra.mxu0 %v1002
        %1014 = vmatpush.bf16.msra.mxu0 %v1001
        %1015 = vmatpush.bf16.msra.mxu0 %v1000
        %1016 = vmatpush.bf16.msra.mxu0 %v999
        %1017 = vmatpush.bf16.msra.mxu0 %v998
        %1018 = vmatpush.bf16.msra.mxu0 %v997
        %1019 = vmatpush.bf16.msra.mxu0 %v996
        %1020 = vmatmul.bf16.gmra.mxu0 %v946
        %v1021 = vpop.f32.mrf.mxu0
        %v1022 = vadd.f32 0.0, %v1021
        %v1023 = vpop.f32.mrf.mxu0
        %v1024 = vadd.f32 0.0, %v1023
        %1025 = vdwg.mxu0
        %v1026 = vadd.f32 %v942, %v1022
        %v1027 = vadd.f32 %v943, %v1024
        %v1028 = vld [vmem:[#allocation2 + $0x6] sm:$0xff]
        %v1029 = vld [vmem:[#allocation2 + $0xe] sm:$0xff]
        %v1030 = vpack.c.bf16 %v1029, %v1028
        %s1031 = scalar_lea.vmem [#allocation3], 384
        %v1032 = vld [vmem:[%s1031] sm:$0xf]
        %v1033 = vld [vmem:[%s1031 + $0x4] sm:$0xf]
        %v1034 = vld [vmem:[%s1031 + $0x8] sm:$0xf]
        %v1035 = vld [vmem:[%s1031 + $0xc] sm:$0xf]
        %v1036 = vld [vmem:[%s1031 + $0x10] sm:$0xf]
        %v1037 = vld [vmem:[%s1031 + $0x14] sm:$0xf]
        %v1038 = vld [vmem:[%s1031 + $0x18] sm:$0xf]
        %v1039 = vld [vmem:[%s1031 + $0x1c] sm:$0xf]
        %v1040 = vld [vmem:[%s1031 + $0x20] sm:$0xf]
        %v1041 = vld [vmem:[%s1031 + $0x24] sm:$0xf]
        %v1042 = vld [vmem:[%s1031 + $0x28] sm:$0xf]
        %v1043 = vld [vmem:[%s1031 + $0x2c] sm:$0xf]
        %v1044 = vld [vmem:[%s1031 + $0x30] sm:$0xf]
        %v1045 = vld [vmem:[%s1031 + $0x34] sm:$0xf]
        %v1046 = vld [vmem:[%s1031 + $0x38] sm:$0xf]
        %v1047 = vld [vmem:[%s1031 + $0x3c] sm:$0xf]
        %v1064 = vunpack.c.l.b16 %v1032
        %v1065 = vunpack.c.l.b16 %v1033
        %v1066 = vunpack.c.l.b16 %v1034
        %v1067 = vunpack.c.l.b16 %v1035
        %v1068 = vunpack.c.l.b16 %v1036
        %v1069 = vunpack.c.l.b16 %v1037
        %v1070 = vunpack.c.l.b16 %v1038
        %v1071 = vunpack.c.l.b16 %v1039
        %v1072 = vunpack.c.l.b16 %v1040
        %v1073 = vunpack.c.l.b16 %v1041
        %v1074 = vunpack.c.l.b16 %v1042
        %v1075 = vunpack.c.l.b16 %v1043
        %v1076 = vunpack.c.l.b16 %v1044
        %v1077 = vunpack.c.l.b16 %v1045
        %v1078 = vunpack.c.l.b16 %v1046
        %v1079 = vunpack.c.l.b16 %v1047
        %v1080 = vpack.c.b16 %v1065, %v1064
        %v1081 = vpack.c.b16 %v1067, %v1066
        %v1082 = vpack.c.b16 %v1069, %v1068
        %v1083 = vpack.c.b16 %v1071, %v1070
        %v1084 = vpack.c.b16 %v1073, %v1072
        %v1085 = vpack.c.b16 %v1075, %v1074
        %v1086 = vpack.c.b16 %v1077, %v1076
        %v1087 = vpack.c.b16 %v1079, %v1078
        %1096 = vmatpush.bf16.msra.mxu0 %v1087
        %1097 = vmatpush.bf16.msra.mxu0 %v1086
        %1098 = vmatpush.bf16.msra.mxu0 %v1085
        %1099 = vmatpush.bf16.msra.mxu0 %v1084
        %1100 = vmatpush.bf16.msra.mxu0 %v1083
        %1101 = vmatpush.bf16.msra.mxu0 %v1082
        %1102 = vmatpush.bf16.msra.mxu0 %v1081
        %1103 = vmatpush.bf16.msra.mxu0 %v1080
        %1104 = vmatmul.bf16.gmra.mxu0 %v1030
        %v1105 = vpop.f32.mrf.mxu0
        %v1106 = vadd.f32 0.0, %v1105
        %v1107 = vpop.f32.mrf.mxu0
        %v1108 = vadd.f32 0.0, %v1107
        %1109 = vdwg.mxu0
        %v1110 = vadd.f32 %v1026, %v1106
        %v1111 = vadd.f32 %v1027, %v1108
        %v1112 = vld [vmem:[#allocation2 + $0x7] sm:$0xff]
        %v1113 = vld [vmem:[#allocation2 + $0xf] sm:$0xff]
        %v1114 = vpack.c.bf16 %v1113, %v1112
        %s1115 = scalar_lea.vmem [#allocation3], 448
        %v1116 = vld [vmem:[%s1115] sm:$0xf]
        %v1117 = vld [vmem:[%s1115 + $0x4] sm:$0xf]
        %v1118 = vld [vmem:[%s1115 + $0x8] sm:$0xf]
        %v1119 = vld [vmem:[%s1115 + $0xc] sm:$0xf]
        %v1120 = vld [vmem:[%s1115 + $0x10] sm:$0xf]
        %v1121 = vld [vmem:[%s1115 + $0x14] sm:$0xf]
        %v1122 = vld [vmem:[%s1115 + $0x18] sm:$0xf]
        %v1123 = vld [vmem:[%s1115 + $0x1c] sm:$0xf]
        %v1124 = vld [vmem:[%s1115 + $0x20] sm:$0xf]
        %v1125 = vld [vmem:[%s1115 + $0x24] sm:$0xf]
        %v1126 = vld [vmem:[%s1115 + $0x28] sm:$0xf]
        %v1127 = vld [vmem:[%s1115 + $0x2c] sm:$0xf]
        %v1128 = vld [vmem:[%s1115 + $0x30] sm:$0xf]
        %v1129 = vld [vmem:[%s1115 + $0x34] sm:$0xf]
        %v1130 = vld [vmem:[%s1115 + $0x38] sm:$0xf]
        %v1131 = vld [vmem:[%s1115 + $0x3c] sm:$0xf]
        %v1148 = vunpack.c.l.b16 %v1116
        %v1149 = vunpack.c.l.b16 %v1117
        %v1150 = vunpack.c.l.b16 %v1118
        %v1151 = vunpack.c.l.b16 %v1119
        %v1152 = vunpack.c.l.b16 %v1120
        %v1153 = vunpack.c.l.b16 %v1121
        %v1154 = vunpack.c.l.b16 %v1122
        %v1155 = vunpack.c.l.b16 %v1123
        %v1156 = vunpack.c.l.b16 %v1124
        %v1157 = vunpack.c.l.b16 %v1125
        %v1158 = vunpack.c.l.b16 %v1126
        %v1159 = vunpack.c.l.b16 %v1127
        %v1160 = vunpack.c.l.b16 %v1128
        %v1161 = vunpack.c.l.b16 %v1129
        %v1162 = vunpack.c.l.b16 %v1130
        %v1163 = vunpack.c.l.b16 %v1131
        %v1164 = vpack.c.b16 %v1149, %v1148
        %v1165 = vpack.c.b16 %v1151, %v1150
        %v1166 = vpack.c.b16 %v1153, %v1152
        %v1167 = vpack.c.b16 %v1155, %v1154
        %v1168 = vpack.c.b16 %v1157, %v1156
        %v1169 = vpack.c.b16 %v1159, %v1158
        %v1170 = vpack.c.b16 %v1161, %v1160
        %v1171 = vpack.c.b16 %v1163, %v1162
        %1180 = vmatpush.bf16.msra.mxu0 %v1171
        %1181 = vmatpush.bf16.msra.mxu0 %v1170
        %1182 = vmatpush.bf16.msra.mxu0 %v1169
        %1183 = vmatpush.bf16.msra.mxu0 %v1168
        %1184 = vmatpush.bf16.msra.mxu0 %v1167
        %1185 = vmatpush.bf16.msra.mxu0 %v1166
        %1186 = vmatpush.bf16.msra.mxu0 %v1165
        %1187 = vmatpush.bf16.msra.mxu0 %v1164
        %1188 = vmatmul.bf16.gmra.mxu0 %v1114
        %v1189 = vpop.f32.mrf.mxu0
        %v1190 = vadd.f32 0.0, %v1189
        %v1191 = vpop.f32.mrf.mxu0
        %v1192 = vadd.f32 0.0, %v1191
        %1193 = vdwg.mxu0
        %v1194 = vadd.f32 %v1110, %v1190
        %v1195 = vadd.f32 %v1111, %v1192
        %v1197 = vperm.slane %v510, 0
        %v1199 = vadd.f32 %v1194, %v1197
        %v1200 = vadd.f32 %v1195, %v1197
        %v1201 = vpack.c.bf16 %v1200, %v1199
        %v1202 = vld [vmem:[#allocation5] sm:$0xf]
        %v1203 = vld [vmem:[#allocation5 + $0x4] sm:$0xf]
        %v1204 = vld [vmem:[#allocation5 + $0x8] sm:$0xf]
        %v1205 = vld [vmem:[#allocation5 + $0xc] sm:$0xf]
        %v1206 = vld [vmem:[#allocation5 + $0x10] sm:$0xf]
        %v1207 = vld [vmem:[#allocation5 + $0x14] sm:$0xf]
        %v1208 = vld [vmem:[#allocation5 + $0x18] sm:$0xf]
        %v1209 = vld [vmem:[#allocation5 + $0x1c] sm:$0xf]
        %v1210 = vld [vmem:[#allocation5 + $0x20] sm:$0xf]
        %v1211 = vld [vmem:[#allocation5 + $0x24] sm:$0xf]
        %v1212 = vld [vmem:[#allocation5 + $0x28] sm:$0xf]
        %v1213 = vld [vmem:[#allocation5 + $0x2c] sm:$0xf]
        %v1214 = vld [vmem:[#allocation5 + $0x30] sm:$0xf]
        %v1215 = vld [vmem:[#allocation5 + $0x34] sm:$0xf]
        %v1216 = vld [vmem:[#allocation5 + $0x38] sm:$0xf]
        %v1217 = vld [vmem:[#allocation5 + $0x3c] sm:$0xf]
        %v1218 = vld [vmem:[%s4] sm:$0x1]
        %v1220 = vperm.slane %v1218, 0
        %v1238 = vunpack.c.l.b16 %v1202
        %v1239 = vunpack.c.l.b16 %v1203
        %v1240 = vunpack.c.l.b16 %v1204
        %v1241 = vunpack.c.l.b16 %v1205
        %v1242 = vunpack.c.l.b16 %v1206
        %v1243 = vunpack.c.l.b16 %v1207
        %v1244 = vunpack.c.l.b16 %v1208
        %v1245 = vunpack.c.l.b16 %v1209
        %v1246 = vunpack.c.l.b16 %v1210
        %v1247 = vunpack.c.l.b16 %v1211
        %v1248 = vunpack.c.l.b16 %v1212
        %v1249 = vunpack.c.l.b16 %v1213
        %v1250 = vunpack.c.l.b16 %v1214
        %v1251 = vunpack.c.l.b16 %v1215
        %v1252 = vunpack.c.l.b16 %v1216
        %v1253 = vunpack.c.l.b16 %v1217
        %v1254 = vpack.c.b16 %v1239, %v1238
        %v1255 = vpack.c.b16 %v1241, %v1240
        %v1256 = vpack.c.b16 %v1243, %v1242
        %v1257 = vpack.c.b16 %v1245, %v1244
        %v1258 = vpack.c.b16 %v1247, %v1246
        %v1259 = vpack.c.b16 %v1249, %v1248
        %v1260 = vpack.c.b16 %v1251, %v1250
        %v1261 = vpack.c.b16 %v1253, %v1252
        %1270 = vmatpush.bf16.msra.mxu0 %v1261
        %1271 = vmatpush.bf16.msra.mxu0 %v1260
        %1272 = vmatpush.bf16.msra.mxu0 %v1259
        %1273 = vmatpush.bf16.msra.mxu0 %v1258
        %1274 = vmatpush.bf16.msra.mxu0 %v1257
        %1275 = vmatpush.bf16.msra.mxu0 %v1256
        %1276 = vmatpush.bf16.msra.mxu0 %v1255
        %1277 = vmatpush.bf16.msra.mxu0 %v1254
        %1278 = vmatmul.bf16.gmra.mxu0 %v1201
        %v1279 = vpop.f32.mrf.mxu0
        %v1280 = vadd.f32 %v1220, %v1279
        %v1281 = vpop.f32.mrf.mxu0
        %v1282 = vadd.f32 %v1220, %v1281
        %1283 = vdwg.mxu0
        %v1284 = vmax.f32 %v1280, 0.0
        %v1285 = vmax.f32 %v1282, 0.0
        %v1286 = vld [vmem:[%s5] sm:$0x1]
        %v1288 = vperm.slane %v1286, 0
        %v1290 = vmul.f32 %v1284, %v1288
        %v1291 = vmul.f32 %v1285, %v1288
        %v1292 = vld [vmem:[%s6] sm:$0x1]
        %v1294 = vperm.slane %v1292, 0
        %v1296 = vadd.f32 %v1290, %v1294
        %v1297 = vadd.f32 %v1291, %v1294
        %v1298 = vld [vmem:[%s8] sm:$0x1]
        %1299 = vst [vmem:[#allocation2 + $0x4] sm:$0xff] %v1296
        %1300 = vst [vmem:[#allocation2 + $0xc] sm:$0xff] %v1297
        %v1301 = vld [vmem:[#allocation2 + $0x5] sm:$0x1]
        %1302 = vst [vmem:[#allocation2 + $0x3] sm:$0x1] %v1301
        %v1303 = vld [vmem:[#allocation2 + $0x12] sm:$0x1]
        %1304 = vst [vmem:[#allocation2 + $0x14] sm:$0x1] %v1303
        %v1305 = vld [vmem:[#allocation2 + $0x6] sm:$0x1]
        %1306 = vst [vmem:[#allocation2 + $0x2] sm:$0x1] %v1305
        %v1307 = vld [vmem:[#allocation2 + $0x11] sm:$0x1]
        %1308 = vst [vmem:[#allocation2 + $0x15] sm:$0x1] %v1307
        %v1309 = vld [vmem:[#allocation2 + $0x7] sm:$0x1]
        %1310 = vst [vmem:[#allocation2 + $0x1] sm:$0x1] %v1309
        %v1311 = vld [vmem:[#allocation2 + $0x10] sm:$0x1]
        %1312 = vst [vmem:[#allocation2 + $0x16] sm:$0x1] %v1311
        %v1313 = vld [vmem:[#allocation2 + $0x8] sm:$0x1]
        %1314 = vst [vmem:[#allocation2] sm:$0x1] %v1313
        %v1315 = vld [vmem:[#allocation2 + $0xf] sm:$0x1]
        %1316 = vst [vmem:[#allocation2 + $0x17] sm:$0x1] %v1315
        %v1317 = vld [vmem:[#allocation2] sm:$0xff]
        %v1318 = vld [vmem:[#allocation2 + $0x8] sm:$0xff]
        %v1319 = vpack.c.bf16 %v1318, %v1317
        %v1320 = vld [vmem:[#allocation7] sm:$0xf]
        %v1321 = vld [vmem:[#allocation7 + $0x4] sm:$0xf]
        %v1322 = vld [vmem:[#allocation7 + $0x8] sm:$0xf]
        %v1323 = vld [vmem:[#allocation7 + $0xc] sm:$0xf]
        %v1324 = vld [vmem:[#allocation7 + $0x10] sm:$0xf]
        %v1325 = vld [vmem:[#allocation7 + $0x14] sm:$0xf]
        %v1326 = vld [vmem:[#allocation7 + $0x18] sm:$0xf]
        %v1327 = vld [vmem:[#allocation7 + $0x1c] sm:$0xf]
        %v1328 = vld [vmem:[#allocation7 + $0x20] sm:$0xf]
        %v1329 = vld [vmem:[#allocation7 + $0x24] sm:$0xf]
        %v1330 = vld [vmem:[#allocation7 + $0x28] sm:$0xf]
        %v1331 = vld [vmem:[#allocation7 + $0x2c] sm:$0xf]
        %v1332 = vld [vmem:[#allocation7 + $0x30] sm:$0xf]
        %v1333 = vld [vmem:[#allocation7 + $0x34] sm:$0xf]
        %v1334 = vld [vmem:[#allocation7 + $0x38] sm:$0xf]
        %v1335 = vld [vmem:[#allocation7 + $0x3c] sm:$0xf]
        %v1336 = vld [vmem:[#allocation2 + $0x1] sm:$0xff]
        %v1337 = vld [vmem:[#allocation2 + $0x9] sm:$0xff]
        %v1338 = vpack.c.bf16 %v1337, %v1336
        %s1339 = scalar_lea.vmem [#allocation7], 64
        %v1340 = vld [vmem:[%s1339] sm:$0xf]
        %v1341 = vld [vmem:[%s1339 + $0x4] sm:$0xf]
        %v1342 = vld [vmem:[%s1339 + $0x8] sm:$0xf]
        %v1343 = vld [vmem:[%s1339 + $0xc] sm:$0xf]
        %v1344 = vld [vmem:[%s1339 + $0x10] sm:$0xf]
        %v1345 = vld [vmem:[%s1339 + $0x14] sm:$0xf]
        %v1346 = vld [vmem:[%s1339 + $0x18] sm:$0xf]
        %v1347 = vld [vmem:[%s1339 + $0x1c] sm:$0xf]
        %v1348 = vld [vmem:[%s1339 + $0x20] sm:$0xf]
        %v1349 = vld [vmem:[%s1339 + $0x24] sm:$0xf]
        %v1350 = vld [vmem:[%s1339 + $0x28] sm:$0xf]
        %v1351 = vld [vmem:[%s1339 + $0x2c] sm:$0xf]
        %v1352 = vld [vmem:[%s1339 + $0x30] sm:$0xf]
        %v1353 = vld [vmem:[%s1339 + $0x34] sm:$0xf]
        %v1354 = vld [vmem:[%s1339 + $0x38] sm:$0xf]
        %v1355 = vld [vmem:[%s1339 + $0x3c] sm:$0xf]
        %v1372 = vunpack.c.l.b16 %v1340
        %v1373 = vunpack.c.l.b16 %v1341
        %v1374 = vunpack.c.l.b16 %v1342
        %v1375 = vunpack.c.l.b16 %v1343
        %v1376 = vunpack.c.l.b16 %v1344
        %v1377 = vunpack.c.l.b16 %v1345
        %v1378 = vunpack.c.l.b16 %v1346
        %v1379 = vunpack.c.l.b16 %v1347
        %v1380 = vunpack.c.l.b16 %v1348
        %v1381 = vunpack.c.l.b16 %v1349
        %v1382 = vunpack.c.l.b16 %v1350
        %v1383 = vunpack.c.l.b16 %v1351
        %v1384 = vunpack.c.l.b16 %v1352
        %v1385 = vunpack.c.l.b16 %v1353
        %v1386 = vunpack.c.l.b16 %v1354
        %v1387 = vunpack.c.l.b16 %v1355
        %v1388 = vpack.c.b16 %v1373, %v1372
        %v1389 = vpack.c.b16 %v1375, %v1374
        %v1390 = vpack.c.b16 %v1377, %v1376
        %v1391 = vpack.c.b16 %v1379, %v1378
        %v1392 = vpack.c.b16 %v1381, %v1380
        %v1393 = vpack.c.b16 %v1383, %v1382
        %v1394 = vpack.c.b16 %v1385, %v1384
        %v1395 = vpack.c.b16 %v1387, %v1386
        %1404 = vmatpush.bf16.msra.mxu0 %v1395
        %1405 = vmatpush.bf16.msra.mxu0 %v1394
        %1406 = vmatpush.bf16.msra.mxu0 %v1393
        %1407 = vmatpush.bf16.msra.mxu0 %v1392
        %1408 = vmatpush.bf16.msra.mxu0 %v1391
        %1409 = vmatpush.bf16.msra.mxu0 %v1390
        %1410 = vmatpush.bf16.msra.mxu0 %v1389
        %1411 = vmatpush.bf16.msra.mxu0 %v1388
        %1412 = vmatmul.bf16.gmra.mxu0 %v1338
        %v1413 = vpop.f32.mrf.mxu0
        %v1414 = vadd.f32 0.0, %v1413
        %v1415 = vpop.f32.mrf.mxu0
        %v1416 = vadd.f32 0.0, %v1415
        %1417 = vdwg.mxu0
        %v1434 = vunpack.c.l.b16 %v1320
        %v1435 = vunpack.c.l.b16 %v1321
        %v1436 = vunpack.c.l.b16 %v1322
        %v1437 = vunpack.c.l.b16 %v1323
        %v1438 = vunpack.c.l.b16 %v1324
        %v1439 = vunpack.c.l.b16 %v1325
        %v1440 = vunpack.c.l.b16 %v1326
        %v1441 = vunpack.c.l.b16 %v1327
        %v1442 = vunpack.c.l.b16 %v1328
        %v1443 = vunpack.c.l.b16 %v1329
        %v1444 = vunpack.c.l.b16 %v1330
        %v1445 = vunpack.c.l.b16 %v1331
        %v1446 = vunpack.c.l.b16 %v1332
        %v1447 = vunpack.c.l.b16 %v1333
        %v1448 = vunpack.c.l.b16 %v1334
        %v1449 = vunpack.c.l.b16 %v1335
        %v1450 = vpack.c.b16 %v1435, %v1434
        %v1451 = vpack.c.b16 %v1437, %v1436
        %v1452 = vpack.c.b16 %v1439, %v1438
        %v1453 = vpack.c.b16 %v1441, %v1440
        %v1454 = vpack.c.b16 %v1443, %v1442
        %v1455 = vpack.c.b16 %v1445, %v1444
        %v1456 = vpack.c.b16 %v1447, %v1446
        %v1457 = vpack.c.b16 %v1449, %v1448
        %1466 = vmatpush.bf16.msra.mxu0 %v1457
        %1467 = vmatpush.bf16.msra.mxu0 %v1456
        %1468 = vmatpush.bf16.msra.mxu0 %v1455
        %1469 = vmatpush.bf16.msra.mxu0 %v1454
        %1470 = vmatpush.bf16.msra.mxu0 %v1453
        %1471 = vmatpush.bf16.msra.mxu0 %v1452
        %1472 = vmatpush.bf16.msra.mxu0 %v1451
        %1473 = vmatpush.bf16.msra.mxu0 %v1450
        %1474 = vmatmul.bf16.gmra.mxu0 %v1319
        %v1475 = vpop.f32.mrf.mxu0
        %v1476 = vadd.f32 %v1414, %v1475
        %v1477 = vpop.f32.mrf.mxu0
        %v1478 = vadd.f32 %v1416, %v1477
        %1479 = vdwg.mxu0
        %v1480 = vld [vmem:[#allocation2 + $0x2] sm:$0xff]
        %v1481 = vld [vmem:[#allocation2 + $0xa] sm:$0xff]
        %v1482 = vpack.c.bf16 %v1481, %v1480
        %s1483 = scalar_lea.vmem [#allocation7], 128
        %v1484 = vld [vmem:[%s1483] sm:$0xf]
        %v1485 = vld [vmem:[%s1483 + $0x4] sm:$0xf]
        %v1486 = vld [vmem:[%s1483 + $0x8] sm:$0xf]
        %v1487 = vld [vmem:[%s1483 + $0xc] sm:$0xf]
        %v1488 = vld [vmem:[%s1483 + $0x10] sm:$0xf]
        %v1489 = vld [vmem:[%s1483 + $0x14] sm:$0xf]
        %v1490 = vld [vmem:[%s1483 + $0x18] sm:$0xf]
        %v1491 = vld [vmem:[%s1483 + $0x1c] sm:$0xf]
        %v1492 = vld [vmem:[%s1483 + $0x20] sm:$0xf]
        %v1493 = vld [vmem:[%s1483 + $0x24] sm:$0xf]
        %v1494 = vld [vmem:[%s1483 + $0x28] sm:$0xf]
        %v1495 = vld [vmem:[%s1483 + $0x2c] sm:$0xf]
        %v1496 = vld [vmem:[%s1483 + $0x30] sm:$0xf]
        %v1497 = vld [vmem:[%s1483 + $0x34] sm:$0xf]
        %v1498 = vld [vmem:[%s1483 + $0x38] sm:$0xf]
        %v1499 = vld [vmem:[%s1483 + $0x3c] sm:$0xf]
        %v1516 = vunpack.c.l.b16 %v1484
        %v1517 = vunpack.c.l.b16 %v1485
        %v1518 = vunpack.c.l.b16 %v1486
        %v1519 = vunpack.c.l.b16 %v1487
        %v1520 = vunpack.c.l.b16 %v1488
        %v1521 = vunpack.c.l.b16 %v1489
        %v1522 = vunpack.c.l.b16 %v1490
        %v1523 = vunpack.c.l.b16 %v1491
        %v1524 = vunpack.c.l.b16 %v1492
        %v1525 = vunpack.c.l.b16 %v1493
        %v1526 = vunpack.c.l.b16 %v1494
        %v1527 = vunpack.c.l.b16 %v1495
        %v1528 = vunpack.c.l.b16 %v1496
        %v1529 = vunpack.c.l.b16 %v1497
        %v1530 = vunpack.c.l.b16 %v1498
        %v1531 = vunpack.c.l.b16 %v1499
        %v1532 = vpack.c.b16 %v1517, %v1516
        %v1533 = vpack.c.b16 %v1519, %v1518
        %v1534 = vpack.c.b16 %v1521, %v1520
        %v1535 = vpack.c.b16 %v1523, %v1522
        %v1536 = vpack.c.b16 %v1525, %v1524
        %v1537 = vpack.c.b16 %v1527, %v1526
        %v1538 = vpack.c.b16 %v1529, %v1528
        %v1539 = vpack.c.b16 %v1531, %v1530
        %1548 = vmatpush.bf16.msra.mxu0 %v1539
        %1549 = vmatpush.bf16.msra.mxu0 %v1538
        %1550 = vmatpush.bf16.msra.mxu0 %v1537
        %1551 = vmatpush.bf16.msra.mxu0 %v1536
        %1552 = vmatpush.bf16.msra.mxu0 %v1535
        %1553 = vmatpush.bf16.msra.mxu0 %v1534
        %1554 = vmatpush.bf16.msra.mxu0 %v1533
        %1555 = vmatpush.bf16.msra.mxu0 %v1532
        %1556 = vmatmul.bf16.gmra.mxu0 %v1482
        %v1557 = vpop.f32.mrf.mxu0
        %v1558 = vadd.f32 0.0, %v1557
        %v1559 = vpop.f32.mrf.mxu0
        %v1560 = vadd.f32 0.0, %v1559
        %1561 = vdwg.mxu0
        %v1562 = vadd.f32 %v1476, %v1558
        %v1563 = vadd.f32 %v1478, %v1560
        %v1564 = vld [vmem:[#allocation2 + $0x3] sm:$0xff]
        %v1565 = vld [vmem:[#allocation2 + $0xb] sm:$0xff]
        %v1566 = vpack.c.bf16 %v1565, %v1564
        %s1567 = scalar_lea.vmem [#allocation7], 192
        %v1568 = vld [vmem:[%s1567] sm:$0xf]
        %v1569 = vld [vmem:[%s1567 + $0x4] sm:$0xf]
        %v1570 = vld [vmem:[%s1567 + $0x8] sm:$0xf]
        %v1571 = vld [vmem:[%s1567 + $0xc] sm:$0xf]
        %v1572 = vld [vmem:[%s1567 + $0x10] sm:$0xf]
        %v1573 = vld [vmem:[%s1567 + $0x14] sm:$0xf]
        %v1574 = vld [vmem:[%s1567 + $0x18] sm:$0xf]
        %v1575 = vld [vmem:[%s1567 + $0x1c] sm:$0xf]
        %v1576 = vld [vmem:[%s1567 + $0x20] sm:$0xf]
        %v1577 = vld [vmem:[%s1567 + $0x24] sm:$0xf]
        %v1578 = vld [vmem:[%s1567 + $0x28] sm:$0xf]
        %v1579 = vld [vmem:[%s1567 + $0x2c] sm:$0xf]
        %v1580 = vld [vmem:[%s1567 + $0x30] sm:$0xf]
        %v1581 = vld [vmem:[%s1567 + $0x34] sm:$0xf]
        %v1582 = vld [vmem:[%s1567 + $0x38] sm:$0xf]
        %v1583 = vld [vmem:[%s1567 + $0x3c] sm:$0xf]
        %v1600 = vunpack.c.l.b16 %v1568
        %v1601 = vunpack.c.l.b16 %v1569
        %v1602 = vunpack.c.l.b16 %v1570
        %v1603 = vunpack.c.l.b16 %v1571
        %v1604 = vunpack.c.l.b16 %v1572
        %v1605 = vunpack.c.l.b16 %v1573
        %v1606 = vunpack.c.l.b16 %v1574
        %v1607 = vunpack.c.l.b16 %v1575
        %v1608 = vunpack.c.l.b16 %v1576
        %v1609 = vunpack.c.l.b16 %v1577
        %v1610 = vunpack.c.l.b16 %v1578
        %v1611 = vunpack.c.l.b16 %v1579
        %v1612 = vunpack.c.l.b16 %v1580
        %v1613 = vunpack.c.l.b16 %v1581
        %v1614 = vunpack.c.l.b16 %v1582
        %v1615 = vunpack.c.l.b16 %v1583
        %v1616 = vpack.c.b16 %v1601, %v1600
        %v1617 = vpack.c.b16 %v1603, %v1602
        %v1618 = vpack.c.b16 %v1605, %v1604
        %v1619 = vpack.c.b16 %v1607, %v1606
        %v1620 = vpack.c.b16 %v1609, %v1608
        %v1621 = vpack.c.b16 %v1611, %v1610
        %v1622 = vpack.c.b16 %v1613, %v1612
        %v1623 = vpack.c.b16 %v1615, %v1614
        %1632 = vmatpush.bf16.msra.mxu0 %v1623
        %1633 = vmatpush.bf16.msra.mxu0 %v1622
        %1634 = vmatpush.bf16.msra.mxu0 %v1621
        %1635 = vmatpush.bf16.msra.mxu0 %v1620
        %1636 = vmatpush.bf16.msra.mxu0 %v1619
        %1637 = vmatpush.bf16.msra.mxu0 %v1618
        %1638 = vmatpush.bf16.msra.mxu0 %v1617
        %1639 = vmatpush.bf16.msra.mxu0 %v1616
        %1640 = vmatmul.bf16.gmra.mxu0 %v1566
        %v1641 = vpop.f32.mrf.mxu0
        %v1642 = vadd.f32 0.0, %v1641
        %v1643 = vpop.f32.mrf.mxu0
        %v1644 = vadd.f32 0.0, %v1643
        %1645 = vdwg.mxu0
        %v1646 = vadd.f32 %v1562, %v1642
        %v1647 = vadd.f32 %v1563, %v1644
        %v1648 = vld [vmem:[#allocation2 + $0x4] sm:$0xff]
        %v1649 = vld [vmem:[#allocation2 + $0xc] sm:$0xff]
        %v1650 = vpack.c.bf16 %v1649, %v1648
        %s1651 = scalar_lea.vmem [#allocation7], 256
        %v1652 = vld [vmem:[%s1651] sm:$0xf]
        %v1653 = vld [vmem:[%s1651 + $0x4] sm:$0xf]
        %v1654 = vld [vmem:[%s1651 + $0x8] sm:$0xf]
        %v1655 = vld [vmem:[%s1651 + $0xc] sm:$0xf]
        %v1656 = vld [vmem:[%s1651 + $0x10] sm:$0xf]
        %v1657 = vld [vmem:[%s1651 + $0x14] sm:$0xf]
        %v1658 = vld [vmem:[%s1651 + $0x18] sm:$0xf]
        %v1659 = vld [vmem:[%s1651 + $0x1c] sm:$0xf]
        %v1660 = vld [vmem:[%s1651 + $0x20] sm:$0xf]
        %v1661 = vld [vmem:[%s1651 + $0x24] sm:$0xf]
        %v1662 = vld [vmem:[%s1651 + $0x28] sm:$0xf]
        %v1663 = vld [vmem:[%s1651 + $0x2c] sm:$0xf]
        %v1664 = vld [vmem:[%s1651 + $0x30] sm:$0xf]
        %v1665 = vld [vmem:[%s1651 + $0x34] sm:$0xf]
        %v1666 = vld [vmem:[%s1651 + $0x38] sm:$0xf]
        %v1667 = vld [vmem:[%s1651 + $0x3c] sm:$0xf]
        %v1684 = vunpack.c.l.b16 %v1652
        %v1685 = vunpack.c.l.b16 %v1653
        %v1686 = vunpack.c.l.b16 %v1654
        %v1687 = vunpack.c.l.b16 %v1655
        %v1688 = vunpack.c.l.b16 %v1656
        %v1689 = vunpack.c.l.b16 %v1657
        %v1690 = vunpack.c.l.b16 %v1658
        %v1691 = vunpack.c.l.b16 %v1659
        %v1692 = vunpack.c.l.b16 %v1660
        %v1693 = vunpack.c.l.b16 %v1661
        %v1694 = vunpack.c.l.b16 %v1662
        %v1695 = vunpack.c.l.b16 %v1663
        %v1696 = vunpack.c.l.b16 %v1664
        %v1697 = vunpack.c.l.b16 %v1665
        %v1698 = vunpack.c.l.b16 %v1666
        %v1699 = vunpack.c.l.b16 %v1667
        %v1700 = vpack.c.b16 %v1685, %v1684
        %v1701 = vpack.c.b16 %v1687, %v1686
        %v1702 = vpack.c.b16 %v1689, %v1688
        %v1703 = vpack.c.b16 %v1691, %v1690
        %v1704 = vpack.c.b16 %v1693, %v1692
        %v1705 = vpack.c.b16 %v1695, %v1694
        %v1706 = vpack.c.b16 %v1697, %v1696
        %v1707 = vpack.c.b16 %v1699, %v1698
        %1716 = vmatpush.bf16.msra.mxu0 %v1707
        %1717 = vmatpush.bf16.msra.mxu0 %v1706
        %1718 = vmatpush.bf16.msra.mxu0 %v1705
        %1719 = vmatpush.bf16.msra.mxu0 %v1704
        %1720 = vmatpush.bf16.msra.mxu0 %v1703
        %1721 = vmatpush.bf16.msra.mxu0 %v1702
        %1722 = vmatpush.bf16.msra.mxu0 %v1701
        %1723 = vmatpush.bf16.msra.mxu0 %v1700
        %1724 = vmatmul.bf16.gmra.mxu0 %v1650
        %v1725 = vpop.f32.mrf.mxu0
        %v1726 = vadd.f32 0.0, %v1725
        %v1727 = vpop.f32.mrf.mxu0
        %v1728 = vadd.f32 0.0, %v1727
        %1729 = vdwg.mxu0
        %v1730 = vadd.f32 %v1646, %v1726
        %v1731 = vadd.f32 %v1647, %v1728
        %v1732 = vld [vmem:[#allocation2 + $0x5] sm:$0xff]
        %v1733 = vld [vmem:[#allocation2 + $0xd] sm:$0xff]
        %v1734 = vpack.c.bf16 %v1733, %v1732
        %s1735 = scalar_lea.vmem [#allocation7], 320
        %v1736 = vld [vmem:[%s1735] sm:$0xf]
        %v1737 = vld [vmem:[%s1735 + $0x4] sm:$0xf]
        %v1738 = vld [vmem:[%s1735 + $0x8] sm:$0xf]
        %v1739 = vld [vmem:[%s1735 + $0xc] sm:$0xf]
        %v1740 = vld [vmem:[%s1735 + $0x10] sm:$0xf]
        %v1741 = vld [vmem:[%s1735 + $0x14] sm:$0xf]
        %v1742 = vld [vmem:[%s1735 + $0x18] sm:$0xf]
        %v1743 = vld [vmem:[%s1735 + $0x1c] sm:$0xf]
        %v1744 = vld [vmem:[%s1735 + $0x20] sm:$0xf]
        %v1745 = vld [vmem:[%s1735 + $0x24] sm:$0xf]
        %v1746 = vld [vmem:[%s1735 + $0x28] sm:$0xf]
        %v1747 = vld [vmem:[%s1735 + $0x2c] sm:$0xf]
        %v1748 = vld [vmem:[%s1735 + $0x30] sm:$0xf]
        %v1749 = vld [vmem:[%s1735 + $0x34] sm:$0xf]
        %v1750 = vld [vmem:[%s1735 + $0x38] sm:$0xf]
        %v1751 = vld [vmem:[%s1735 + $0x3c] sm:$0xf]
        %v1768 = vunpack.c.l.b16 %v1736
        %v1769 = vunpack.c.l.b16 %v1737
        %v1770 = vunpack.c.l.b16 %v1738
        %v1771 = vunpack.c.l.b16 %v1739
        %v1772 = vunpack.c.l.b16 %v1740
        %v1773 = vunpack.c.l.b16 %v1741
        %v1774 = vunpack.c.l.b16 %v1742
        %v1775 = vunpack.c.l.b16 %v1743
        %v1776 = vunpack.c.l.b16 %v1744
        %v1777 = vunpack.c.l.b16 %v1745
        %v1778 = vunpack.c.l.b16 %v1746
        %v1779 = vunpack.c.l.b16 %v1747
        %v1780 = vunpack.c.l.b16 %v1748
        %v1781 = vunpack.c.l.b16 %v1749
        %v1782 = vunpack.c.l.b16 %v1750
        %v1783 = vunpack.c.l.b16 %v1751
        %v1784 = vpack.c.b16 %v1769, %v1768
        %v1785 = vpack.c.b16 %v1771, %v1770
        %v1786 = vpack.c.b16 %v1773, %v1772
        %v1787 = vpack.c.b16 %v1775, %v1774
        %v1788 = vpack.c.b16 %v1777, %v1776
        %v1789 = vpack.c.b16 %v1779, %v1778
        %v1790 = vpack.c.b16 %v1781, %v1780
        %v1791 = vpack.c.b16 %v1783, %v1782
        %1800 = vmatpush.bf16.msra.mxu0 %v1791
        %1801 = vmatpush.bf16.msra.mxu0 %v1790
        %1802 = vmatpush.bf16.msra.mxu0 %v1789
        %1803 = vmatpush.bf16.msra.mxu0 %v1788
        %1804 = vmatpush.bf16.msra.mxu0 %v1787
        %1805 = vmatpush.bf16.msra.mxu0 %v1786
        %1806 = vmatpush.bf16.msra.mxu0 %v1785
        %1807 = vmatpush.bf16.msra.mxu0 %v1784
        %1808 = vmatmul.bf16.gmra.mxu0 %v1734
        %v1809 = vpop.f32.mrf.mxu0
        %v1810 = vadd.f32 0.0, %v1809
        %v1811 = vpop.f32.mrf.mxu0
        %v1812 = vadd.f32 0.0, %v1811
        %1813 = vdwg.mxu0
        %v1814 = vadd.f32 %v1730, %v1810
        %v1815 = vadd.f32 %v1731, %v1812
        %v1816 = vld [vmem:[#allocation2 + $0x6] sm:$0xff]
        %v1817 = vld [vmem:[#allocation2 + $0xe] sm:$0xff]
        %v1818 = vpack.c.bf16 %v1817, %v1816
        %s1819 = scalar_lea.vmem [#allocation7], 384
        %v1820 = vld [vmem:[%s1819] sm:$0xf]
        %v1821 = vld [vmem:[%s1819 + $0x4] sm:$0xf]
        %v1822 = vld [vmem:[%s1819 + $0x8] sm:$0xf]
        %v1823 = vld [vmem:[%s1819 + $0xc] sm:$0xf]
        %v1824 = vld [vmem:[%s1819 + $0x10] sm:$0xf]
        %v1825 = vld [vmem:[%s1819 + $0x14] sm:$0xf]
        %v1826 = vld [vmem:[%s1819 + $0x18] sm:$0xf]
        %v1827 = vld [vmem:[%s1819 + $0x1c] sm:$0xf]
        %v1828 = vld [vmem:[%s1819 + $0x20] sm:$0xf]
        %v1829 = vld [vmem:[%s1819 + $0x24] sm:$0xf]
        %v1830 = vld [vmem:[%s1819 + $0x28] sm:$0xf]
        %v1831 = vld [vmem:[%s1819 + $0x2c] sm:$0xf]
        %v1832 = vld [vmem:[%s1819 + $0x30] sm:$0xf]
        %v1833 = vld [vmem:[%s1819 + $0x34] sm:$0xf]
        %v1834 = vld [vmem:[%s1819 + $0x38] sm:$0xf]
        %v1835 = vld [vmem:[%s1819 + $0x3c] sm:$0xf]
        %v1852 = vunpack.c.l.b16 %v1820
        %v1853 = vunpack.c.l.b16 %v1821
        %v1854 = vunpack.c.l.b16 %v1822
        %v1855 = vunpack.c.l.b16 %v1823
        %v1856 = vunpack.c.l.b16 %v1824
        %v1857 = vunpack.c.l.b16 %v1825
        %v1858 = vunpack.c.l.b16 %v1826
        %v1859 = vunpack.c.l.b16 %v1827
        %v1860 = vunpack.c.l.b16 %v1828
        %v1861 = vunpack.c.l.b16 %v1829
        %v1862 = vunpack.c.l.b16 %v1830
        %v1863 = vunpack.c.l.b16 %v1831
        %v1864 = vunpack.c.l.b16 %v1832
        %v1865 = vunpack.c.l.b16 %v1833
        %v1866 = vunpack.c.l.b16 %v1834
        %v1867 = vunpack.c.l.b16 %v1835
        %v1868 = vpack.c.b16 %v1853, %v1852
        %v1869 = vpack.c.b16 %v1855, %v1854
        %v1870 = vpack.c.b16 %v1857, %v1856
        %v1871 = vpack.c.b16 %v1859, %v1858
        %v1872 = vpack.c.b16 %v1861, %v1860
        %v1873 = vpack.c.b16 %v1863, %v1862
        %v1874 = vpack.c.b16 %v1865, %v1864
        %v1875 = vpack.c.b16 %v1867, %v1866
        %1884 = vmatpush.bf16.msra.mxu0 %v1875
        %1885 = vmatpush.bf16.msra.mxu0 %v1874
        %1886 = vmatpush.bf16.msra.mxu0 %v1873
        %1887 = vmatpush.bf16.msra.mxu0 %v1872
        %1888 = vmatpush.bf16.msra.mxu0 %v1871
        %1889 = vmatpush.bf16.msra.mxu0 %v1870
        %1890 = vmatpush.bf16.msra.mxu0 %v1869
        %1891 = vmatpush.bf16.msra.mxu0 %v1868
        %1892 = vmatmul.bf16.gmra.mxu0 %v1818
        %v1893 = vpop.f32.mrf.mxu0
        %v1894 = vadd.f32 0.0, %v1893
        %v1895 = vpop.f32.mrf.mxu0
        %v1896 = vadd.f32 0.0, %v1895
        %1897 = vdwg.mxu0
        %v1898 = vadd.f32 %v1814, %v1894
        %v1899 = vadd.f32 %v1815, %v1896
        %v1900 = vld [vmem:[#allocation2 + $0x7] sm:$0xff]
        %v1901 = vld [vmem:[#allocation2 + $0xf] sm:$0xff]
        %v1902 = vpack.c.bf16 %v1901, %v1900
        %s1903 = scalar_lea.vmem [#allocation7], 448
        %v1904 = vld [vmem:[%s1903] sm:$0xf]
        %v1905 = vld [vmem:[%s1903 + $0x4] sm:$0xf]
        %v1906 = vld [vmem:[%s1903 + $0x8] sm:$0xf]
        %v1907 = vld [vmem:[%s1903 + $0xc] sm:$0xf]
        %v1908 = vld [vmem:[%s1903 + $0x10] sm:$0xf]
        %v1909 = vld [vmem:[%s1903 + $0x14] sm:$0xf]
        %v1910 = vld [vmem:[%s1903 + $0x18] sm:$0xf]
        %v1911 = vld [vmem:[%s1903 + $0x1c] sm:$0xf]
        %v1912 = vld [vmem:[%s1903 + $0x20] sm:$0xf]
        %v1913 = vld [vmem:[%s1903 + $0x24] sm:$0xf]
        %v1914 = vld [vmem:[%s1903 + $0x28] sm:$0xf]
        %v1915 = vld [vmem:[%s1903 + $0x2c] sm:$0xf]
        %v1916 = vld [vmem:[%s1903 + $0x30] sm:$0xf]
        %v1917 = vld [vmem:[%s1903 + $0x34] sm:$0xf]
        %v1918 = vld [vmem:[%s1903 + $0x38] sm:$0xf]
        %v1919 = vld [vmem:[%s1903 + $0x3c] sm:$0xf]
        %v1936 = vunpack.c.l.b16 %v1904
        %v1937 = vunpack.c.l.b16 %v1905
        %v1938 = vunpack.c.l.b16 %v1906
        %v1939 = vunpack.c.l.b16 %v1907
        %v1940 = vunpack.c.l.b16 %v1908
        %v1941 = vunpack.c.l.b16 %v1909
        %v1942 = vunpack.c.l.b16 %v1910
        %v1943 = vunpack.c.l.b16 %v1911
        %v1944 = vunpack.c.l.b16 %v1912
        %v1945 = vunpack.c.l.b16 %v1913
        %v1946 = vunpack.c.l.b16 %v1914
        %v1947 = vunpack.c.l.b16 %v1915
        %v1948 = vunpack.c.l.b16 %v1916
        %v1949 = vunpack.c.l.b16 %v1917
        %v1950 = vunpack.c.l.b16 %v1918
        %v1951 = vunpack.c.l.b16 %v1919
        %v1952 = vpack.c.b16 %v1937, %v1936
        %v1953 = vpack.c.b16 %v1939, %v1938
        %v1954 = vpack.c.b16 %v1941, %v1940
        %v1955 = vpack.c.b16 %v1943, %v1942
        %v1956 = vpack.c.b16 %v1945, %v1944
        %v1957 = vpack.c.b16 %v1947, %v1946
        %v1958 = vpack.c.b16 %v1949, %v1948
        %v1959 = vpack.c.b16 %v1951, %v1950
        %1968 = vmatpush.bf16.msra.mxu0 %v1959
        %1969 = vmatpush.bf16.msra.mxu0 %v1958
        %1970 = vmatpush.bf16.msra.mxu0 %v1957
        %1971 = vmatpush.bf16.msra.mxu0 %v1956
        %1972 = vmatpush.bf16.msra.mxu0 %v1955
        %1973 = vmatpush.bf16.msra.mxu0 %v1954
        %1974 = vmatpush.bf16.msra.mxu0 %v1953
        %1975 = vmatpush.bf16.msra.mxu0 %v1952
        %1976 = vmatmul.bf16.gmra.mxu0 %v1902
        %v1977 = vpop.f32.mrf.mxu0
        %v1978 = vadd.f32 0.0, %v1977
        %v1979 = vpop.f32.mrf.mxu0
        %v1980 = vadd.f32 0.0, %v1979
        %1981 = vdwg.mxu0
        %v1982 = vadd.f32 %v1898, %v1978
        %v1983 = vadd.f32 %v1899, %v1980
        %v1985 = vperm.slane %v1298, 0
        %v1987 = vadd.f32 %v1982, %v1985
        %v1988 = vadd.f32 %v1983, %v1985
        %v1989 = vadd.f32 %v1199, %v1987
        %v1990 = vadd.f32 %v1200, %v1988
        %v1991 = vpack.c.bf16 %v1990, %v1989
        %s1992 = scalar_lea.vmem [#allocation5], 64
        %v1993 = vld [vmem:[%s1992] sm:$0xf]
        %v1994 = vld [vmem:[%s1992 + $0x4] sm:$0xf]
        %v1995 = vld [vmem:[%s1992 + $0x8] sm:$0xf]
        %v1996 = vld [vmem:[%s1992 + $0xc] sm:$0xf]
        %v1997 = vld [vmem:[%s1992 + $0x10] sm:$0xf]
        %v1998 = vld [vmem:[%s1992 + $0x14] sm:$0xf]
        %v1999 = vld [vmem:[%s1992 + $0x18] sm:$0xf]
        %v2000 = vld [vmem:[%s1992 + $0x1c] sm:$0xf]
        %v2001 = vld [vmem:[%s1992 + $0x20] sm:$0xf]
        %v2002 = vld [vmem:[%s1992 + $0x24] sm:$0xf]
        %v2003 = vld [vmem:[%s1992 + $0x28] sm:$0xf]
        %v2004 = vld [vmem:[%s1992 + $0x2c] sm:$0xf]
        %v2005 = vld [vmem:[%s1992 + $0x30] sm:$0xf]
        %v2006 = vld [vmem:[%s1992 + $0x34] sm:$0xf]
        %v2007 = vld [vmem:[%s1992 + $0x38] sm:$0xf]
        %v2008 = vld [vmem:[%s1992 + $0x3c] sm:$0xf]
        %s2009 = scalar_lea.vmem %s4, 1
        %v2010 = vld [vmem:[%s2009] sm:$0x1]
        %v2012 = vperm.slane %v2010, 0
        %v2030 = vunpack.c.l.b16 %v1993
        %v2031 = vunpack.c.l.b16 %v1994
        %v2032 = vunpack.c.l.b16 %v1995
        %v2033 = vunpack.c.l.b16 %v1996
        %v2034 = vunpack.c.l.b16 %v1997
        %v2035 = vunpack.c.l.b16 %v1998
        %v2036 = vunpack.c.l.b16 %v1999
        %v2037 = vunpack.c.l.b16 %v2000
        %v2038 = vunpack.c.l.b16 %v2001
        %v2039 = vunpack.c.l.b16 %v2002
        %v2040 = vunpack.c.l.b16 %v2003
        %v2041 = vunpack.c.l.b16 %v2004
        %v2042 = vunpack.c.l.b16 %v2005
        %v2043 = vunpack.c.l.b16 %v2006
        %v2044 = vunpack.c.l.b16 %v2007
        %v2045 = vunpack.c.l.b16 %v2008
        %v2046 = vpack.c.b16 %v2031, %v2030
        %v2047 = vpack.c.b16 %v2033, %v2032
        %v2048 = vpack.c.b16 %v2035, %v2034
        %v2049 = vpack.c.b16 %v2037, %v2036
        %v2050 = vpack.c.b16 %v2039, %v2038
        %v2051 = vpack.c.b16 %v2041, %v2040
        %v2052 = vpack.c.b16 %v2043, %v2042
        %v2053 = vpack.c.b16 %v2045, %v2044
        %2062 = vmatpush.bf16.msra.mxu0 %v2053
        %2063 = vmatpush.bf16.msra.mxu0 %v2052
        %2064 = vmatpush.bf16.msra.mxu0 %v2051
        %2065 = vmatpush.bf16.msra.mxu0 %v2050
        %2066 = vmatpush.bf16.msra.mxu0 %v2049
        %2067 = vmatpush.bf16.msra.mxu0 %v2048
        %2068 = vmatpush.bf16.msra.mxu0 %v2047
        %2069 = vmatpush.bf16.msra.mxu0 %v2046
        %2070 = vmatmul.bf16.gmra.mxu0 %v1991
        %v2071 = vpop.f32.mrf.mxu0
        %v2072 = vadd.f32 %v2012, %v2071
        %v2073 = vpop.f32.mrf.mxu0
        %v2074 = vadd.f32 %v2012, %v2073
        %2075 = vdwg.mxu0
        %v2076 = vmax.f32 %v2072, 0.0
        %v2077 = vmax.f32 %v2074, 0.0
        %s2078 = scalar_lea.vmem %s5, 1
        %v2079 = vld [vmem:[%s2078] sm:$0x1]
        %v2081 = vperm.slane %v2079, 0
        %v2083 = vmul.f32 %v2076, %v2081
        %v2084 = vmul.f32 %v2077, %v2081
        %s2085 = scalar_lea.vmem %s6, 1
        %v2086 = vld [vmem:[%s2085] sm:$0x1]
        %v2088 = vperm.slane %v2086, 0
        %v2090 = vadd.f32 %v2083, %v2088
        %v2091 = vadd.f32 %v2084, %v2088
        %s2092 = scalar_lea.vmem %s8, 1
        %v2093 = vld [vmem:[%s2092] sm:$0x1]
        %2094 = vst [vmem:[#allocation2 + $0x4] sm:$0xff] %v2090
        %2095 = vst [vmem:[#allocation2 + $0xc] sm:$0xff] %v2091
        %v2096 = vld [vmem:[#allocation2 + $0x5] sm:$0x1]
        %2097 = vst [vmem:[#allocation2 + $0x3] sm:$0x1] %v2096
        %v2098 = vld [vmem:[#allocation2 + $0x12] sm:$0x1]
        %2099 = vst [vmem:[#allocation2 + $0x14] sm:$0x1] %v2098
        %v2100 = vld [vmem:[#allocation2 + $0x6] sm:$0x1]
        %2101 = vst [vmem:[#allocation2 + $0x2] sm:$0x1] %v2100
        %v2102 = vld [vmem:[#allocation2 + $0x11] sm:$0x1]
        %2103 = vst [vmem:[#allocation2 + $0x15] sm:$0x1] %v2102
        %v2104 = vld [vmem:[#allocation2 + $0x7] sm:$0x1]
        %2105 = vst [vmem:[#allocation2 + $0x1] sm:$0x1] %v2104
        %v2106 = vld [vmem:[#allocation2 + $0x10] sm:$0x1]
        %2107 = vst [vmem:[#allocation2 + $0x16] sm:$0x1] %v2106
        %v2108 = vld [vmem:[#allocation2 + $0x8] sm:$0x1]
        %2109 = vst [vmem:[#allocation2] sm:$0x1] %v2108
        %v2110 = vld [vmem:[#allocation2 + $0xf] sm:$0x1]
        %2111 = vst [vmem:[#allocation2 + $0x17] sm:$0x1] %v2110
        %v2112 = vld [vmem:[#allocation2] sm:$0xff]
        %v2113 = vld [vmem:[#allocation2 + $0x8] sm:$0xff]
        %v2114 = vpack.c.bf16 %v2113, %v2112
        %s2115 = scalar_lea.vmem [#allocation7], 512
        %v2116 = vld [vmem:[%s2115] sm:$0xf]
        %v2117 = vld [vmem:[%s2115 + $0x4] sm:$0xf]
        %v2118 = vld [vmem:[%s2115 + $0x8] sm:$0xf]
        %v2119 = vld [vmem:[%s2115 + $0xc] sm:$0xf]
        %v2120 = vld [vmem:[%s2115 + $0x10] sm:$0xf]
        %v2121 = vld [vmem:[%s2115 + $0x14] sm:$0xf]
        %v2122 = vld [vmem:[%s2115 + $0x18] sm:$0xf]
        %v2123 = vld [vmem:[%s2115 + $0x1c] sm:$0xf]
        %v2124 = vld [vmem:[%s2115 + $0x20] sm:$0xf]
        %v2125 = vld [vmem:[%s2115 + $0x24] sm:$0xf]
        %v2126 = vld [vmem:[%s2115 + $0x28] sm:$0xf]
        %v2127 = vld [vmem:[%s2115 + $0x2c] sm:$0xf]
        %v2128 = vld [vmem:[%s2115 + $0x30] sm:$0xf]
        %v2129 = vld [vmem:[%s2115 + $0x34] sm:$0xf]
        %v2130 = vld [vmem:[%s2115 + $0x38] sm:$0xf]
        %v2131 = vld [vmem:[%s2115 + $0x3c] sm:$0xf]
        %v2132 = vld [vmem:[#allocation2 + $0x1] sm:$0xff]
        %v2133 = vld [vmem:[#allocation2 + $0x9] sm:$0xff]
        %v2134 = vpack.c.bf16 %v2133, %v2132
        %s2135 = scalar_lea.vmem [#allocation7], 576
        %v2136 = vld [vmem:[%s2135] sm:$0xf]
        %v2137 = vld [vmem:[%s2135 + $0x4] sm:$0xf]
        %v2138 = vld [vmem:[%s2135 + $0x8] sm:$0xf]
        %v2139 = vld [vmem:[%s2135 + $0xc] sm:$0xf]
        %v2140 = vld [vmem:[%s2135 + $0x10] sm:$0xf]
        %v2141 = vld [vmem:[%s2135 + $0x14] sm:$0xf]
        %v2142 = vld [vmem:[%s2135 + $0x18] sm:$0xf]
        %v2143 = vld [vmem:[%s2135 + $0x1c] sm:$0xf]
        %v2144 = vld [vmem:[%s2135 + $0x20] sm:$0xf]
        %v2145 = vld [vmem:[%s2135 + $0x24] sm:$0xf]
        %v2146 = vld [vmem:[%s2135 + $0x28] sm:$0xf]
        %v2147 = vld [vmem:[%s2135 + $0x2c] sm:$0xf]
        %v2148 = vld [vmem:[%s2135 + $0x30] sm:$0xf]
        %v2149 = vld [vmem:[%s2135 + $0x34] sm:$0xf]
        %v2150 = vld [vmem:[%s2135 + $0x38] sm:$0xf]
        %v2151 = vld [vmem:[%s2135 + $0x3c] sm:$0xf]
        %v2168 = vunpack.c.l.b16 %v2136
        %v2169 = vunpack.c.l.b16 %v2137
        %v2170 = vunpack.c.l.b16 %v2138
        %v2171 = vunpack.c.l.b16 %v2139
        %v2172 = vunpack.c.l.b16 %v2140
        %v2173 = vunpack.c.l.b16 %v2141
        %v2174 = vunpack.c.l.b16 %v2142
        %v2175 = vunpack.c.l.b16 %v2143
        %v2176 = vunpack.c.l.b16 %v2144
        %v2177 = vunpack.c.l.b16 %v2145
        %v2178 = vunpack.c.l.b16 %v2146
        %v2179 = vunpack.c.l.b16 %v2147
        %v2180 = vunpack.c.l.b16 %v2148
        %v2181 = vunpack.c.l.b16 %v2149
        %v2182 = vunpack.c.l.b16 %v2150
        %v2183 = vunpack.c.l.b16 %v2151
        %v2184 = vpack.c.b16 %v2169, %v2168
        %v2185 = vpack.c.b16 %v2171, %v2170
        %v2186 = vpack.c.b16 %v2173, %v2172
        %v2187 = vpack.c.b16 %v2175, %v2174
        %v2188 = vpack.c.b16 %v2177, %v2176
        %v2189 = vpack.c.b16 %v2179, %v2178
        %v2190 = vpack.c.b16 %v2181, %v2180
        %v2191 = vpack.c.b16 %v2183, %v2182
        %2200 = vmatpush.bf16.msra.mxu0 %v2191
        %2201 = vmatpush.bf16.msra.mxu0 %v2190
        %2202 = vmatpush.bf16.msra.mxu0 %v2189
        %2203 = vmatpush.bf16.msra.mxu0 %v2188
        %2204 = vmatpush.bf16.msra.mxu0 %v2187
        %2205 = vmatpush.bf16.msra.mxu0 %v2186
        %2206 = vmatpush.bf16.msra.mxu0 %v2185
        %2207 = vmatpush.bf16.msra.mxu0 %v2184
        %2208 = vmatmul.bf16.gmra.mxu0 %v2134
        %v2209 = vpop.f32.mrf.mxu0
        %v2210 = vadd.f32 0.0, %v2209
        %v2211 = vpop.f32.mrf.mxu0
        %v2212 = vadd.f32 0.0, %v2211
        %2213 = vdwg.mxu0
        %v2230 = vunpack.c.l.b16 %v2116
        %v2231 = vunpack.c.l.b16 %v2117
        %v2232 = vunpack.c.l.b16 %v2118
        %v2233 = vunpack.c.l.b16 %v2119
        %v2234 = vunpack.c.l.b16 %v2120
        %v2235 = vunpack.c.l.b16 %v2121
        %v2236 = vunpack.c.l.b16 %v2122
        %v2237 = vunpack.c.l.b16 %v2123
        %v2238 = vunpack.c.l.b16 %v2124
        %v2239 = vunpack.c.l.b16 %v2125
        %v2240 = vunpack.c.l.b16 %v2126
        %v2241 = vunpack.c.l.b16 %v2127
        %v2242 = vunpack.c.l.b16 %v2128
        %v2243 = vunpack.c.l.b16 %v2129
        %v2244 = vunpack.c.l.b16 %v2130
        %v2245 = vunpack.c.l.b16 %v2131
        %v2246 = vpack.c.b16 %v2231, %v2230
        %v2247 = vpack.c.b16 %v2233, %v2232
        %v2248 = vpack.c.b16 %v2235, %v2234
        %v2249 = vpack.c.b16 %v2237, %v2236
        %v2250 = vpack.c.b16 %v2239, %v2238
        %v2251 = vpack.c.b16 %v2241, %v2240
        %v2252 = vpack.c.b16 %v2243, %v2242
        %v2253 = vpack.c.b16 %v2245, %v2244
        %2262 = vmatpush.bf16.msra.mxu0 %v2253
        %2263 = vmatpush.bf16.msra.mxu0 %v2252
        %2264 = vmatpush.bf16.msra.mxu0 %v2251
        %2265 = vmatpush.bf16.msra.mxu0 %v2250
        %2266 = vmatpush.bf16.msra.mxu0 %v2249
        %2267 = vmatpush.bf16.msra.mxu0 %v2248
        %2268 = vmatpush.bf16.msra.mxu0 %v2247
        %2269 = vmatpush.bf16.msra.mxu0 %v2246
        %2270 = vmatmul.bf16.gmra.mxu0 %v2114
        %v2271 = vpop.f32.mrf.mxu0
        %v2272 = vadd.f32 %v2210, %v2271
        %v2273 = vpop.f32.mrf.mxu0
        %v2274 = vadd.f32 %v2212, %v2273
        %2275 = vdwg.mxu0
        %v2276 = vld [vmem:[#allocation2 + $0x2] sm:$0xff]
        %v2277 = vld [vmem:[#allocation2 + $0xa] sm:$0xff]
        %v2278 = vpack.c.bf16 %v2277, %v2276
        %s2279 = scalar_lea.vmem [#allocation7], 640
        %v2280 = vld [vmem:[%s2279] sm:$0xf]
        %v2281 = vld [vmem:[%s2279 + $0x4] sm:$0xf]
        %v2282 = vld [vmem:[%s2279 + $0x8] sm:$0xf]
        %v2283 = vld [vmem:[%s2279 + $0xc] sm:$0xf]
        %v2284 = vld [vmem:[%s2279 + $0x10] sm:$0xf]
        %v2285 = vld [vmem:[%s2279 + $0x14] sm:$0xf]
        %v2286 = vld [vmem:[%s2279 + $0x18] sm:$0xf]
        %v2287 = vld [vmem:[%s2279 + $0x1c] sm:$0xf]
        %v2288 = vld [vmem:[%s2279 + $0x20] sm:$0xf]
        %v2289 = vld [vmem:[%s2279 + $0x24] sm:$0xf]
        %v2290 = vld [vmem:[%s2279 + $0x28] sm:$0xf]
        %v2291 = vld [vmem:[%s2279 + $0x2c] sm:$0xf]
        %v2292 = vld [vmem:[%s2279 + $0x30] sm:$0xf]
        %v2293 = vld [vmem:[%s2279 + $0x34] sm:$0xf]
        %v2294 = vld [vmem:[%s2279 + $0x38] sm:$0xf]
        %v2295 = vld [vmem:[%s2279 + $0x3c] sm:$0xf]
        %v2312 = vunpack.c.l.b16 %v2280
        %v2313 = vunpack.c.l.b16 %v2281
        %v2314 = vunpack.c.l.b16 %v2282
        %v2315 = vunpack.c.l.b16 %v2283
        %v2316 = vunpack.c.l.b16 %v2284
        %v2317 = vunpack.c.l.b16 %v2285
        %v2318 = vunpack.c.l.b16 %v2286
        %v2319 = vunpack.c.l.b16 %v2287
        %v2320 = vunpack.c.l.b16 %v2288
        %v2321 = vunpack.c.l.b16 %v2289
        %v2322 = vunpack.c.l.b16 %v2290
        %v2323 = vunpack.c.l.b16 %v2291
        %v2324 = vunpack.c.l.b16 %v2292
        %v2325 = vunpack.c.l.b16 %v2293
        %v2326 = vunpack.c.l.b16 %v2294
        %v2327 = vunpack.c.l.b16 %v2295
        %v2328 = vpack.c.b16 %v2313, %v2312
        %v2329 = vpack.c.b16 %v2315, %v2314
        %v2330 = vpack.c.b16 %v2317, %v2316
        %v2331 = vpack.c.b16 %v2319, %v2318
        %v2332 = vpack.c.b16 %v2321, %v2320
        %v2333 = vpack.c.b16 %v2323, %v2322
        %v2334 = vpack.c.b16 %v2325, %v2324
        %v2335 = vpack.c.b16 %v2327, %v2326
        %2344 = vmatpush.bf16.msra.mxu0 %v2335
        %2345 = vmatpush.bf16.msra.mxu0 %v2334
        %2346 = vmatpush.bf16.msra.mxu0 %v2333
        %2347 = vmatpush.bf16.msra.mxu0 %v2332
        %2348 = vmatpush.bf16.msra.mxu0 %v2331
        %2349 = vmatpush.bf16.msra.mxu0 %v2330
        %2350 = vmatpush.bf16.msra.mxu0 %v2329
        %2351 = vmatpush.bf16.msra.mxu0 %v2328
        %2352 = vmatmul.bf16.gmra.mxu0 %v2278
        %v2353 = vpop.f32.mrf.mxu0
        %v2354 = vadd.f32 0.0, %v2353
        %v2355 = vpop.f32.mrf.mxu0
        %v2356 = vadd.f32 0.0, %v2355
        %2357 = vdwg.mxu0
        %v2358 = vadd.f32 %v2272, %v2354
        %v2359 = vadd.f32 %v2274, %v2356
        %v2360 = vld [vmem:[#allocation2 + $0x3] sm:$0xff]
        %v2361 = vld [vmem:[#allocation2 + $0xb] sm:$0xff]
        %v2362 = vpack.c.bf16 %v2361, %v2360
        %s2363 = scalar_lea.vmem [#allocation7], 704
        %v2364 = vld [vmem:[%s2363] sm:$0xf]
        %v2365 = vld [vmem:[%s2363 + $0x4] sm:$0xf]
        %v2366 = vld [vmem:[%s2363 + $0x8] sm:$0xf]
        %v2367 = vld [vmem:[%s2363 + $0xc] sm:$0xf]
        %v2368 = vld [vmem:[%s2363 + $0x10] sm:$0xf]
        %v2369 = vld [vmem:[%s2363 + $0x14] sm:$0xf]
        %v2370 = vld [vmem:[%s2363 + $0x18] sm:$0xf]
        %v2371 = vld [vmem:[%s2363 + $0x1c] sm:$0xf]
        %v2372 = vld [vmem:[%s2363 + $0x20] sm:$0xf]
        %v2373 = vld [vmem:[%s2363 + $0x24] sm:$0xf]
        %v2374 = vld [vmem:[%s2363 + $0x28] sm:$0xf]
        %v2375 = vld [vmem:[%s2363 + $0x2c] sm:$0xf]
        %v2376 = vld [vmem:[%s2363 + $0x30] sm:$0xf]
        %v2377 = vld [vmem:[%s2363 + $0x34] sm:$0xf]
        %v2378 = vld [vmem:[%s2363 + $0x38] sm:$0xf]
        %v2379 = vld [vmem:[%s2363 + $0x3c] sm:$0xf]
        %v2396 = vunpack.c.l.b16 %v2364
        %v2397 = vunpack.c.l.b16 %v2365
        %v2398 = vunpack.c.l.b16 %v2366
        %v2399 = vunpack.c.l.b16 %v2367
        %v2400 = vunpack.c.l.b16 %v2368
        %v2401 = vunpack.c.l.b16 %v2369
        %v2402 = vunpack.c.l.b16 %v2370
        %v2403 = vunpack.c.l.b16 %v2371
        %v2404 = vunpack.c.l.b16 %v2372
        %v2405 = vunpack.c.l.b16 %v2373
        %v2406 = vunpack.c.l.b16 %v2374
        %v2407 = vunpack.c.l.b16 %v2375
        %v2408 = vunpack.c.l.b16 %v2376
        %v2409 = vunpack.c.l.b16 %v2377
        %v2410 = vunpack.c.l.b16 %v2378
        %v2411 = vunpack.c.l.b16 %v2379
        %v2412 = vpack.c.b16 %v2397, %v2396
        %v2413 = vpack.c.b16 %v2399, %v2398
        %v2414 = vpack.c.b16 %v2401, %v2400
        %v2415 = vpack.c.b16 %v2403, %v2402
        %v2416 = vpack.c.b16 %v2405, %v2404
        %v2417 = vpack.c.b16 %v2407, %v2406
        %v2418 = vpack.c.b16 %v2409, %v2408
        %v2419 = vpack.c.b16 %v2411, %v2410
        %2428 = vmatpush.bf16.msra.mxu0 %v2419
        %2429 = vmatpush.bf16.msra.mxu0 %v2418
        %2430 = vmatpush.bf16.msra.mxu0 %v2417
        %2431 = vmatpush.bf16.msra.mxu0 %v2416
        %2432 = vmatpush.bf16.msra.mxu0 %v2415
        %2433 = vmatpush.bf16.msra.mxu0 %v2414
        %2434 = vmatpush.bf16.msra.mxu0 %v2413
        %2435 = vmatpush.bf16.msra.mxu0 %v2412
        %2436 = vmatmul.bf16.gmra.mxu0 %v2362
        %v2437 = vpop.f32.mrf.mxu0
        %v2438 = vadd.f32 0.0, %v2437
        %v2439 = vpop.f32.mrf.mxu0
        %v2440 = vadd.f32 0.0, %v2439
        %2441 = vdwg.mxu0
        %v2442 = vadd.f32 %v2358, %v2438
        %v2443 = vadd.f32 %v2359, %v2440
        %v2444 = vld [vmem:[#allocation2 + $0x4] sm:$0xff]
        %v2445 = vld [vmem:[#allocation2 + $0xc] sm:$0xff]
        %v2446 = vpack.c.bf16 %v2445, %v2444
        %s2447 = scalar_lea.vmem [#allocation7], 768
        %v2448 = vld [vmem:[%s2447] sm:$0xf]
        %v2449 = vld [vmem:[%s2447 + $0x4] sm:$0xf]
        %v2450 = vld [vmem:[%s2447 + $0x8] sm:$0xf]
        %v2451 = vld [vmem:[%s2447 + $0xc] sm:$0xf]
        %v2452 = vld [vmem:[%s2447 + $0x10] sm:$0xf]
        %v2453 = vld [vmem:[%s2447 + $0x14] sm:$0xf]
        %v2454 = vld [vmem:[%s2447 + $0x18] sm:$0xf]
        %v2455 = vld [vmem:[%s2447 + $0x1c] sm:$0xf]
        %v2456 = vld [vmem:[%s2447 + $0x20] sm:$0xf]
        %v2457 = vld [vmem:[%s2447 + $0x24] sm:$0xf]
        %v2458 = vld [vmem:[%s2447 + $0x28] sm:$0xf]
        %v2459 = vld [vmem:[%s2447 + $0x2c] sm:$0xf]
        %v2460 = vld [vmem:[%s2447 + $0x30] sm:$0xf]
        %v2461 = vld [vmem:[%s2447 + $0x34] sm:$0xf]
        %v2462 = vld [vmem:[%s2447 + $0x38] sm:$0xf]
        %v2463 = vld [vmem:[%s2447 + $0x3c] sm:$0xf]
        %v2480 = vunpack.c.l.b16 %v2448
        %v2481 = vunpack.c.l.b16 %v2449
        %v2482 = vunpack.c.l.b16 %v2450
        %v2483 = vunpack.c.l.b16 %v2451
        %v2484 = vunpack.c.l.b16 %v2452
        %v2485 = vunpack.c.l.b16 %v2453
        %v2486 = vunpack.c.l.b16 %v2454
        %v2487 = vunpack.c.l.b16 %v2455
        %v2488 = vunpack.c.l.b16 %v2456
        %v2489 = vunpack.c.l.b16 %v2457
        %v2490 = vunpack.c.l.b16 %v2458
        %v2491 = vunpack.c.l.b16 %v2459
        %v2492 = vunpack.c.l.b16 %v2460
        %v2493 = vunpack.c.l.b16 %v2461
        %v2494 = vunpack.c.l.b16 %v2462
        %v2495 = vunpack.c.l.b16 %v2463
        %v2496 = vpack.c.b16 %v2481, %v2480
        %v2497 = vpack.c.b16 %v2483, %v2482
        %v2498 = vpack.c.b16 %v2485, %v2484
        %v2499 = vpack.c.b16 %v2487, %v2486
        %v2500 = vpack.c.b16 %v2489, %v2488
        %v2501 = vpack.c.b16 %v2491, %v2490
        %v2502 = vpack.c.b16 %v2493, %v2492
        %v2503 = vpack.c.b16 %v2495, %v2494
        %2512 = vmatpush.bf16.msra.mxu0 %v2503
        %2513 = vmatpush.bf16.msra.mxu0 %v2502
        %2514 = vmatpush.bf16.msra.mxu0 %v2501
        %2515 = vmatpush.bf16.msra.mxu0 %v2500
        %2516 = vmatpush.bf16.msra.mxu0 %v2499
        %2517 = vmatpush.bf16.msra.mxu0 %v2498
        %2518 = vmatpush.bf16.msra.mxu0 %v2497
        %2519 = vmatpush.bf16.msra.mxu0 %v2496
        %2520 = vmatmul.bf16.gmra.mxu0 %v2446
        %v2521 = vpop.f32.mrf.mxu0
        %v2522 = vadd.f32 0.0, %v2521
        %v2523 = vpop.f32.mrf.mxu0
        %v2524 = vadd.f32 0.0, %v2523
        %2525 = vdwg.mxu0
        %v2526 = vadd.f32 %v2442, %v2522
        %v2527 = vadd.f32 %v2443, %v2524
        %v2528 = vld [vmem:[#allocation2 + $0x5] sm:$0xff]
        %v2529 = vld [vmem:[#allocation2 + $0xd] sm:$0xff]
        %v2530 = vpack.c.bf16 %v2529, %v2528
        %s2531 = scalar_lea.vmem [#allocation7], 832
        %v2532 = vld [vmem:[%s2531] sm:$0xf]
        %v2533 = vld [vmem:[%s2531 + $0x4] sm:$0xf]
        %v2534 = vld [vmem:[%s2531 + $0x8] sm:$0xf]
        %v2535 = vld [vmem:[%s2531 + $0xc] sm:$0xf]
        %v2536 = vld [vmem:[%s2531 + $0x10] sm:$0xf]
        %v2537 = vld [vmem:[%s2531 + $0x14] sm:$0xf]
        %v2538 = vld [vmem:[%s2531 + $0x18] sm:$0xf]
        %v2539 = vld [vmem:[%s2531 + $0x1c] sm:$0xf]
        %v2540 = vld [vmem:[%s2531 + $0x20] sm:$0xf]
        %v2541 = vld [vmem:[%s2531 + $0x24] sm:$0xf]
        %v2542 = vld [vmem:[%s2531 + $0x28] sm:$0xf]
        %v2543 = vld [vmem:[%s2531 + $0x2c] sm:$0xf]
        %v2544 = vld [vmem:[%s2531 + $0x30] sm:$0xf]
        %v2545 = vld [vmem:[%s2531 + $0x34] sm:$0xf]
        %v2546 = vld [vmem:[%s2531 + $0x38] sm:$0xf]
        %v2547 = vld [vmem:[%s2531 + $0x3c] sm:$0xf]
        %v2564 = vunpack.c.l.b16 %v2532
        %v2565 = vunpack.c.l.b16 %v2533
        %v2566 = vunpack.c.l.b16 %v2534
        %v2567 = vunpack.c.l.b16 %v2535
        %v2568 = vunpack.c.l.b16 %v2536
        %v2569 = vunpack.c.l.b16 %v2537
        %v2570 = vunpack.c.l.b16 %v2538
        %v2571 = vunpack.c.l.b16 %v2539
        %v2572 = vunpack.c.l.b16 %v2540
        %v2573 = vunpack.c.l.b16 %v2541
        %v2574 = vunpack.c.l.b16 %v2542
        %v2575 = vunpack.c.l.b16 %v2543
        %v2576 = vunpack.c.l.b16 %v2544
        %v2577 = vunpack.c.l.b16 %v2545
        %v2578 = vunpack.c.l.b16 %v2546
        %v2579 = vunpack.c.l.b16 %v2547
        %v2580 = vpack.c.b16 %v2565, %v2564
        %v2581 = vpack.c.b16 %v2567, %v2566
        %v2582 = vpack.c.b16 %v2569, %v2568
        %v2583 = vpack.c.b16 %v2571, %v2570
        %v2584 = vpack.c.b16 %v2573, %v2572
        %v2585 = vpack.c.b16 %v2575, %v2574
        %v2586 = vpack.c.b16 %v2577, %v2576
        %v2587 = vpack.c.b16 %v2579, %v2578
        %2596 = vmatpush.bf16.msra.mxu0 %v2587
        %2597 = vmatpush.bf16.msra.mxu0 %v2586
        %2598 = vmatpush.bf16.msra.mxu0 %v2585
        %2599 = vmatpush.bf16.msra.mxu0 %v2584
        %2600 = vmatpush.bf16.msra.mxu0 %v2583
        %2601 = vmatpush.bf16.msra.mxu0 %v2582
        %2602 = vmatpush.bf16.msra.mxu0 %v2581
        %2603 = vmatpush.bf16.msra.mxu0 %v2580
        %2604 = vmatmul.bf16.gmra.mxu0 %v2530
        %v2605 = vpop.f32.mrf.mxu0
        %v2606 = vadd.f32 0.0, %v2605
        %v2607 = vpop.f32.mrf.mxu0
        %v2608 = vadd.f32 0.0, %v2607
        %2609 = vdwg.mxu0
        %v2610 = vadd.f32 %v2526, %v2606
        %v2611 = vadd.f32 %v2527, %v2608
        %v2612 = vld [vmem:[#allocation2 + $0x6] sm:$0xff]
        %v2613 = vld [vmem:[#allocation2 + $0xe] sm:$0xff]
        %v2614 = vpack.c.bf16 %v2613, %v2612
        %s2615 = scalar_lea.vmem [#allocation7], 896
        %v2616 = vld [vmem:[%s2615] sm:$0xf]
        %v2617 = vld [vmem:[%s2615 + $0x4] sm:$0xf]
        %v2618 = vld [vmem:[%s2615 + $0x8] sm:$0xf]
        %v2619 = vld [vmem:[%s2615 + $0xc] sm:$0xf]
        %v2620 = vld [vmem:[%s2615 + $0x10] sm:$0xf]
        %v2621 = vld [vmem:[%s2615 + $0x14] sm:$0xf]
        %v2622 = vld [vmem:[%s2615 + $0x18] sm:$0xf]
        %v2623 = vld [vmem:[%s2615 + $0x1c] sm:$0xf]
        %v2624 = vld [vmem:[%s2615 + $0x20] sm:$0xf]
        %v2625 = vld [vmem:[%s2615 + $0x24] sm:$0xf]
        %v2626 = vld [vmem:[%s2615 + $0x28] sm:$0xf]
        %v2627 = vld [vmem:[%s2615 + $0x2c] sm:$0xf]
        %v2628 = vld [vmem:[%s2615 + $0x30] sm:$0xf]
        %v2629 = vld [vmem:[%s2615 + $0x34] sm:$0xf]
        %v2630 = vld [vmem:[%s2615 + $0x38] sm:$0xf]
        %v2631 = vld [vmem:[%s2615 + $0x3c] sm:$0xf]
        %v2648 = vunpack.c.l.b16 %v2616
        %v2649 = vunpack.c.l.b16 %v2617
        %v2650 = vunpack.c.l.b16 %v2618
        %v2651 = vunpack.c.l.b16 %v2619
        %v2652 = vunpack.c.l.b16 %v2620
        %v2653 = vunpack.c.l.b16 %v2621
        %v2654 = vunpack.c.l.b16 %v2622
        %v2655 = vunpack.c.l.b16 %v2623
        %v2656 = vunpack.c.l.b16 %v2624
        %v2657 = vunpack.c.l.b16 %v2625
        %v2658 = vunpack.c.l.b16 %v2626
        %v2659 = vunpack.c.l.b16 %v2627
        %v2660 = vunpack.c.l.b16 %v2628
        %v2661 = vunpack.c.l.b16 %v2629
        %v2662 = vunpack.c.l.b16 %v2630
        %v2663 = vunpack.c.l.b16 %v2631
        %v2664 = vpack.c.b16 %v2649, %v2648
        %v2665 = vpack.c.b16 %v2651, %v2650
        %v2666 = vpack.c.b16 %v2653, %v2652
        %v2667 = vpack.c.b16 %v2655, %v2654
        %v2668 = vpack.c.b16 %v2657, %v2656
        %v2669 = vpack.c.b16 %v2659, %v2658
        %v2670 = vpack.c.b16 %v2661, %v2660
        %v2671 = vpack.c.b16 %v2663, %v2662
        %2680 = vmatpush.bf16.msra.mxu0 %v2671
        %2681 = vmatpush.bf16.msra.mxu0 %v2670
        %2682 = vmatpush.bf16.msra.mxu0 %v2669
        %2683 = vmatpush.bf16.msra.mxu0 %v2668
        %2684 = vmatpush.bf16.msra.mxu0 %v2667
        %2685 = vmatpush.bf16.msra.mxu0 %v2666
        %2686 = vmatpush.bf16.msra.mxu0 %v2665
        %2687 = vmatpush.bf16.msra.mxu0 %v2664
        %2688 = vmatmul.bf16.gmra.mxu0 %v2614
        %v2689 = vpop.f32.mrf.mxu0
        %v2690 = vadd.f32 0.0, %v2689
        %v2691 = vpop.f32.mrf.mxu0
        %v2692 = vadd.f32 0.0, %v2691
        %2693 = vdwg.mxu0
        %v2694 = vadd.f32 %v2610, %v2690
        %v2695 = vadd.f32 %v2611, %v2692
        %v2696 = vld [vmem:[#allocation2 + $0x7] sm:$0xff]
        %v2697 = vld [vmem:[#allocation2 + $0xf] sm:$0xff]
        %v2698 = vpack.c.bf16 %v2697, %v2696
        %s2699 = scalar_lea.vmem [#allocation7], 960
        %v2700 = vld [vmem:[%s2699] sm:$0xf]
        %v2701 = vld [vmem:[%s2699 + $0x4] sm:$0xf]
        %v2702 = vld [vmem:[%s2699 + $0x8] sm:$0xf]
        %v2703 = vld [vmem:[%s2699 + $0xc] sm:$0xf]
        %v2704 = vld [vmem:[%s2699 + $0x10] sm:$0xf]
        %v2705 = vld [vmem:[%s2699 + $0x14] sm:$0xf]
        %v2706 = vld [vmem:[%s2699 + $0x18] sm:$0xf]
        %v2707 = vld [vmem:[%s2699 + $0x1c] sm:$0xf]
        %v2708 = vld [vmem:[%s2699 + $0x20] sm:$0xf]
        %v2709 = vld [vmem:[%s2699 + $0x24] sm:$0xf]
        %v2710 = vld [vmem:[%s2699 + $0x28] sm:$0xf]
        %v2711 = vld [vmem:[%s2699 + $0x2c] sm:$0xf]
        %v2712 = vld [vmem:[%s2699 + $0x30] sm:$0xf]
        %v2713 = vld [vmem:[%s2699 + $0x34] sm:$0xf]
        %v2714 = vld [vmem:[%s2699 + $0x38] sm:$0xf]
        %v2715 = vld [vmem:[%s2699 + $0x3c] sm:$0xf]
        %v2732 = vunpack.c.l.b16 %v2700
        %v2733 = vunpack.c.l.b16 %v2701
        %v2734 = vunpack.c.l.b16 %v2702
        %v2735 = vunpack.c.l.b16 %v2703
        %v2736 = vunpack.c.l.b16 %v2704
        %v2737 = vunpack.c.l.b16 %v2705
        %v2738 = vunpack.c.l.b16 %v2706
        %v2739 = vunpack.c.l.b16 %v2707
        %v2740 = vunpack.c.l.b16 %v2708
        %v2741 = vunpack.c.l.b16 %v2709
        %v2742 = vunpack.c.l.b16 %v2710
        %v2743 = vunpack.c.l.b16 %v2711
        %v2744 = vunpack.c.l.b16 %v2712
        %v2745 = vunpack.c.l.b16 %v2713
        %v2746 = vunpack.c.l.b16 %v2714
        %v2747 = vunpack.c.l.b16 %v2715
        %v2748 = vpack.c.b16 %v2733, %v2732
        %v2749 = vpack.c.b16 %v2735, %v2734
        %v2750 = vpack.c.b16 %v2737, %v2736
        %v2751 = vpack.c.b16 %v2739, %v2738
        %v2752 = vpack.c.b16 %v2741, %v2740
        %v2753 = vpack.c.b16 %v2743, %v2742
        %v2754 = vpack.c.b16 %v2745, %v2744
        %v2755 = vpack.c.b16 %v2747, %v2746
        %2764 = vmatpush.bf16.msra.mxu0 %v2755
        %2765 = vmatpush.bf16.msra.mxu0 %v2754
        %2766 = vmatpush.bf16.msra.mxu0 %v2753
        %2767 = vmatpush.bf16.msra.mxu0 %v2752
        %2768 = vmatpush.bf16.msra.mxu0 %v2751
        %2769 = vmatpush.bf16.msra.mxu0 %v2750
        %2770 = vmatpush.bf16.msra.mxu0 %v2749
        %2771 = vmatpush.bf16.msra.mxu0 %v2748
        %2772 = vmatmul.bf16.gmra.mxu0 %v2698
        %v2773 = vpop.f32.mrf.mxu0
        %v2774 = vadd.f32 0.0, %v2773
        %v2775 = vpop.f32.mrf.mxu0
        %v2776 = vadd.f32 0.0, %v2775
        %2777 = vdwg.mxu0
        %v2778 = vadd.f32 %v2694, %v2774
        %v2779 = vadd.f32 %v2695, %v2776
        %v2781 = vperm.slane %v2093, 0
        %v2783 = vadd.f32 %v2778, %v2781
        %v2784 = vadd.f32 %v2779, %v2781
        %v2785 = vadd.f32 %v1989, %v2783
        %v2786 = vadd.f32 %v1990, %v2784
        %v2787 = vmax.f32 %v2785, 0.0
        %v2788 = vmax.f32 %v2786, 0.0
        %v2789 = vld [vmem:[%s9] sm:$0x1]
        %v2791 = vperm.slane %v2789, 0
        %v2793 = vmul.f32 %v2787, %v2791
        %v2794 = vmul.f32 %v2788, %v2791
        %v2795 = vld [vmem:[%s10] sm:$0x1]
        %v2797 = vperm.slane %v2795, 0
        %v2799 = vadd.f32 %v2793, %v2797
        %v2800 = vadd.f32 %v2794, %v2797
        %v2801 = vld [vmem:[%s12] sm:$0x1]
        %2802 = vst [vmem:[#allocation2 + $0x4] sm:$0xff] %v2799
        %2803 = vst [vmem:[#allocation2 + $0xc] sm:$0xff] %v2800
        %v2804 = vld [vmem:[#allocation2 + $0x5] sm:$0x1]
        %2805 = vst [vmem:[#allocation2 + $0x3] sm:$0x1] %v2804
        %v2806 = vld [vmem:[#allocation2 + $0x12] sm:$0x1]
        %2807 = vst [vmem:[#allocation2 + $0x14] sm:$0x1] %v2806
        %v2808 = vld [vmem:[#allocation2 + $0x6] sm:$0x1]
        %2809 = vst [vmem:[#allocation2 + $0x2] sm:$0x1] %v2808
        %v2810 = vld [vmem:[#allocation2 + $0x11] sm:$0x1]
        %2811 = vst [vmem:[#allocation2 + $0x15] sm:$0x1] %v2810
        %v2812 = vld [vmem:[#allocation2 + $0x7] sm:$0x1]
        %2813 = vst [vmem:[#allocation2 + $0x1] sm:$0x1] %v2812
        %v2814 = vld [vmem:[#allocation2 + $0x10] sm:$0x1]
        %2815 = vst [vmem:[#allocation2 + $0x16] sm:$0x1] %v2814
        %v2816 = vld [vmem:[#allocation2 + $0x8] sm:$0x1]
        %2817 = vst [vmem:[#allocation2] sm:$0x1] %v2816
        %v2818 = vld [vmem:[#allocation2 + $0xf] sm:$0x1]
        %2819 = vst [vmem:[#allocation2 + $0x17] sm:$0x1] %v2818
        %v2820 = vld [vmem:[#allocation2] sm:$0xff]
        %v2821 = vld [vmem:[#allocation2 + $0x8] sm:$0xff]
        %v2822 = vpack.c.bf16 %v2821, %v2820
        %v2823 = vld [vmem:[#allocation8] sm:$0xf]
        %v2824 = vld [vmem:[#allocation8 + $0x4] sm:$0xf]
        %v2825 = vld [vmem:[#allocation8 + $0x8] sm:$0xf]
        %v2826 = vld [vmem:[#allocation8 + $0xc] sm:$0xf]
        %v2827 = vld [vmem:[#allocation8 + $0x10] sm:$0xf]
        %v2828 = vld [vmem:[#allocation8 + $0x14] sm:$0xf]
        %v2829 = vld [vmem:[#allocation8 + $0x18] sm:$0xf]
        %v2830 = vld [vmem:[#allocation8 + $0x1c] sm:$0xf]
        %v2831 = vld [vmem:[#allocation8 + $0x20] sm:$0xf]
        %v2832 = vld [vmem:[#allocation8 + $0x24] sm:$0xf]
        %v2833 = vld [vmem:[#allocation8 + $0x28] sm:$0xf]
        %v2834 = vld [vmem:[#allocation8 + $0x2c] sm:$0xf]
        %v2835 = vld [vmem:[#allocation8 + $0x30] sm:$0xf]
        %v2836 = vld [vmem:[#allocation8 + $0x34] sm:$0xf]
        %v2837 = vld [vmem:[#allocation8 + $0x38] sm:$0xf]
        %v2838 = vld [vmem:[#allocation8 + $0x3c] sm:$0xf]
        %v2839 = vld [vmem:[#allocation2 + $0x1] sm:$0xff]
        %v2840 = vld [vmem:[#allocation2 + $0x9] sm:$0xff]
        %v2841 = vpack.c.bf16 %v2840, %v2839
        %s2842 = scalar_lea.vmem [#allocation8], 64
        %v2843 = vld [vmem:[%s2842] sm:$0xf]
        %v2844 = vld [vmem:[%s2842 + $0x4] sm:$0xf]
        %v2845 = vld [vmem:[%s2842 + $0x8] sm:$0xf]
        %v2846 = vld [vmem:[%s2842 + $0xc] sm:$0xf]
        %v2847 = vld [vmem:[%s2842 + $0x10] sm:$0xf]
        %v2848 = vld [vmem:[%s2842 + $0x14] sm:$0xf]
        %v2849 = vld [vmem:[%s2842 + $0x18] sm:$0xf]
        %v2850 = vld [vmem:[%s2842 + $0x1c] sm:$0xf]
        %v2851 = vld [vmem:[%s2842 + $0x20] sm:$0xf]
        %v2852 = vld [vmem:[%s2842 + $0x24] sm:$0xf]
        %v2853 = vld [vmem:[%s2842 + $0x28] sm:$0xf]
        %v2854 = vld [vmem:[%s2842 + $0x2c] sm:$0xf]
        %v2855 = vld [vmem:[%s2842 + $0x30] sm:$0xf]
        %v2856 = vld [vmem:[%s2842 + $0x34] sm:$0xf]
        %v2857 = vld [vmem:[%s2842 + $0x38] sm:$0xf]
        %v2858 = vld [vmem:[%s2842 + $0x3c] sm:$0xf]
        %v2875 = vunpack.c.l.b16 %v2843
        %v2876 = vunpack.c.l.b16 %v2844
        %v2877 = vunpack.c.l.b16 %v2845
        %v2878 = vunpack.c.l.b16 %v2846
        %v2879 = vunpack.c.l.b16 %v2847
        %v2880 = vunpack.c.l.b16 %v2848
        %v2881 = vunpack.c.l.b16 %v2849
        %v2882 = vunpack.c.l.b16 %v2850
        %v2883 = vunpack.c.l.b16 %v2851
        %v2884 = vunpack.c.l.b16 %v2852
        %v2885 = vunpack.c.l.b16 %v2853
        %v2886 = vunpack.c.l.b16 %v2854
        %v2887 = vunpack.c.l.b16 %v2855
        %v2888 = vunpack.c.l.b16 %v2856
        %v2889 = vunpack.c.l.b16 %v2857
        %v2890 = vunpack.c.l.b16 %v2858
        %v2891 = vpack.c.b16 %v2876, %v2875
        %v2892 = vpack.c.b16 %v2878, %v2877
        %v2893 = vpack.c.b16 %v2880, %v2879
        %v2894 = vpack.c.b16 %v2882, %v2881
        %v2895 = vpack.c.b16 %v2884, %v2883
        %v2896 = vpack.c.b16 %v2886, %v2885
        %v2897 = vpack.c.b16 %v2888, %v2887
        %v2898 = vpack.c.b16 %v2890, %v2889
        %2907 = vmatpush.bf16.msra.mxu0 %v2898
        %2908 = vmatpush.bf16.msra.mxu0 %v2897
        %2909 = vmatpush.bf16.msra.mxu0 %v2896
        %2910 = vmatpush.bf16.msra.mxu0 %v2895
        %2911 = vmatpush.bf16.msra.mxu0 %v2894
        %2912 = vmatpush.bf16.msra.mxu0 %v2893
        %2913 = vmatpush.bf16.msra.mxu0 %v2892
        %2914 = vmatpush.bf16.msra.mxu0 %v2891
        %2915 = vmatmul.bf16.gmra.mxu0 %v2841
        %v2916 = vpop.f32.mrf.mxu0
        %v2917 = vadd.f32 0.0, %v2916
        %v2918 = vpop.f32.mrf.mxu0
        %v2919 = vadd.f32 0.0, %v2918
        %2920 = vdwg.mxu0
        %v2937 = vunpack.c.l.b16 %v2823
        %v2938 = vunpack.c.l.b16 %v2824
        %v2939 = vunpack.c.l.b16 %v2825
        %v2940 = vunpack.c.l.b16 %v2826
        %v2941 = vunpack.c.l.b16 %v2827
        %v2942 = vunpack.c.l.b16 %v2828
        %v2943 = vunpack.c.l.b16 %v2829
        %v2944 = vunpack.c.l.b16 %v2830
        %v2945 = vunpack.c.l.b16 %v2831
        %v2946 = vunpack.c.l.b16 %v2832
        %v2947 = vunpack.c.l.b16 %v2833
        %v2948 = vunpack.c.l.b16 %v2834
        %v2949 = vunpack.c.l.b16 %v2835
        %v2950 = vunpack.c.l.b16 %v2836
        %v2951 = vunpack.c.l.b16 %v2837
        %v2952 = vunpack.c.l.b16 %v2838
        %v2953 = vpack.c.b16 %v2938, %v2937
        %v2954 = vpack.c.b16 %v2940, %v2939
        %v2955 = vpack.c.b16 %v2942, %v2941
        %v2956 = vpack.c.b16 %v2944, %v2943
        %v2957 = vpack.c.b16 %v2946, %v2945
        %v2958 = vpack.c.b16 %v2948, %v2947
        %v2959 = vpack.c.b16 %v2950, %v2949
        %v2960 = vpack.c.b16 %v2952, %v2951
        %2969 = vmatpush.bf16.msra.mxu0 %v2960
        %2970 = vmatpush.bf16.msra.mxu0 %v2959
        %2971 = vmatpush.bf16.msra.mxu0 %v2958
        %2972 = vmatpush.bf16.msra.mxu0 %v2957
        %2973 = vmatpush.bf16.msra.mxu0 %v2956
        %2974 = vmatpush.bf16.msra.mxu0 %v2955
        %2975 = vmatpush.bf16.msra.mxu0 %v2954
        %2976 = vmatpush.bf16.msra.mxu0 %v2953
        %2977 = vmatmul.bf16.gmra.mxu0 %v2822
        %v2978 = vpop.f32.mrf.mxu0
        %v2979 = vadd.f32 %v2917, %v2978
        %v2980 = vpop.f32.mrf.mxu0
        %v2981 = vadd.f32 %v2919, %v2980
        %2982 = vdwg.mxu0
        %v2983 = vld [vmem:[#allocation2 + $0x2] sm:$0xff]
        %v2984 = vld [vmem:[#allocation2 + $0xa] sm:$0xff]
        %v2985 = vpack.c.bf16 %v2984, %v2983
        %s2986 = scalar_lea.vmem [#allocation8], 128
        %v2987 = vld [vmem:[%s2986] sm:$0xf]
        %v2988 = vld [vmem:[%s2986 + $0x4] sm:$0xf]
        %v2989 = vld [vmem:[%s2986 + $0x8] sm:$0xf]
        %v2990 = vld [vmem:[%s2986 + $0xc] sm:$0xf]
        %v2991 = vld [vmem:[%s2986 + $0x10] sm:$0xf]
        %v2992 = vld [vmem:[%s2986 + $0x14] sm:$0xf]
        %v2993 = vld [vmem:[%s2986 + $0x18] sm:$0xf]
        %v2994 = vld [vmem:[%s2986 + $0x1c] sm:$0xf]
        %v2995 = vld [vmem:[%s2986 + $0x20] sm:$0xf]
        %v2996 = vld [vmem:[%s2986 + $0x24] sm:$0xf]
        %v2997 = vld [vmem:[%s2986 + $0x28] sm:$0xf]
        %v2998 = vld [vmem:[%s2986 + $0x2c] sm:$0xf]
        %v2999 = vld [vmem:[%s2986 + $0x30] sm:$0xf]
        %v3000 = vld [vmem:[%s2986 + $0x34] sm:$0xf]
        %v3001 = vld [vmem:[%s2986 + $0x38] sm:$0xf]
        %v3002 = vld [vmem:[%s2986 + $0x3c] sm:$0xf]
        %v3019 = vunpack.c.l.b16 %v2987
        %v3020 = vunpack.c.l.b16 %v2988
        %v3021 = vunpack.c.l.b16 %v2989
        %v3022 = vunpack.c.l.b16 %v2990
        %v3023 = vunpack.c.l.b16 %v2991
        %v3024 = vunpack.c.l.b16 %v2992
        %v3025 = vunpack.c.l.b16 %v2993
        %v3026 = vunpack.c.l.b16 %v2994
        %v3027 = vunpack.c.l.b16 %v2995
        %v3028 = vunpack.c.l.b16 %v2996
        %v3029 = vunpack.c.l.b16 %v2997
        %v3030 = vunpack.c.l.b16 %v2998
        %v3031 = vunpack.c.l.b16 %v2999
        %v3032 = vunpack.c.l.b16 %v3000
        %v3033 = vunpack.c.l.b16 %v3001
        %v3034 = vunpack.c.l.b16 %v3002
        %v3035 = vpack.c.b16 %v3020, %v3019
        %v3036 = vpack.c.b16 %v3022, %v3021
        %v3037 = vpack.c.b16 %v3024, %v3023
        %v3038 = vpack.c.b16 %v3026, %v3025
        %v3039 = vpack.c.b16 %v3028, %v3027
        %v3040 = vpack.c.b16 %v3030, %v3029
        %v3041 = vpack.c.b16 %v3032, %v3031
        %v3042 = vpack.c.b16 %v3034, %v3033
        %3051 = vmatpush.bf16.msra.mxu0 %v3042
        %3052 = vmatpush.bf16.msra.mxu0 %v3041
        %3053 = vmatpush.bf16.msra.mxu0 %v3040
        %3054 = vmatpush.bf16.msra.mxu0 %v3039
        %3055 = vmatpush.bf16.msra.mxu0 %v3038
        %3056 = vmatpush.bf16.msra.mxu0 %v3037
        %3057 = vmatpush.bf16.msra.mxu0 %v3036
        %3058 = vmatpush.bf16.msra.mxu0 %v3035
        %3059 = vmatmul.bf16.gmra.mxu0 %v2985
        %v3060 = vpop.f32.mrf.mxu0
        %v3061 = vadd.f32 0.0, %v3060
        %v3062 = vpop.f32.mrf.mxu0
        %v3063 = vadd.f32 0.0, %v3062
        %3064 = vdwg.mxu0
        %v3065 = vadd.f32 %v2979, %v3061
        %v3066 = vadd.f32 %v2981, %v3063
        %v3067 = vld [vmem:[#allocation2 + $0x3] sm:$0xff]
        %v3068 = vld [vmem:[#allocation2 + $0xb] sm:$0xff]
        %v3069 = vpack.c.bf16 %v3068, %v3067
        %s3070 = scalar_lea.vmem [#allocation8], 192
        %v3071 = vld [vmem:[%s3070] sm:$0xf]
        %v3072 = vld [vmem:[%s3070 + $0x4] sm:$0xf]
        %v3073 = vld [vmem:[%s3070 + $0x8] sm:$0xf]
        %v3074 = vld [vmem:[%s3070 + $0xc] sm:$0xf]
        %v3075 = vld [vmem:[%s3070 + $0x10] sm:$0xf]
        %v3076 = vld [vmem:[%s3070 + $0x14] sm:$0xf]
        %v3077 = vld [vmem:[%s3070 + $0x18] sm:$0xf]
        %v3078 = vld [vmem:[%s3070 + $0x1c] sm:$0xf]
        %v3079 = vld [vmem:[%s3070 + $0x20] sm:$0xf]
        %v3080 = vld [vmem:[%s3070 + $0x24] sm:$0xf]
        %v3081 = vld [vmem:[%s3070 + $0x28] sm:$0xf]
        %v3082 = vld [vmem:[%s3070 + $0x2c] sm:$0xf]
        %v3083 = vld [vmem:[%s3070 + $0x30] sm:$0xf]
        %v3084 = vld [vmem:[%s3070 + $0x34] sm:$0xf]
        %v3085 = vld [vmem:[%s3070 + $0x38] sm:$0xf]
        %v3086 = vld [vmem:[%s3070 + $0x3c] sm:$0xf]
        %v3103 = vunpack.c.l.b16 %v3071
        %v3104 = vunpack.c.l.b16 %v3072
        %v3105 = vunpack.c.l.b16 %v3073
        %v3106 = vunpack.c.l.b16 %v3074
        %v3107 = vunpack.c.l.b16 %v3075
        %v3108 = vunpack.c.l.b16 %v3076
        %v3109 = vunpack.c.l.b16 %v3077
        %v3110 = vunpack.c.l.b16 %v3078
        %v3111 = vunpack.c.l.b16 %v3079
        %v3112 = vunpack.c.l.b16 %v3080
        %v3113 = vunpack.c.l.b16 %v3081
        %v3114 = vunpack.c.l.b16 %v3082
        %v3115 = vunpack.c.l.b16 %v3083
        %v3116 = vunpack.c.l.b16 %v3084
        %v3117 = vunpack.c.l.b16 %v3085
        %v3118 = vunpack.c.l.b16 %v3086
        %v3119 = vpack.c.b16 %v3104, %v3103
        %v3120 = vpack.c.b16 %v3106, %v3105
        %v3121 = vpack.c.b16 %v3108, %v3107
        %v3122 = vpack.c.b16 %v3110, %v3109
        %v3123 = vpack.c.b16 %v3112, %v3111
        %v3124 = vpack.c.b16 %v3114, %v3113
        %v3125 = vpack.c.b16 %v3116, %v3115
        %v3126 = vpack.c.b16 %v3118, %v3117
        %3135 = vmatpush.bf16.msra.mxu0 %v3126
        %3136 = vmatpush.bf16.msra.mxu0 %v3125
        %3137 = vmatpush.bf16.msra.mxu0 %v3124
        %3138 = vmatpush.bf16.msra.mxu0 %v3123
        %3139 = vmatpush.bf16.msra.mxu0 %v3122
        %3140 = vmatpush.bf16.msra.mxu0 %v3121
        %3141 = vmatpush.bf16.msra.mxu0 %v3120
        %3142 = vmatpush.bf16.msra.mxu0 %v3119
        %3143 = vmatmul.bf16.gmra.mxu0 %v3069
        %v3144 = vpop.f32.mrf.mxu0
        %v3145 = vadd.f32 0.0, %v3144
        %v3146 = vpop.f32.mrf.mxu0
        %v3147 = vadd.f32 0.0, %v3146
        %3148 = vdwg.mxu0
        %v3149 = vadd.f32 %v3065, %v3145
        %v3150 = vadd.f32 %v3066, %v3147
        %v3151 = vld [vmem:[#allocation2 + $0x4] sm:$0xff]
        %v3152 = vld [vmem:[#allocation2 + $0xc] sm:$0xff]
        %v3153 = vpack.c.bf16 %v3152, %v3151
        %s3154 = scalar_lea.vmem [#allocation8], 256
        %v3155 = vld [vmem:[%s3154] sm:$0xf]
        %v3156 = vld [vmem:[%s3154 + $0x4] sm:$0xf]
        %v3157 = vld [vmem:[%s3154 + $0x8] sm:$0xf]
        %v3158 = vld [vmem:[%s3154 + $0xc] sm:$0xf]
        %v3159 = vld [vmem:[%s3154 + $0x10] sm:$0xf]
        %v3160 = vld [vmem:[%s3154 + $0x14] sm:$0xf]
        %v3161 = vld [vmem:[%s3154 + $0x18] sm:$0xf]
        %v3162 = vld [vmem:[%s3154 + $0x1c] sm:$0xf]
        %v3163 = vld [vmem:[%s3154 + $0x20] sm:$0xf]
        %v3164 = vld [vmem:[%s3154 + $0x24] sm:$0xf]
        %v3165 = vld [vmem:[%s3154 + $0x28] sm:$0xf]
        %v3166 = vld [vmem:[%s3154 + $0x2c] sm:$0xf]
        %v3167 = vld [vmem:[%s3154 + $0x30] sm:$0xf]
        %v3168 = vld [vmem:[%s3154 + $0x34] sm:$0xf]
        %v3169 = vld [vmem:[%s3154 + $0x38] sm:$0xf]
        %v3170 = vld [vmem:[%s3154 + $0x3c] sm:$0xf]
        %v3187 = vunpack.c.l.b16 %v3155
        %v3188 = vunpack.c.l.b16 %v3156
        %v3189 = vunpack.c.l.b16 %v3157
        %v3190 = vunpack.c.l.b16 %v3158
        %v3191 = vunpack.c.l.b16 %v3159
        %v3192 = vunpack.c.l.b16 %v3160
        %v3193 = vunpack.c.l.b16 %v3161
        %v3194 = vunpack.c.l.b16 %v3162
        %v3195 = vunpack.c.l.b16 %v3163
        %v3196 = vunpack.c.l.b16 %v3164
        %v3197 = vunpack.c.l.b16 %v3165
        %v3198 = vunpack.c.l.b16 %v3166
        %v3199 = vunpack.c.l.b16 %v3167
        %v3200 = vunpack.c.l.b16 %v3168
        %v3201 = vunpack.c.l.b16 %v3169
        %v3202 = vunpack.c.l.b16 %v3170
        %v3203 = vpack.c.b16 %v3188, %v3187
        %v3204 = vpack.c.b16 %v3190, %v3189
        %v3205 = vpack.c.b16 %v3192, %v3191
        %v3206 = vpack.c.b16 %v3194, %v3193
        %v3207 = vpack.c.b16 %v3196, %v3195
        %v3208 = vpack.c.b16 %v3198, %v3197
        %v3209 = vpack.c.b16 %v3200, %v3199
        %v3210 = vpack.c.b16 %v3202, %v3201
        %3219 = vmatpush.bf16.msra.mxu0 %v3210
        %3220 = vmatpush.bf16.msra.mxu0 %v3209
        %3221 = vmatpush.bf16.msra.mxu0 %v3208
        %3222 = vmatpush.bf16.msra.mxu0 %v3207
        %3223 = vmatpush.bf16.msra.mxu0 %v3206
        %3224 = vmatpush.bf16.msra.mxu0 %v3205
        %3225 = vmatpush.bf16.msra.mxu0 %v3204
        %3226 = vmatpush.bf16.msra.mxu0 %v3203
        %3227 = vmatmul.bf16.gmra.mxu0 %v3153
        %v3228 = vpop.f32.mrf.mxu0
        %v3229 = vadd.f32 0.0, %v3228
        %v3230 = vpop.f32.mrf.mxu0
        %v3231 = vadd.f32 0.0, %v3230
        %3232 = vdwg.mxu0
        %v3233 = vadd.f32 %v3149, %v3229
        %v3234 = vadd.f32 %v3150, %v3231
        %v3235 = vld [vmem:[#allocation2 + $0x5] sm:$0xff]
        %v3236 = vld [vmem:[#allocation2 + $0xd] sm:$0xff]
        %v3237 = vpack.c.bf16 %v3236, %v3235
        %s3238 = scalar_lea.vmem [#allocation8], 320
        %v3239 = vld [vmem:[%s3238] sm:$0xf]
        %v3240 = vld [vmem:[%s3238 + $0x4] sm:$0xf]
        %v3241 = vld [vmem:[%s3238 + $0x8] sm:$0xf]
        %v3242 = vld [vmem:[%s3238 + $0xc] sm:$0xf]
        %v3243 = vld [vmem:[%s3238 + $0x10] sm:$0xf]
        %v3244 = vld [vmem:[%s3238 + $0x14] sm:$0xf]
        %v3245 = vld [vmem:[%s3238 + $0x18] sm:$0xf]
        %v3246 = vld [vmem:[%s3238 + $0x1c] sm:$0xf]
        %v3247 = vld [vmem:[%s3238 + $0x20] sm:$0xf]
        %v3248 = vld [vmem:[%s3238 + $0x24] sm:$0xf]
        %v3249 = vld [vmem:[%s3238 + $0x28] sm:$0xf]
        %v3250 = vld [vmem:[%s3238 + $0x2c] sm:$0xf]
        %v3251 = vld [vmem:[%s3238 + $0x30] sm:$0xf]
        %v3252 = vld [vmem:[%s3238 + $0x34] sm:$0xf]
        %v3253 = vld [vmem:[%s3238 + $0x38] sm:$0xf]
        %v3254 = vld [vmem:[%s3238 + $0x3c] sm:$0xf]
        %v3271 = vunpack.c.l.b16 %v3239
        %v3272 = vunpack.c.l.b16 %v3240
        %v3273 = vunpack.c.l.b16 %v3241
        %v3274 = vunpack.c.l.b16 %v3242
        %v3275 = vunpack.c.l.b16 %v3243
        %v3276 = vunpack.c.l.b16 %v3244
        %v3277 = vunpack.c.l.b16 %v3245
        %v3278 = vunpack.c.l.b16 %v3246
        %v3279 = vunpack.c.l.b16 %v3247
        %v3280 = vunpack.c.l.b16 %v3248
        %v3281 = vunpack.c.l.b16 %v3249
        %v3282 = vunpack.c.l.b16 %v3250
        %v3283 = vunpack.c.l.b16 %v3251
        %v3284 = vunpack.c.l.b16 %v3252
        %v3285 = vunpack.c.l.b16 %v3253
        %v3286 = vunpack.c.l.b16 %v3254
        %v3287 = vpack.c.b16 %v3272, %v3271
        %v3288 = vpack.c.b16 %v3274, %v3273
        %v3289 = vpack.c.b16 %v3276, %v3275
        %v3290 = vpack.c.b16 %v3278, %v3277
        %v3291 = vpack.c.b16 %v3280, %v3279
        %v3292 = vpack.c.b16 %v3282, %v3281
        %v3293 = vpack.c.b16 %v3284, %v3283
        %v3294 = vpack.c.b16 %v3286, %v3285
        %3303 = vmatpush.bf16.msra.mxu0 %v3294
        %3304 = vmatpush.bf16.msra.mxu0 %v3293
        %3305 = vmatpush.bf16.msra.mxu0 %v3292
        %3306 = vmatpush.bf16.msra.mxu0 %v3291
        %3307 = vmatpush.bf16.msra.mxu0 %v3290
        %3308 = vmatpush.bf16.msra.mxu0 %v3289
        %3309 = vmatpush.bf16.msra.mxu0 %v3288
        %3310 = vmatpush.bf16.msra.mxu0 %v3287
        %3311 = vmatmul.bf16.gmra.mxu0 %v3237
        %v3312 = vpop.f32.mrf.mxu0
        %v3313 = vadd.f32 0.0, %v3312
        %v3314 = vpop.f32.mrf.mxu0
        %v3315 = vadd.f32 0.0, %v3314
        %3316 = vdwg.mxu0
        %v3317 = vadd.f32 %v3233, %v3313
        %v3318 = vadd.f32 %v3234, %v3315
        %v3319 = vld [vmem:[#allocation2 + $0x6] sm:$0xff]
        %v3320 = vld [vmem:[#allocation2 + $0xe] sm:$0xff]
        %v3321 = vpack.c.bf16 %v3320, %v3319
        %s3322 = scalar_lea.vmem [#allocation8], 384
        %v3323 = vld [vmem:[%s3322] sm:$0xf]
        %v3324 = vld [vmem:[%s3322 + $0x4] sm:$0xf]
        %v3325 = vld [vmem:[%s3322 + $0x8] sm:$0xf]
        %v3326 = vld [vmem:[%s3322 + $0xc] sm:$0xf]
        %v3327 = vld [vmem:[%s3322 + $0x10] sm:$0xf]
        %v3328 = vld [vmem:[%s3322 + $0x14] sm:$0xf]
        %v3329 = vld [vmem:[%s3322 + $0x18] sm:$0xf]
        %v3330 = vld [vmem:[%s3322 + $0x1c] sm:$0xf]
        %v3331 = vld [vmem:[%s3322 + $0x20] sm:$0xf]
        %v3332 = vld [vmem:[%s3322 + $0x24] sm:$0xf]
        %v3333 = vld [vmem:[%s3322 + $0x28] sm:$0xf]
        %v3334 = vld [vmem:[%s3322 + $0x2c] sm:$0xf]
        %v3335 = vld [vmem:[%s3322 + $0x30] sm:$0xf]
        %v3336 = vld [vmem:[%s3322 + $0x34] sm:$0xf]
        %v3337 = vld [vmem:[%s3322 + $0x38] sm:$0xf]
        %v3338 = vld [vmem:[%s3322 + $0x3c] sm:$0xf]
        %v3355 = vunpack.c.l.b16 %v3323
        %v3356 = vunpack.c.l.b16 %v3324
        %v3357 = vunpack.c.l.b16 %v3325
        %v3358 = vunpack.c.l.b16 %v3326
        %v3359 = vunpack.c.l.b16 %v3327
        %v3360 = vunpack.c.l.b16 %v3328
        %v3361 = vunpack.c.l.b16 %v3329
        %v3362 = vunpack.c.l.b16 %v3330
        %v3363 = vunpack.c.l.b16 %v3331
        %v3364 = vunpack.c.l.b16 %v3332
        %v3365 = vunpack.c.l.b16 %v3333
        %v3366 = vunpack.c.l.b16 %v3334
        %v3367 = vunpack.c.l.b16 %v3335
        %v3368 = vunpack.c.l.b16 %v3336
        %v3369 = vunpack.c.l.b16 %v3337
        %v3370 = vunpack.c.l.b16 %v3338
        %v3371 = vpack.c.b16 %v3356, %v3355
        %v3372 = vpack.c.b16 %v3358, %v3357
        %v3373 = vpack.c.b16 %v3360, %v3359
        %v3374 = vpack.c.b16 %v3362, %v3361
        %v3375 = vpack.c.b16 %v3364, %v3363
        %v3376 = vpack.c.b16 %v3366, %v3365
        %v3377 = vpack.c.b16 %v3368, %v3367
        %v3378 = vpack.c.b16 %v3370, %v3369
        %3387 = vmatpush.bf16.msra.mxu0 %v3378
        %3388 = vmatpush.bf16.msra.mxu0 %v3377
        %3389 = vmatpush.bf16.msra.mxu0 %v3376
        %3390 = vmatpush.bf16.msra.mxu0 %v3375
        %3391 = vmatpush.bf16.msra.mxu0 %v3374
        %3392 = vmatpush.bf16.msra.mxu0 %v3373
        %3393 = vmatpush.bf16.msra.mxu0 %v3372
        %3394 = vmatpush.bf16.msra.mxu0 %v3371
        %3395 = vmatmul.bf16.gmra.mxu0 %v3321
        %v3396 = vpop.f32.mrf.mxu0
        %v3397 = vadd.f32 0.0, %v3396
        %v3398 = vpop.f32.mrf.mxu0
        %v3399 = vadd.f32 0.0, %v3398
        %3400 = vdwg.mxu0
        %v3401 = vadd.f32 %v3317, %v3397
        %v3402 = vadd.f32 %v3318, %v3399
        %v3403 = vld [vmem:[#allocation2 + $0x7] sm:$0xff]
        %v3404 = vld [vmem:[#allocation2 + $0xf] sm:$0xff]
        %v3405 = vpack.c.bf16 %v3404, %v3403
        %s3406 = scalar_lea.vmem [#allocation8], 448
        %v3407 = vld [vmem:[%s3406] sm:$0xf]
        %v3408 = vld [vmem:[%s3406 + $0x4] sm:$0xf]
        %v3409 = vld [vmem:[%s3406 + $0x8] sm:$0xf]
        %v3410 = vld [vmem:[%s3406 + $0xc] sm:$0xf]
        %v3411 = vld [vmem:[%s3406 + $0x10] sm:$0xf]
        %v3412 = vld [vmem:[%s3406 + $0x14] sm:$0xf]
        %v3413 = vld [vmem:[%s3406 + $0x18] sm:$0xf]
        %v3414 = vld [vmem:[%s3406 + $0x1c] sm:$0xf]
        %v3415 = vld [vmem:[%s3406 + $0x20] sm:$0xf]
        %v3416 = vld [vmem:[%s3406 + $0x24] sm:$0xf]
        %v3417 = vld [vmem:[%s3406 + $0x28] sm:$0xf]
        %v3418 = vld [vmem:[%s3406 + $0x2c] sm:$0xf]
        %v3419 = vld [vmem:[%s3406 + $0x30] sm:$0xf]
        %v3420 = vld [vmem:[%s3406 + $0x34] sm:$0xf]
        %v3421 = vld [vmem:[%s3406 + $0x38] sm:$0xf]
        %v3422 = vld [vmem:[%s3406 + $0x3c] sm:$0xf]
        %v3439 = vunpack.c.l.b16 %v3407
        %v3440 = vunpack.c.l.b16 %v3408
        %v3441 = vunpack.c.l.b16 %v3409
        %v3442 = vunpack.c.l.b16 %v3410
        %v3443 = vunpack.c.l.b16 %v3411
        %v3444 = vunpack.c.l.b16 %v3412
        %v3445 = vunpack.c.l.b16 %v3413
        %v3446 = vunpack.c.l.b16 %v3414
        %v3447 = vunpack.c.l.b16 %v3415
        %v3448 = vunpack.c.l.b16 %v3416
        %v3449 = vunpack.c.l.b16 %v3417
        %v3450 = vunpack.c.l.b16 %v3418
        %v3451 = vunpack.c.l.b16 %v3419
        %v3452 = vunpack.c.l.b16 %v3420
        %v3453 = vunpack.c.l.b16 %v3421
        %v3454 = vunpack.c.l.b16 %v3422
        %v3455 = vpack.c.b16 %v3440, %v3439
        %v3456 = vpack.c.b16 %v3442, %v3441
        %v3457 = vpack.c.b16 %v3444, %v3443
        %v3458 = vpack.c.b16 %v3446, %v3445
        %v3459 = vpack.c.b16 %v3448, %v3447
        %v3460 = vpack.c.b16 %v3450, %v3449
        %v3461 = vpack.c.b16 %v3452, %v3451
        %v3462 = vpack.c.b16 %v3454, %v3453
        %3471 = vmatpush.bf16.msra.mxu0 %v3462
        %3472 = vmatpush.bf16.msra.mxu0 %v3461
        %3473 = vmatpush.bf16.msra.mxu0 %v3460
        %3474 = vmatpush.bf16.msra.mxu0 %v3459
        %3475 = vmatpush.bf16.msra.mxu0 %v3458
        %3476 = vmatpush.bf16.msra.mxu0 %v3457
        %3477 = vmatpush.bf16.msra.mxu0 %v3456
        %3478 = vmatpush.bf16.msra.mxu0 %v3455
        %3479 = vmatmul.bf16.gmra.mxu0 %v3405
        %v3480 = vpop.f32.mrf.mxu0
        %v3481 = vadd.f32 0.0, %v3480
        %v3482 = vpop.f32.mrf.mxu0
        %v3483 = vadd.f32 0.0, %v3482
        %3484 = vdwg.mxu0
        %v3485 = vadd.f32 %v3401, %v3481
        %v3486 = vadd.f32 %v3402, %v3483
        %v3488 = vperm.slane %v2801, 0
        %v3490 = vadd.f32 %v3485, %v3488
        %v3491 = vadd.f32 %v3486, %v3488
        %3492 = vst [vmem:[%s507] sm:$0xff] %v3490
        %3493 = vst [vmem:[%s507 + $0x8] sm:$0xff] %v3491
        %p3494 = scmp.lt.s32.totalorder %s27, 1
        %s3495 = scalar_select %p3494, %s27, 1
        %s3496 = smul.addr %s3495, 2
        %s3497 = smul.addr %s3496, 8
        %s3498 = scalar_lea.vmem %s13, %s3497
        // Predicated region
        $region89: #{convolutional_encoder.1} parent=71 // pred_check
          %p3499 = pneg %p323
        $region90: #{convolutional_encoder.1} parent=71 // pred_check_branch
          %3501 = sbr.rel (%p3499) target = $region92
        $region91: #{convolutional_encoder.1} parent=71 // pred_region
          _
        $region92: #{convolutional_encoder.1} parent=71 // pred_fallthru
          _
      $region72: #{convolutional_encoder.1} parent=5 // pred_fallthru
        _
      %p3502 = scmp.le.s32.totalorder 2, %s22
      // Predicated region
      $region93: #{convolutional_encoder.1} parent=5 // pred_check
        %p3503 = pneg %p3502
      $region94: #{convolutional_encoder.1} parent=5 // pred_check_branch
        %3505 = sbr.rel (%p3503) target = $region96
      $region95: #{convolutional_encoder.1} parent=5 // pred_region
        %s3506 = ssub.s32 %s22, 2
        // Predicated region
        $region97: #{convolutional_encoder.1} parent=95 // pred_check
          %p3507 = pneg %p329
        $region98: #{convolutional_encoder.1} parent=95 // pred_check_branch
          %3509 = sbr.rel (%p3507) target = $region100
        $region99: #{convolutional_encoder.1} parent=95 // pred_region
          %p3510 = scmp.lt.s32.totalorder %s28, 1
          %s3511 = scalar_select %p3510, %s28, 1
          %s3512 = smul.addr %s3511, 2
          %s3513 = smul.addr %s3512, 8
          %s3514 = scalar_lea.vmem %s13, %s3513
        $region100: #{convolutional_encoder.1} parent=95 // pred_fallthru
          _
      $region96: #{convolutional_encoder.1} parent=5 // pred_fallthru
        _
    $region6: #{convolutional_encoder.1} parent=1 // loop_footer
      %s26 = sadd.s32 1, %s22
    $region7: #{convolutional_encoder.1} parent=1 // loop_footer_branch
      %21 = sbr.rel target = $region3
    $region8: #{convolutional_encoder.1} parent=1 // loop_exit
      _
    %3515 = vsyncpa [#allocation4], 1
    %s3516 = scalar_lea.sflag [#allocation4], 1
    %3517 = vsyncpa %s3516, 1
    %3518 = vsyncpa [#allocation6], 1
    %3519 = vsyncpa [#allocation9], 1

</llo_original>
